<compile_context>
chip_gen: v6e
topology: v6e:2x2x1
jax: 0.10.0
libtpu: 0.0.40
codegen_flags: <defaults>
</compile_context>

<pallas_src>
import math
from functools import partial

import jax
import jax.numpy as jnp
from jax.experimental import pallas as pl
from jax.experimental.pallas import tpu as pltpu

# ----------------------------- config (small, ALBERT-style) ------------------
VOCAB    = 50     # cfg.vocab_size
EMB      = 16     # cfg.embedding
HIDDEN   = 32     # cfg.hidden
MAX_LEN  = 16     # cfg.max_len
N_SEG    = 2      # cfg.n_segments
N_HEADS  = 4      # cfg.n_heads
N_LAYERS = 2      # cfg.n_layers (ALBERT: same weights reused every layer)
FF       = 64     # cfg.hidden_ff
EPS      = 1e-12  # LayerNorm variance_epsilon
HEAD_W   = HIDDEN // N_HEADS

PADV = 128        # lane-padded vocab width for the LM-head output store
PADC = 128        # lane-padded width for the NSP classifier output store

BF16 = jnp.bfloat16
F32  = jnp.float32


# ----------------------------- in-kernel math helpers ------------------------
def _layernorm(x, gamma, beta):
    u = jnp.mean(x, axis=-1, keepdims=True)
    s = jnp.mean((x - u) ** 2, axis=-1, keepdims=True)
    return gamma * ((x - u) / jnp.sqrt(s + EPS)) + beta


def _erf(x):
    # Abramowitz & Stegun 7.1.26 (|abs err| < 1.5e-7 ~ f32 eps); exp goes to EUP.
    a1, a2, a3, a4, a5 = 0.254829592, -0.284496736, 1.421413741, -1.453152027, 1.061405429
    p = 0.3275911
    ax = jnp.abs(x)
    t = 1.0 / (1.0 + p * ax)
    poly = ((((a5 * t + a4) * t + a3) * t + a2) * t + a1) * t
    y = 1.0 - poly * jnp.exp(-ax * ax)
    return jnp.where(x >= 0, y, -y)


def _gelu(x):
    # exact-erf GELU (matches the torch.erf reference)
    return x * 0.5 * (1.0 + _erf(x / math.sqrt(2.0)))


# ----------------------------- fused forward kernel --------------------------
def _bert_kernel(B, S, NM, *refs):
    (e1_ref, ps_ref, mp_ref,
     wemb_ref, bemb_ref, gemb_ref, beemb_ref,
     wqkv_ref, bqkv_ref, wp_ref, bp_ref,
     g1_ref, be1_ref,
     w1_ref, bf1_ref, w2_ref, bf2_ref,
     g2_ref, be2_ref,
     wfc_ref, bfc_ref, wcls_ref, bcls_ref,
     wlin_ref, blin_ref, gh_ref, beh_ref,
     wd_ref, dbias_ref,
     olm_ref, oclsf_ref) = refs

    T = B * S
    H, W = N_HEADS, HEAD_W
    inv_sqrt_w = 1.0 / math.sqrt(W)

    # ---- load shared block weights once / pre-broadcast small params (hoisted) ----
    wqkv, wp, w1, w2 = wqkv_ref[...], wp_ref[...], w1_ref[...], w2_ref[...]
    bqkv = jnp.broadcast_to(bqkv_ref[...], (T, 3 * HIDDEN))
    bp   = jnp.broadcast_to(bp_ref[...],   (T, HIDDEN))
    bf1  = jnp.broadcast_to(bf1_ref[...],  (T, FF))
    bf2  = jnp.broadcast_to(bf2_ref[...],  (T, HIDDEN))
    g1   = jnp.broadcast_to(g1_ref[...],   (T, HIDDEN))
    be1  = jnp.broadcast_to(be1_ref[...],  (T, HIDDEN))
    g2   = jnp.broadcast_to(g2_ref[...],   (T, HIDDEN))
    be2  = jnp.broadcast_to(be2_ref[...],  (T, HIDDEN))

    # ---- embeddings: tok_embed2(tok_embed1(x)) + pos + seg, then LayerNorm ----
    e = jnp.dot(e1_ref[...], wemb_ref[...],
                preferred_element_type=jnp.float32) + bemb_ref[...]
    e = e + ps_ref[...]                       # pos_embed + seg_embed (pre-added glue)
    h = _layernorm(e, gemb_ref[...], beemb_ref[...])        # (T, D) f32

    # ---- N_LAYERS transformer blocks (ALBERT: identical shared weights) ----
    for _ in range(N_LAYERS):                 # static unroll
        xb = h.astype(BF16)

        # fused QKV: one MXU push, lane-dense 96-wide output (single vreg)
        qkv = jnp.dot(xb, wqkv, preferred_element_type=jnp.float32) + bqkv   # (T, 3D)
        qkv3 = qkv.reshape(B, S, 3 * HIDDEN)

        # per-head views folded into a single leading batch dim (H*B, S, W)
        # (single-batch-dim einsum is the known-good Mosaic path; a trailing
        #  head-axis 'bqhw,bkhw->bhqk' form needs multi-batch-dim dot_general)
        def heads(off):
            return jnp.stack(
                [qkv3[:, :, off + i * W: off + (i + 1) * W] for i in range(H)], 0
            ).reshape(H * B, S, W)
        qh = heads(0)
        kh = heads(HIDDEN)
        vh = heads(2 * HIDDEN)

        s = jnp.einsum('nqw,nkw->nqk', qh.astype(BF16), kh.astype(BF16),
                       preferred_element_type=jnp.float32) * inv_sqrt_w
        s = s - jnp.max(s, axis=-1, keepdims=True)
        p = jnp.exp(s)
        p = p / jnp.sum(p, axis=-1, keepdims=True)            # exact softmax divide
        ctx = jnp.einsum('nqk,nkw->nqw', p.astype(BF16), vh.astype(BF16),
                         preferred_element_type=jnp.float32)  # (H*B, S, W)

        # merge heads in-register (no VMEM scratch, no masked sub-lane stores)
        ctx4 = ctx.reshape(H, B, S, W)
        a = jnp.concatenate([ctx4[i].reshape(T, W) for i in range(H)], axis=-1)

        # h = norm1(h + proj(h)) where h := attention output (as in the reference)
        pr = jnp.dot(a.astype(BF16), wp, preferred_element_type=jnp.float32) + bp
        h = _layernorm(a + pr, g1, be1)

        # h = norm2(h + fc2(gelu(fc1(h))))
        f = _gelu(jnp.dot(h.astype(BF16), w1, preferred_element_type=jnp.float32) + bf1)
        f = jnp.dot(f.astype(BF16), w2, preferred_element_type=jnp.float32) + bf2
        h = _layernorm(h + f, g2, be2)

    hb = h.astype(BF16)

    # ---- pooled output: logits_clsf = classifier(tanh(fc(h[:, 0]))) ----
    first = h.reshape(B, S, HIDDEN)[:, 0, :]                   # static CLS rows, (B, D)
    pooled = jnp.tanh(jnp.dot(first.astype(BF16), wfc_ref[...],
                              preferred_element_type=jnp.float32) + bfc_ref[...])
    oclsf_ref[...] = jnp.dot(pooled.astype(BF16), wcls_ref[...],
                             preferred_element_type=jnp.float32) + bcls_ref[...]

    # ---- masked-LM head: one-hot MXU gather -> norm(gelu(linear)) -> folded decoder ----
    hm = jnp.dot(mp_ref[...], hb, preferred_element_type=jnp.float32)   # (B*NM, D)
    hm = _gelu(jnp.dot(hm.astype(BF16), wlin_ref[...],
                       preferred_element_type=jnp.float32) + blin_ref[...])
    hm = _layernorm(hm, gh_ref[...], beh_ref[...])
    olm_ref[...] = jnp.dot(hm.astype(BF16), wd_ref[...],
                           preferred_element_type=jnp.float32) + dbias_ref[...]


# ----------------------------- one-time weight prep ---------------------------
def prepare_params(params):
    """Hoisted out of the per-call path: transposes, bf16 casts, QKV fuse,
    decoder1*decoder2 fold, lane padding of the head weights."""
    bf = lambda a: a.astype(BF16)

    # fused QKV projection
    wqkv = bf(jnp.concatenate([params["wq"], params["wk"], params["wv"]], axis=1))
    bqkv = jnp.concatenate([params["bq"], params["bk"], params["bv"]], axis=1)

    # tied decoders folded in f32, then cast once to bf16, lane-padded to 128
    wd = params["w_emb"].T @ params["tok1"].T                   # (HIDDEN, VOCAB) f32
    wd_pad = jnp.pad(bf(wd), ((0, 0), (0, PADV - VOCAB)))
    dbias_pad = jnp.pad(params["dec_bias"], ((0, 0), (0, PADV - VOCAB)))

    # NSP classifier lane-padded to 128
    wcls_pad = bf(jnp.pad(params["wcls"], ((0, 0), (0, PADC - 2))))
    bcls_pad = jnp.pad(params["bcls"], ((0, 0), (0, PADC - 2)))

    return dict(
        tok1=params["tok1"], pos=params["pos"], segt=params["segt"],
        wemb=bf(params["w_emb"]), bemb=params["b_emb"],
        gemb=params["g_emb"], beemb=params["be_emb"],
        wqkv=wqkv, bqkv=bqkv,
        wp=bf(params["wp"]), bp=params["bp"],
        g1=params["g1"], be1=params["be1"],
        w1=bf(params["w1"]), bf1=params["bf1"],
        w2=bf(params["w2"]), bf2=params["bf2"],
        g2=params["g2"], be2=params["be2"],
        wfc=bf(params["wfc"]), bfc=params["bfc"],
        wcls=wcls_pad, bcls=bcls_pad,
        wlin=bf(params["wlin"]), blin=params["blin"],
        gh=params["g_h"], beh=params["be_h"],
        wd=wd_pad, dbias=dbias_pad,
    )


# ----------------------------- wrapper ----------------------------------------
def bert4pretrain_forward(prep, input_ids, segment_ids, input_mask, masked_pos):
    # input_mask accepted for interface parity; the reference attention never applies it.
    del input_mask
    B, S = input_ids.shape
    NM = masked_pos.shape[1]
    T = B * S

    # plain-JAX glue: embedding-table gathers + masked-position one-hot
    e1 = jnp.take(prep["tok1"], input_ids, axis=0).reshape(T, EMB).astype(BF16)
    pos_seg = (prep["pos"][:S][None, :, :]
               + jnp.take(prep["segt"], segment_ids, axis=0)).reshape(T, HIDDEN)
    flat_pos = (masked_pos.astype(jnp.int32)
                + jnp.arange(B, dtype=jnp.int32)[:, None] * S).reshape(-1)
    mp_onehot = (flat_pos[:, None] == jnp.arange(T, dtype=jnp.int32)[None, :]).astype(BF16)

    args = (
        e1, pos_seg, mp_onehot,
        prep["wemb"], prep["bemb"], prep["gemb"], prep["beemb"],
        prep["wqkv"], prep["bqkv"], prep["wp"], prep["bp"],
        prep["g1"], prep["be1"],
        prep["w1"], prep["bf1"], prep["w2"], prep["bf2"],
        prep["g2"], prep["be2"],
        prep["wfc"], prep["bfc"], prep["wcls"], prep["bcls"],
        prep["wlin"], prep["blin"], prep["gh"], prep["beh"],
        prep["wd"], prep["dbias"],
    )

    vmem = pl.BlockSpec(memory_space=pltpu.MemorySpace.VMEM)
    out_shape = (jax.ShapeDtypeStruct((B * NM, PADV), jnp.float32),   # lane-dense LM store
                 jax.ShapeDtypeStruct((B, PADC), jnp.float32))        # lane-dense NSP store

    lm_pad, clsf_pad = pl.pallas_call(
        partial(_bert_kernel, B, S, NM),
        out_shape=out_shape,
        in_specs=[vmem] * len(args),
        out_specs=(vmem, vmem),
    )(*args)

    logits_lm = lm_pad[:, :VOCAB].reshape(B, NM, VOCAB)
    logits_clsf = clsf_pad[:, :2]
    return logits_lm, logits_clsf


# ----------------------------- deterministic parameter init ------------------
def init_params(key):
    ks = jax.random.split(key, 22)
    w = lambda k, shape: jax.random.normal(k, shape, jnp.float32) * 0.02
    ones = lambda n: jnp.ones((1, n), jnp.float32)
    zeros = lambda n: jnp.zeros((1, n), jnp.float32)
    return {
        # embeddings
        "tok1": w(ks[0], (VOCAB, EMB)),
        "pos":  w(ks[1], (MAX_LEN, HIDDEN)),
        "segt": w(ks[2], (N_SEG, HIDDEN)),
        "w_emb": w(ks[3], (EMB, HIDDEN)), "b_emb": w(ks[4], (1, HIDDEN)),
        "g_emb": ones(HIDDEN), "be_emb": zeros(HIDDEN),
        # shared transformer block (ALBERT)
        "wq": w(ks[5], (HIDDEN, HIDDEN)),  "bq": w(ks[6], (1, HIDDEN)),
        "wk": w(ks[7], (HIDDEN, HIDDEN)),  "bk": w(ks[8], (1, HIDDEN)),
        "wv": w(ks[9], (HIDDEN, HIDDEN)),  "bv": w(ks[10], (1, HIDDEN)),
        "wp": w(ks[11], (HIDDEN, HIDDEN)), "bp": w(ks[12], (1, HIDDEN)),
        "g1": ones(HIDDEN), "be1": zeros(HIDDEN),
        "w1": w(ks[13], (HIDDEN, FF)),     "bf1": w(ks[14], (1, FF)),
        "w2": w(ks[15], (FF, HIDDEN)),     "bf2": w(ks[16], (1, HIDDEN)),
        "g2": ones(HIDDEN), "be2": zeros(HIDDEN),
        # pretrain heads
        "wfc":  w(ks[17], (HIDDEN, HIDDEN)), "bfc":  w(ks[18], (1, HIDDEN)),
        "wlin": w(ks[19], (HIDDEN, HIDDEN)), "blin": w(ks[20], (1, HIDDEN)),
        "g_h": ones(HIDDEN), "be_h": zeros(HIDDEN),
        "wcls": w(ks[21], (HIDDEN, 2)), "bcls": jnp.zeros((1, 2), jnp.float32),
        "dec_bias": jnp.zeros((1, VOCAB), jnp.float32),
    }


if __name__ == "__main__":
    key = jax.random.PRNGKey(0)
    k_p, k_x, k_s, k_m = jax.random.split(key, 4)

    B, S, NM = 2, 8, 4
    params = init_params(k_p)
    prep = prepare_params(params)                 # one-time weight prep (hoisted)

    input_ids   = jax.random.randint(k_x, (B, S), 0, VOCAB, dtype=jnp.int32)
    segment_ids = jax.random.randint(k_s, (B, S), 0, N_SEG, dtype=jnp.int32)
    input_mask  = jnp.ones((B, S), jnp.float32)   # unused by the reference attention
    masked_pos  = jax.random.randint(k_m, (B, NM), 0, S, dtype=jnp.int32)

    fwd = jax.jit(bert4pretrain_forward)
    logits_lm, logits_clsf = fwd(prep, input_ids, segment_ids, input_mask, masked_pos)
    jax.block_until_ready((logits_lm, logits_clsf))
    assert logits_lm.shape == (B, NM, VOCAB) and logits_lm.dtype == jnp.float32
    assert logits_clsf.shape == (B, 2) and logits_clsf.dtype == jnp.float32
    print("KERNEL_OK")
</pallas_src>

<mosaic_0001>
module attributes {stable_mosaic.version = 11 : i64} {
  func.func @_bert_kernel(%arg0: memref<16x16xbf16, #tpu.memory_space<vmem>>, %arg1: memref<16x32xf32, #tpu.memory_space<vmem>>, %arg2: memref<8x16xbf16, #tpu.memory_space<vmem>>, %arg3: memref<16x32xbf16, #tpu.memory_space<vmem>>, %arg4: memref<1x32xf32, #tpu.memory_space<vmem>>, %arg5: memref<1x32xf32, #tpu.memory_space<vmem>>, %arg6: memref<1x32xf32, #tpu.memory_space<vmem>>, %arg7: memref<32x96xbf16, #tpu.memory_space<vmem>>, %arg8: memref<1x96xf32, #tpu.memory_space<vmem>>, %arg9: memref<32x32xbf16, #tpu.memory_space<vmem>>, %arg10: memref<1x32xf32, #tpu.memory_space<vmem>>, %arg11: memref<1x32xf32, #tpu.memory_space<vmem>>, %arg12: memref<1x32xf32, #tpu.memory_space<vmem>>, %arg13: memref<32x64xbf16, #tpu.memory_space<vmem>>, %arg14: memref<1x64xf32, #tpu.memory_space<vmem>>, %arg15: memref<64x32xbf16, #tpu.memory_space<vmem>>, %arg16: memref<1x32xf32, #tpu.memory_space<vmem>>, %arg17: memref<1x32xf32, #tpu.memory_space<vmem>>, %arg18: memref<1x32xf32, #tpu.memory_space<vmem>>, %arg19: memref<32x32xbf16, #tpu.memory_space<vmem>>, %arg20: memref<1x32xf32, #tpu.memory_space<vmem>>, %arg21: memref<32x128xbf16, #tpu.memory_space<vmem>>, %arg22: memref<1x128xf32, #tpu.memory_space<vmem>>, %arg23: memref<32x32xbf16, #tpu.memory_space<vmem>>, %arg24: memref<1x32xf32, #tpu.memory_space<vmem>>, %arg25: memref<1x32xf32, #tpu.memory_space<vmem>>, %arg26: memref<1x32xf32, #tpu.memory_space<vmem>>, %arg27: memref<32x128xbf16, #tpu.memory_space<vmem>>, %arg28: memref<1x128xf32, #tpu.memory_space<vmem>>, %arg29: memref<8x128xf32, #tpu.memory_space<vmem>>, %arg30: memref<2x128xf32, #tpu.memory_space<vmem>>) attributes {dimension_semantics = [], scalar_prefetch = 0 : i64, scratch_operands = 0 : i64, tpu.core_type = #tpu.core_type<tc>} {
    %c0 = arith.constant 0 : index
    %c0_0 = arith.constant 0 : index
    %0 = vector.load %arg7[%c0, %c0_0] : memref<32x96xbf16, #tpu.memory_space<vmem>>, vector<32x96xbf16>
    %c0_1 = arith.constant 0 : index
    %c0_2 = arith.constant 0 : index
    %1 = vector.load %arg9[%c0_1, %c0_2] : memref<32x32xbf16, #tpu.memory_space<vmem>>, vector<32x32xbf16>
    %c0_3 = arith.constant 0 : index
    %c0_4 = arith.constant 0 : index
    %2 = vector.load %arg13[%c0_3, %c0_4] : memref<32x64xbf16, #tpu.memory_space<vmem>>, vector<32x64xbf16>
    %c0_5 = arith.constant 0 : index
    %c0_6 = arith.constant 0 : index
    %3 = vector.load %arg15[%c0_5, %c0_6] : memref<64x32xbf16, #tpu.memory_space<vmem>>, vector<64x32xbf16>
    %c0_7 = arith.constant 0 : index
    %c0_8 = arith.constant 0 : index
    %4 = vector.load %arg8[%c0_7, %c0_8] : memref<1x96xf32, #tpu.memory_space<vmem>>, vector<1x96xf32>
    %5 = vector.shape_cast %4 : vector<1x96xf32> to vector<1x96xf32>
    %6 = vector.broadcast %5 : vector<1x96xf32> to vector<16x96xf32>
    %c0_9 = arith.constant 0 : index
    %c0_10 = arith.constant 0 : index
    %7 = vector.load %arg10[%c0_9, %c0_10] : memref<1x32xf32, #tpu.memory_space<vmem>>, vector<1x32xf32>
    %8 = vector.shape_cast %7 : vector<1x32xf32> to vector<1x32xf32>
    %9 = vector.broadcast %8 : vector<1x32xf32> to vector<16x32xf32>
    %c0_11 = arith.constant 0 : index
    %c0_12 = arith.constant 0 : index
    %10 = vector.load %arg14[%c0_11, %c0_12] : memref<1x64xf32, #tpu.memory_space<vmem>>, vector<1x64xf32>
    %11 = vector.shape_cast %10 : vector<1x64xf32> to vector<1x64xf32>
    %12 = vector.broadcast %11 : vector<1x64xf32> to vector<16x64xf32>
    %c0_13 = arith.constant 0 : index
    %c0_14 = arith.constant 0 : index
    %13 = vector.load %arg16[%c0_13, %c0_14] : memref<1x32xf32, #tpu.memory_space<vmem>>, vector<1x32xf32>
    %14 = vector.shape_cast %13 : vector<1x32xf32> to vector<1x32xf32>
    %15 = vector.broadcast %14 : vector<1x32xf32> to vector<16x32xf32>
    %c0_15 = arith.constant 0 : index
    %c0_16 = arith.constant 0 : index
    %16 = vector.load %arg11[%c0_15, %c0_16] : memref<1x32xf32, #tpu.memory_space<vmem>>, vector<1x32xf32>
    %17 = vector.shape_cast %16 : vector<1x32xf32> to vector<1x32xf32>
    %18 = vector.broadcast %17 : vector<1x32xf32> to vector<16x32xf32>
    %c0_17 = arith.constant 0 : index
    %c0_18 = arith.constant 0 : index
    %19 = vector.load %arg12[%c0_17, %c0_18] : memref<1x32xf32, #tpu.memory_space<vmem>>, vector<1x32xf32>
    %20 = vector.shape_cast %19 : vector<1x32xf32> to vector<1x32xf32>
    %21 = vector.broadcast %20 : vector<1x32xf32> to vector<16x32xf32>
    %c0_19 = arith.constant 0 : index
    %c0_20 = arith.constant 0 : index
    %22 = vector.load %arg17[%c0_19, %c0_20] : memref<1x32xf32, #tpu.memory_space<vmem>>, vector<1x32xf32>
    %23 = vector.shape_cast %22 : vector<1x32xf32> to vector<1x32xf32>
    %24 = vector.broadcast %23 : vector<1x32xf32> to vector<16x32xf32>
    %c0_21 = arith.constant 0 : index
    %c0_22 = arith.constant 0 : index
    %25 = vector.load %arg18[%c0_21, %c0_22] : memref<1x32xf32, #tpu.memory_space<vmem>>, vector<1x32xf32>
    %26 = vector.shape_cast %25 : vector<1x32xf32> to vector<1x32xf32>
    %27 = vector.broadcast %26 : vector<1x32xf32> to vector<16x32xf32>
    %c0_23 = arith.constant 0 : index
    %c0_24 = arith.constant 0 : index
    %28 = vector.load %arg0[%c0_23, %c0_24] : memref<16x16xbf16, #tpu.memory_space<vmem>>, vector<16x16xbf16>
    %c0_25 = arith.constant 0 : index
    %c0_26 = arith.constant 0 : index
    %29 = vector.load %arg3[%c0_25, %c0_26] : memref<16x32xbf16, #tpu.memory_space<vmem>>, vector<16x32xbf16>
    %cst = arith.constant dense<0.000000e+00> : vector<16x32xf32>
    %30 = tpu.matmul %28, %29, %cst {dimension_numbers = #tpu.dot_dimension_numbers<[1], [0], [0], [1], [0, 0, 1, 1], [], []>} : vector<16x16xbf16>, vector<16x32xbf16>, vector<16x32xf32> -> vector<16x32xf32>
    %c0_27 = arith.constant 0 : index
    %c0_28 = arith.constant 0 : index
    %31 = vector.load %arg4[%c0_27, %c0_28] : memref<1x32xf32, #tpu.memory_space<vmem>>, vector<1x32xf32>
    %32 = vector.broadcast %31 : vector<1x32xf32> to vector<16x32xf32>
    %33 = arith.addf %30, %32 : vector<16x32xf32>
    %c0_29 = arith.constant 0 : index
    %c0_30 = arith.constant 0 : index
    %34 = vector.load %arg1[%c0_29, %c0_30] : memref<16x32xf32, #tpu.memory_space<vmem>>, vector<16x32xf32>
    %35 = arith.addf %33, %34 : vector<16x32xf32>
    %c0_31 = arith.constant 0 : index
    %c0_32 = arith.constant 0 : index
    %36 = vector.load %arg5[%c0_31, %c0_32] : memref<1x32xf32, #tpu.memory_space<vmem>>, vector<1x32xf32>
    %c0_33 = arith.constant 0 : index
    %c0_34 = arith.constant 0 : index
    %37 = vector.load %arg6[%c0_33, %c0_34] : memref<1x32xf32, #tpu.memory_space<vmem>>, vector<1x32xf32>
    %cst_35 = arith.constant dense<0.000000e+00> : vector<16xf32>
    %38 = vector.multi_reduction <add>, %35, %cst_35 [1] : vector<16x32xf32> to vector<16xf32>
    %39 = vector.shape_cast %38 : vector<16xf32> to vector<16x1xf32>
    %cst_36 = arith.constant 3.200000e+01 : f32
    %40 = vector.broadcast %cst_36 : f32 to vector<16x1xf32>
    %41 = arith.divf %39, %40 : vector<16x1xf32>
    %42 = vector.broadcast %41 : vector<16x1xf32> to vector<16x32xf32>
    %43 = arith.subf %35, %42 : vector<16x32xf32>
    %44 = arith.mulf %43, %43 : vector<16x32xf32>
    %cst_37 = arith.constant dense<0.000000e+00> : vector<16xf32>
    %45 = vector.multi_reduction <add>, %44, %cst_37 [1] : vector<16x32xf32> to vector<16xf32>
    %46 = vector.shape_cast %45 : vector<16xf32> to vector<16x1xf32>
    %cst_38 = arith.constant 3.200000e+01 : f32
    %47 = vector.broadcast %cst_38 : f32 to vector<16x1xf32>
    %48 = arith.divf %46, %47 : vector<16x1xf32>
    %49 = vector.broadcast %41 : vector<16x1xf32> to vector<16x32xf32>
    %50 = arith.subf %35, %49 : vector<16x32xf32>
    %cst_39 = arith.constant 9.99999996E-13 : f32
    %51 = vector.broadcast %cst_39 : f32 to vector<16x1xf32>
    %52 = arith.addf %48, %51 : vector<16x1xf32>
    %53 = math.sqrt %52 : vector<16x1xf32>
    %54 = vector.broadcast %53 : vector<16x1xf32> to vector<16x32xf32>
    %55 = arith.divf %50, %54 : vector<16x32xf32>
    %56 = vector.broadcast %36 : vector<1x32xf32> to vector<16x32xf32>
    %57 = arith.mulf %56, %55 : vector<16x32xf32>
    %58 = vector.broadcast %37 : vector<1x32xf32> to vector<16x32xf32>
    %59 = arith.addf %57, %58 : vector<16x32xf32>
    %60 = arith.truncf %59 : vector<16x32xf32> to vector<16x32xbf16>
    %cst_40 = arith.constant dense<0.000000e+00> : vector<16x96xf32>
    %61 = tpu.matmul %60, %0, %cst_40 {dimension_numbers = #tpu.dot_dimension_numbers<[1], [0], [0], [1], [0, 0, 1, 1], [], []>} : vector<16x32xbf16>, vector<32x96xbf16>, vector<16x96xf32> -> vector<16x96xf32>
    %62 = arith.addf %61, %6 : vector<16x96xf32>
    %63 = vector.shape_cast %62 : vector<16x96xf32> to vector<2x8x96xf32>
    %64 = vector.extract_strided_slice %63 {offsets = [0, 0, 0], sizes = [2, 8, 8], strides = [1, 1, 1]} : vector<2x8x96xf32> to vector<2x8x8xf32>
    %65 = vector.extract_strided_slice %63 {offsets = [0, 0, 8], sizes = [2, 8, 8], strides = [1, 1, 1]} : vector<2x8x96xf32> to vector<2x8x8xf32>
    %66 = vector.extract_strided_slice %63 {offsets = [0, 0, 16], sizes = [2, 8, 8], strides = [1, 1, 1]} : vector<2x8x96xf32> to vector<2x8x8xf32>
    %67 = vector.extract_strided_slice %63 {offsets = [0, 0, 24], sizes = [2, 8, 8], strides = [1, 1, 1]} : vector<2x8x96xf32> to vector<2x8x8xf32>
    %68 = vector.shape_cast %64 : vector<2x8x8xf32> to vector<1x2x8x8xf32>
    %69 = vector.shape_cast %65 : vector<2x8x8xf32> to vector<1x2x8x8xf32>
    %70 = vector.shape_cast %66 : vector<2x8x8xf32> to vector<1x2x8x8xf32>
    %71 = vector.shape_cast %67 : vector<2x8x8xf32> to vector<1x2x8x8xf32>
    %72 = tpu.concatenate %68, %69, %70, %71 in 0 : vector<1x2x8x8xf32>, vector<1x2x8x8xf32>, vector<1x2x8x8xf32>, vector<1x2x8x8xf32> -> vector<4x2x8x8xf32>
    %73 = vector.shape_cast %72 : vector<4x2x8x8xf32> to vector<8x8x8xf32>
    %74 = vector.extract_strided_slice %63 {offsets = [0, 0, 32], sizes = [2, 8, 8], strides = [1, 1, 1]} : vector<2x8x96xf32> to vector<2x8x8xf32>
    %75 = vector.extract_strided_slice %63 {offsets = [0, 0, 40], sizes = [2, 8, 8], strides = [1, 1, 1]} : vector<2x8x96xf32> to vector<2x8x8xf32>
    %76 = vector.extract_strided_slice %63 {offsets = [0, 0, 48], sizes = [2, 8, 8], strides = [1, 1, 1]} : vector<2x8x96xf32> to vector<2x8x8xf32>
    %77 = vector.extract_strided_slice %63 {offsets = [0, 0, 56], sizes = [2, 8, 8], strides = [1, 1, 1]} : vector<2x8x96xf32> to vector<2x8x8xf32>
    %78 = vector.shape_cast %74 : vector<2x8x8xf32> to vector<1x2x8x8xf32>
    %79 = vector.shape_cast %75 : vector<2x8x8xf32> to vector<1x2x8x8xf32>
    %80 = vector.shape_cast %76 : vector<2x8x8xf32> to vector<1x2x8x8xf32>
    %81 = vector.shape_cast %77 : vector<2x8x8xf32> to vector<1x2x8x8xf32>
    %82 = tpu.concatenate %78, %79, %80, %81 in 0 : vector<1x2x8x8xf32>, vector<1x2x8x8xf32>, vector<1x2x8x8xf32>, vector<1x2x8x8xf32> -> vector<4x2x8x8xf32>
    %83 = vector.shape_cast %82 : vector<4x2x8x8xf32> to vector<8x8x8xf32>
    %84 = vector.extract_strided_slice %63 {offsets = [0, 0, 64], sizes = [2, 8, 8], strides = [1, 1, 1]} : vector<2x8x96xf32> to vector<2x8x8xf32>
    %85 = vector.extract_strided_slice %63 {offsets = [0, 0, 72], sizes = [2, 8, 8], strides = [1, 1, 1]} : vector<2x8x96xf32> to vector<2x8x8xf32>
    %86 = vector.extract_strided_slice %63 {offsets = [0, 0, 80], sizes = [2, 8, 8], strides = [1, 1, 1]} : vector<2x8x96xf32> to vector<2x8x8xf32>
    %87 = vector.extract_strided_slice %63 {offsets = [0, 0, 88], sizes = [2, 8, 8], strides = [1, 1, 1]} : vector<2x8x96xf32> to vector<2x8x8xf32>
    %88 = vector.shape_cast %84 : vector<2x8x8xf32> to vector<1x2x8x8xf32>
    %89 = vector.shape_cast %85 : vector<2x8x8xf32> to vector<1x2x8x8xf32>
    %90 = vector.shape_cast %86 : vector<2x8x8xf32> to vector<1x2x8x8xf32>
    %91 = vector.shape_cast %87 : vector<2x8x8xf32> to vector<1x2x8x8xf32>
    %92 = tpu.concatenate %88, %89, %90, %91 in 0 : vector<1x2x8x8xf32>, vector<1x2x8x8xf32>, vector<1x2x8x8xf32>, vector<1x2x8x8xf32> -> vector<4x2x8x8xf32>
    %93 = vector.shape_cast %92 : vector<4x2x8x8xf32> to vector<8x8x8xf32>
    %94 = arith.truncf %73 : vector<8x8x8xf32> to vector<8x8x8xbf16>
    %95 = arith.truncf %83 : vector<8x8x8xf32> to vector<8x8x8xbf16>
    "tpu.trace_start"() <{level = 10 : i32, message = "nqw,nkw->nqk"}> : () -> ()
    %cst_41 = arith.constant dense<0.000000e+00> : vector<8x8x8xf32>
    %96 = tpu.matmul %94, %95, %cst_41 {dimension_numbers = #tpu.dot_dimension_numbers<[2], [2], [1], [1], [0, 0, 0, 1, 1, 1], [0], [0]>} : vector<8x8x8xbf16>, vector<8x8x8xbf16>, vector<8x8x8xf32> -> vector<8x8x8xf32>
    "tpu.trace_stop"() : () -> ()
    %cst_42 = arith.constant 0.353553385 : f32
    %97 = vector.broadcast %cst_42 : f32 to vector<8x8x8xf32>
    %98 = arith.mulf %96, %97 : vector<8x8x8xf32>
    %cst_43 = arith.constant dense<0xFF800000> : vector<8x8xf32>
    %99 = vector.multi_reduction <maximumf>, %98, %cst_43 [2] : vector<8x8x8xf32> to vector<8x8xf32>
    %100 = vector.shape_cast %99 : vector<8x8xf32> to vector<8x8x1xf32>
    %101 = vector.broadcast %100 : vector<8x8x1xf32> to vector<8x8x8xf32>
    %102 = arith.subf %98, %101 : vector<8x8x8xf32>
    %103 = math.exp %102 : vector<8x8x8xf32>
    %cst_44 = arith.constant dense<0.000000e+00> : vector<8x8xf32>
    %104 = vector.multi_reduction <add>, %103, %cst_44 [2] : vector<8x8x8xf32> to vector<8x8xf32>
    %105 = vector.shape_cast %104 : vector<8x8xf32> to vector<8x8x1xf32>
    %106 = vector.broadcast %105 : vector<8x8x1xf32> to vector<8x8x8xf32>
    %107 = arith.divf %103, %106 : vector<8x8x8xf32>
    %108 = arith.truncf %107 : vector<8x8x8xf32> to vector<8x8x8xbf16>
    %109 = arith.truncf %93 : vector<8x8x8xf32> to vector<8x8x8xbf16>
    "tpu.trace_start"() <{level = 10 : i32, message = "nqk,nkw->nqw"}> : () -> ()
    %cst_45 = arith.constant dense<0.000000e+00> : vector<8x8x8xf32>
    %110 = tpu.matmul %108, %109, %cst_45 {dimension_numbers = #tpu.dot_dimension_numbers<[2], [1], [1], [2], [0, 0, 0, 1, 1, 2], [0], [0]>} : vector<8x8x8xbf16>, vector<8x8x8xbf16>, vector<8x8x8xf32> -> vector<8x8x8xf32>
    "tpu.trace_stop"() : () -> ()
    %111 = vector.shape_cast %110 : vector<8x8x8xf32> to vector<4x2x8x8xf32>
    %112 = vector.extract_strided_slice %111 {offsets = [0, 0, 0, 0], sizes = [1, 2, 8, 8], strides = [1, 1, 1, 1]} : vector<4x2x8x8xf32> to vector<1x2x8x8xf32>
    %113 = vector.shape_cast %112 : vector<1x2x8x8xf32> to vector<2x8x8xf32>
    %114 = vector.shape_cast %113 : vector<2x8x8xf32> to vector<16x8xf32>
    %115 = vector.extract_strided_slice %111 {offsets = [1, 0, 0, 0], sizes = [1, 2, 8, 8], strides = [1, 1, 1, 1]} : vector<4x2x8x8xf32> to vector<1x2x8x8xf32>
    %116 = vector.shape_cast %115 : vector<1x2x8x8xf32> to vector<2x8x8xf32>
    %117 = vector.shape_cast %116 : vector<2x8x8xf32> to vector<16x8xf32>
    %118 = vector.extract_strided_slice %111 {offsets = [2, 0, 0, 0], sizes = [1, 2, 8, 8], strides = [1, 1, 1, 1]} : vector<4x2x8x8xf32> to vector<1x2x8x8xf32>
    %119 = vector.shape_cast %118 : vector<1x2x8x8xf32> to vector<2x8x8xf32>
    %120 = vector.shape_cast %119 : vector<2x8x8xf32> to vector<16x8xf32>
    %121 = vector.extract_strided_slice %111 {offsets = [3, 0, 0, 0], sizes = [1, 2, 8, 8], strides = [1, 1, 1, 1]} : vector<4x2x8x8xf32> to vector<1x2x8x8xf32>
    %122 = vector.shape_cast %121 : vector<1x2x8x8xf32> to vector<2x8x8xf32>
    %123 = vector.shape_cast %122 : vector<2x8x8xf32> to vector<16x8xf32>
    %124 = tpu.concatenate %114, %117, %120, %123 in 1 : vector<16x8xf32>, vector<16x8xf32>, vector<16x8xf32>, vector<16x8xf32> -> vector<16x32xf32>
    %125 = arith.truncf %124 : vector<16x32xf32> to vector<16x32xbf16>
    %cst_46 = arith.constant dense<0.000000e+00> : vector<16x32xf32>
    %126 = tpu.matmul %125, %1, %cst_46 {dimension_numbers = #tpu.dot_dimension_numbers<[1], [0], [0], [1], [0, 0, 1, 1], [], []>} : vector<16x32xbf16>, vector<32x32xbf16>, vector<16x32xf32> -> vector<16x32xf32>
    %127 = arith.addf %126, %9 : vector<16x32xf32>
    %128 = arith.addf %124, %127 : vector<16x32xf32>
    %cst_47 = arith.constant dense<0.000000e+00> : vector<16xf32>
    %129 = vector.multi_reduction <add>, %128, %cst_47 [1] : vector<16x32xf32> to vector<16xf32>
    %130 = vector.shape_cast %129 : vector<16xf32> to vector<16x1xf32>
    %cst_48 = arith.constant 3.200000e+01 : f32
    %131 = vector.broadcast %cst_48 : f32 to vector<16x1xf32>
    %132 = arith.divf %130, %131 : vector<16x1xf32>
    %133 = vector.broadcast %132 : vector<16x1xf32> to vector<16x32xf32>
    %134 = arith.subf %128, %133 : vector<16x32xf32>
    %135 = arith.mulf %134, %134 : vector<16x32xf32>
    %cst_49 = arith.constant dense<0.000000e+00> : vector<16xf32>
    %136 = vector.multi_reduction <add>, %135, %cst_49 [1] : vector<16x32xf32> to vector<16xf32>
    %137 = vector.shape_cast %136 : vector<16xf32> to vector<16x1xf32>
    %cst_50 = arith.constant 3.200000e+01 : f32
    %138 = vector.broadcast %cst_50 : f32 to vector<16x1xf32>
    %139 = arith.divf %137, %138 : vector<16x1xf32>
    %140 = vector.broadcast %132 : vector<16x1xf32> to vector<16x32xf32>
    %141 = arith.subf %128, %140 : vector<16x32xf32>
    %cst_51 = arith.constant 9.99999996E-13 : f32
    %142 = vector.broadcast %cst_51 : f32 to vector<16x1xf32>
    %143 = arith.addf %139, %142 : vector<16x1xf32>
    %144 = math.sqrt %143 : vector<16x1xf32>
    %145 = vector.broadcast %144 : vector<16x1xf32> to vector<16x32xf32>
    %146 = arith.divf %141, %145 : vector<16x32xf32>
    %147 = arith.mulf %18, %146 : vector<16x32xf32>
    %148 = arith.addf %147, %21 : vector<16x32xf32>
    %149 = arith.truncf %148 : vector<16x32xf32> to vector<16x32xbf16>
    %cst_52 = arith.constant dense<0.000000e+00> : vector<16x64xf32>
    %150 = tpu.matmul %149, %2, %cst_52 {dimension_numbers = #tpu.dot_dimension_numbers<[1], [0], [0], [1], [0, 0, 1, 1], [], []>} : vector<16x32xbf16>, vector<32x64xbf16>, vector<16x64xf32> -> vector<16x64xf32>
    %151 = arith.addf %150, %12 : vector<16x64xf32>
    %cst_53 = arith.constant 5.000000e-01 : f32
    %152 = vector.broadcast %cst_53 : f32 to vector<16x64xf32>
    %153 = arith.mulf %151, %152 : vector<16x64xf32>
    %cst_54 = arith.constant 1.41421354 : f32
    %154 = vector.broadcast %cst_54 : f32 to vector<16x64xf32>
    %155 = arith.divf %151, %154 : vector<16x64xf32>
    %156 = math.absf %155 : vector<16x64xf32>
    %cst_55 = arith.constant 0.327591091 : f32
    %157 = vector.broadcast %cst_55 : f32 to vector<16x64xf32>
    %158 = arith.mulf %157, %156 : vector<16x64xf32>
    %cst_56 = arith.constant 1.000000e+00 : f32
    %159 = vector.broadcast %cst_56 : f32 to vector<16x64xf32>
    %160 = arith.addf %159, %158 : vector<16x64xf32>
    %cst_57 = arith.constant 1.000000e+00 : f32
    %161 = vector.broadcast %cst_57 : f32 to vector<16x64xf32>
    %162 = arith.divf %161, %160 : vector<16x64xf32>
    %cst_58 = arith.constant 1.06140542 : f32
    %163 = vector.broadcast %cst_58 : f32 to vector<16x64xf32>
    %164 = arith.mulf %163, %162 : vector<16x64xf32>
    %cst_59 = arith.constant -1.45315206 : f32
    %165 = vector.broadcast %cst_59 : f32 to vector<16x64xf32>
    %166 = arith.addf %164, %165 : vector<16x64xf32>
    %167 = arith.mulf %166, %162 : vector<16x64xf32>
    %cst_60 = arith.constant 1.42141378 : f32
    %168 = vector.broadcast %cst_60 : f32 to vector<16x64xf32>
    %169 = arith.addf %167, %168 : vector<16x64xf32>
    %170 = arith.mulf %169, %162 : vector<16x64xf32>
    %cst_61 = arith.constant -0.284496725 : f32
    %171 = vector.broadcast %cst_61 : f32 to vector<16x64xf32>
    %172 = arith.addf %170, %171 : vector<16x64xf32>
    %173 = arith.mulf %172, %162 : vector<16x64xf32>
    %cst_62 = arith.constant 0.254829586 : f32
    %174 = vector.broadcast %cst_62 : f32 to vector<16x64xf32>
    %175 = arith.addf %173, %174 : vector<16x64xf32>
    %176 = arith.mulf %175, %162 : vector<16x64xf32>
    %cst_63 = arith.constant 0.000000e+00 : f32
    %177 = vector.broadcast %cst_63 : f32 to vector<16x64xf32>
    %178 = arith.subf %177, %156 : vector<16x64xf32>
    %179 = arith.mulf %178, %156 : vector<16x64xf32>
    %180 = math.exp %179 : vector<16x64xf32>
    %181 = arith.mulf %176, %180 : vector<16x64xf32>
    %cst_64 = arith.constant 1.000000e+00 : f32
    %182 = vector.broadcast %cst_64 : f32 to vector<16x64xf32>
    %183 = arith.subf %182, %181 : vector<16x64xf32>
    %cst_65 = arith.constant 0.000000e+00 : f32
    %184 = vector.broadcast %cst_65 : f32 to vector<16x64xf32>
    %185 = arith.cmpf oge, %155, %184 : vector<16x64xf32>
    %cst_66 = arith.constant 0.000000e+00 : f32
    %186 = vector.broadcast %cst_66 : f32 to vector<16x64xf32>
    %187 = arith.subf %186, %183 : vector<16x64xf32>
    %188 = arith.select %185, %183, %187 : vector<16x64xi1>, vector<16x64xf32>
    %cst_67 = arith.constant 1.000000e+00 : f32
    %189 = vector.broadcast %cst_67 : f32 to vector<16x64xf32>
    %190 = arith.addf %189, %188 : vector<16x64xf32>
    %191 = arith.mulf %153, %190 : vector<16x64xf32>
    %192 = arith.truncf %191 : vector<16x64xf32> to vector<16x64xbf16>
    %cst_68 = arith.constant dense<0.000000e+00> : vector<16x32xf32>
    %193 = tpu.matmul %192, %3, %cst_68 {dimension_numbers = #tpu.dot_dimension_numbers<[1], [0], [0], [1], [0, 0, 1, 1], [], []>} : vector<16x64xbf16>, vector<64x32xbf16>, vector<16x32xf32> -> vector<16x32xf32>
    %194 = arith.addf %193, %15 : vector<16x32xf32>
    %195 = arith.addf %148, %194 : vector<16x32xf32>
    %cst_69 = arith.constant dense<0.000000e+00> : vector<16xf32>
    %196 = vector.multi_reduction <add>, %195, %cst_69 [1] : vector<16x32xf32> to vector<16xf32>
    %197 = vector.shape_cast %196 : vector<16xf32> to vector<16x1xf32>
    %cst_70 = arith.constant 3.200000e+01 : f32
    %198 = vector.broadcast %cst_70 : f32 to vector<16x1xf32>
    %199 = arith.divf %197, %198 : vector<16x1xf32>
    %200 = vector.broadcast %199 : vector<16x1xf32> to vector<16x32xf32>
    %201 = arith.subf %195, %200 : vector<16x32xf32>
    %202 = arith.mulf %201, %201 : vector<16x32xf32>
    %cst_71 = arith.constant dense<0.000000e+00> : vector<16xf32>
    %203 = vector.multi_reduction <add>, %202, %cst_71 [1] : vector<16x32xf32> to vector<16xf32>
    %204 = vector.shape_cast %203 : vector<16xf32> to vector<16x1xf32>
    %cst_72 = arith.constant 3.200000e+01 : f32
    %205 = vector.broadcast %cst_72 : f32 to vector<16x1xf32>
    %206 = arith.divf %204, %205 : vector<16x1xf32>
    %207 = vector.broadcast %199 : vector<16x1xf32> to vector<16x32xf32>
    %208 = arith.subf %195, %207 : vector<16x32xf32>
    %cst_73 = arith.constant 9.99999996E-13 : f32
    %209 = vector.broadcast %cst_73 : f32 to vector<16x1xf32>
    %210 = arith.addf %206, %209 : vector<16x1xf32>
    %211 = math.sqrt %210 : vector<16x1xf32>
    %212 = vector.broadcast %211 : vector<16x1xf32> to vector<16x32xf32>
    %213 = arith.divf %208, %212 : vector<16x32xf32>
    %214 = arith.mulf %24, %213 : vector<16x32xf32>
    %215 = arith.addf %214, %27 : vector<16x32xf32>
    %216 = arith.truncf %215 : vector<16x32xf32> to vector<16x32xbf16>
    %cst_74 = arith.constant dense<0.000000e+00> : vector<16x96xf32>
    %217 = tpu.matmul %216, %0, %cst_74 {dimension_numbers = #tpu.dot_dimension_numbers<[1], [0], [0], [1], [0, 0, 1, 1], [], []>} : vector<16x32xbf16>, vector<32x96xbf16>, vector<16x96xf32> -> vector<16x96xf32>
    %218 = arith.addf %217, %6 : vector<16x96xf32>
    %219 = vector.shape_cast %218 : vector<16x96xf32> to vector<2x8x96xf32>
    %220 = vector.extract_strided_slice %219 {offsets = [0, 0, 0], sizes = [2, 8, 8], strides = [1, 1, 1]} : vector<2x8x96xf32> to vector<2x8x8xf32>
    %221 = vector.extract_strided_slice %219 {offsets = [0, 0, 8], sizes = [2, 8, 8], strides = [1, 1, 1]} : vector<2x8x96xf32> to vector<2x8x8xf32>
    %222 = vector.extract_strided_slice %219 {offsets = [0, 0, 16], sizes = [2, 8, 8], strides = [1, 1, 1]} : vector<2x8x96xf32> to vector<2x8x8xf32>
    %223 = vector.extract_strided_slice %219 {offsets = [0, 0, 24], sizes = [2, 8, 8], strides = [1, 1, 1]} : vector<2x8x96xf32> to vector<2x8x8xf32>
    %224 = vector.shape_cast %220 : vector<2x8x8xf32> to vector<1x2x8x8xf32>
    %225 = vector.shape_cast %221 : vector<2x8x8xf32> to vector<1x2x8x8xf32>
    %226 = vector.shape_cast %222 : vector<2x8x8xf32> to vector<1x2x8x8xf32>
    %227 = vector.shape_cast %223 : vector<2x8x8xf32> to vector<1x2x8x8xf32>
    %228 = tpu.concatenate %224, %225, %226, %227 in 0 : vector<1x2x8x8xf32>, vector<1x2x8x8xf32>, vector<1x2x8x8xf32>, vector<1x2x8x8xf32> -> vector<4x2x8x8xf32>
    %229 = vector.shape_cast %228 : vector<4x2x8x8xf32> to vector<8x8x8xf32>
    %230 = vector.extract_strided_slice %219 {offsets = [0, 0, 32], sizes = [2, 8, 8], strides = [1, 1, 1]} : vector<2x8x96xf32> to vector<2x8x8xf32>
    %231 = vector.extract_strided_slice %219 {offsets = [0, 0, 40], sizes = [2, 8, 8], strides = [1, 1, 1]} : vector<2x8x96xf32> to vector<2x8x8xf32>
    %232 = vector.extract_strided_slice %219 {offsets = [0, 0, 48], sizes = [2, 8, 8], strides = [1, 1, 1]} : vector<2x8x96xf32> to vector<2x8x8xf32>
    %233 = vector.extract_strided_slice %219 {offsets = [0, 0, 56], sizes = [2, 8, 8], strides = [1, 1, 1]} : vector<2x8x96xf32> to vector<2x8x8xf32>
    %234 = vector.shape_cast %230 : vector<2x8x8xf32> to vector<1x2x8x8xf32>
    %235 = vector.shape_cast %231 : vector<2x8x8xf32> to vector<1x2x8x8xf32>
    %236 = vector.shape_cast %232 : vector<2x8x8xf32> to vector<1x2x8x8xf32>
    %237 = vector.shape_cast %233 : vector<2x8x8xf32> to vector<1x2x8x8xf32>
    %238 = tpu.concatenate %234, %235, %236, %237 in 0 : vector<1x2x8x8xf32>, vector<1x2x8x8xf32>, vector<1x2x8x8xf32>, vector<1x2x8x8xf32> -> vector<4x2x8x8xf32>
    %239 = vector.shape_cast %238 : vector<4x2x8x8xf32> to vector<8x8x8xf32>
    %240 = vector.extract_strided_slice %219 {offsets = [0, 0, 64], sizes = [2, 8, 8], strides = [1, 1, 1]} : vector<2x8x96xf32> to vector<2x8x8xf32>
    %241 = vector.extract_strided_slice %219 {offsets = [0, 0, 72], sizes = [2, 8, 8], strides = [1, 1, 1]} : vector<2x8x96xf32> to vector<2x8x8xf32>
    %242 = vector.extract_strided_slice %219 {offsets = [0, 0, 80], sizes = [2, 8, 8], strides = [1, 1, 1]} : vector<2x8x96xf32> to vector<2x8x8xf32>
    %243 = vector.extract_strided_slice %219 {offsets = [0, 0, 88], sizes = [2, 8, 8], strides = [1, 1, 1]} : vector<2x8x96xf32> to vector<2x8x8xf32>
    %244 = vector.shape_cast %240 : vector<2x8x8xf32> to vector<1x2x8x8xf32>
    %245 = vector.shape_cast %241 : vector<2x8x8xf32> to vector<1x2x8x8xf32>
    %246 = vector.shape_cast %242 : vector<2x8x8xf32> to vector<1x2x8x8xf32>
    %247 = vector.shape_cast %243 : vector<2x8x8xf32> to vector<1x2x8x8xf32>
    %248 = tpu.concatenate %244, %245, %246, %247 in 0 : vector<1x2x8x8xf32>, vector<1x2x8x8xf32>, vector<1x2x8x8xf32>, vector<1x2x8x8xf32> -> vector<4x2x8x8xf32>
    %249 = vector.shape_cast %248 : vector<4x2x8x8xf32> to vector<8x8x8xf32>
    %250 = arith.truncf %229 : vector<8x8x8xf32> to vector<8x8x8xbf16>
    %251 = arith.truncf %239 : vector<8x8x8xf32> to vector<8x8x8xbf16>
    "tpu.trace_start"() <{level = 10 : i32, message = "nqw,nkw->nqk"}> : () -> ()
    %cst_75 = arith.constant dense<0.000000e+00> : vector<8x8x8xf32>
    %252 = tpu.matmul %250, %251, %cst_75 {dimension_numbers = #tpu.dot_dimension_numbers<[2], [2], [1], [1], [0, 0, 0, 1, 1, 1], [0], [0]>} : vector<8x8x8xbf16>, vector<8x8x8xbf16>, vector<8x8x8xf32> -> vector<8x8x8xf32>
    "tpu.trace_stop"() : () -> ()
    %cst_76 = arith.constant 0.353553385 : f32
    %253 = vector.broadcast %cst_76 : f32 to vector<8x8x8xf32>
    %254 = arith.mulf %252, %253 : vector<8x8x8xf32>
    %cst_77 = arith.constant dense<0xFF800000> : vector<8x8xf32>
    %255 = vector.multi_reduction <maximumf>, %254, %cst_77 [2] : vector<8x8x8xf32> to vector<8x8xf32>
    %256 = vector.shape_cast %255 : vector<8x8xf32> to vector<8x8x1xf32>
    %257 = vector.broadcast %256 : vector<8x8x1xf32> to vector<8x8x8xf32>
    %258 = arith.subf %254, %257 : vector<8x8x8xf32>
    %259 = math.exp %258 : vector<8x8x8xf32>
    %cst_78 = arith.constant dense<0.000000e+00> : vector<8x8xf32>
    %260 = vector.multi_reduction <add>, %259, %cst_78 [2] : vector<8x8x8xf32> to vector<8x8xf32>
    %261 = vector.shape_cast %260 : vector<8x8xf32> to vector<8x8x1xf32>
    %262 = vector.broadcast %261 : vector<8x8x1xf32> to vector<8x8x8xf32>
    %263 = arith.divf %259, %262 : vector<8x8x8xf32>
    %264 = arith.truncf %263 : vector<8x8x8xf32> to vector<8x8x8xbf16>
    %265 = arith.truncf %249 : vector<8x8x8xf32> to vector<8x8x8xbf16>
    "tpu.trace_start"() <{level = 10 : i32, message = "nqk,nkw->nqw"}> : () -> ()
    %cst_79 = arith.constant dense<0.000000e+00> : vector<8x8x8xf32>
    %266 = tpu.matmul %264, %265, %cst_79 {dimension_numbers = #tpu.dot_dimension_numbers<[2], [1], [1], [2], [0, 0, 0, 1, 1, 2], [0], [0]>} : vector<8x8x8xbf16>, vector<8x8x8xbf16>, vector<8x8x8xf32> -> vector<8x8x8xf32>
    "tpu.trace_stop"() : () -> ()
    %267 = vector.shape_cast %266 : vector<8x8x8xf32> to vector<4x2x8x8xf32>
    %268 = vector.extract_strided_slice %267 {offsets = [0, 0, 0, 0], sizes = [1, 2, 8, 8], strides = [1, 1, 1, 1]} : vector<4x2x8x8xf32> to vector<1x2x8x8xf32>
    %269 = vector.shape_cast %268 : vector<1x2x8x8xf32> to vector<2x8x8xf32>
    %270 = vector.shape_cast %269 : vector<2x8x8xf32> to vector<16x8xf32>
    %271 = vector.extract_strided_slice %267 {offsets = [1, 0, 0, 0], sizes = [1, 2, 8, 8], strides = [1, 1, 1, 1]} : vector<4x2x8x8xf32> to vector<1x2x8x8xf32>
    %272 = vector.shape_cast %271 : vector<1x2x8x8xf32> to vector<2x8x8xf32>
    %273 = vector.shape_cast %272 : vector<2x8x8xf32> to vector<16x8xf32>
    %274 = vector.extract_strided_slice %267 {offsets = [2, 0, 0, 0], sizes = [1, 2, 8, 8], strides = [1, 1, 1, 1]} : vector<4x2x8x8xf32> to vector<1x2x8x8xf32>
    %275 = vector.shape_cast %274 : vector<1x2x8x8xf32> to vector<2x8x8xf32>
    %276 = vector.shape_cast %275 : vector<2x8x8xf32> to vector<16x8xf32>
    %277 = vector.extract_strided_slice %267 {offsets = [3, 0, 0, 0], sizes = [1, 2, 8, 8], strides = [1, 1, 1, 1]} : vector<4x2x8x8xf32> to vector<1x2x8x8xf32>
    %278 = vector.shape_cast %277 : vector<1x2x8x8xf32> to vector<2x8x8xf32>
    %279 = vector.shape_cast %278 : vector<2x8x8xf32> to vector<16x8xf32>
    %280 = tpu.concatenate %270, %273, %276, %279 in 1 : vector<16x8xf32>, vector<16x8xf32>, vector<16x8xf32>, vector<16x8xf32> -> vector<16x32xf32>
    %281 = arith.truncf %280 : vector<16x32xf32> to vector<16x32xbf16>
    %cst_80 = arith.constant dense<0.000000e+00> : vector<16x32xf32>
    %282 = tpu.matmul %281, %1, %cst_80 {dimension_numbers = #tpu.dot_dimension_numbers<[1], [0], [0], [1], [0, 0, 1, 1], [], []>} : vector<16x32xbf16>, vector<32x32xbf16>, vector<16x32xf32> -> vector<16x32xf32>
    %283 = arith.addf %282, %9 : vector<16x32xf32>
    %284 = arith.addf %280, %283 : vector<16x32xf32>
    %cst_81 = arith.constant dense<0.000000e+00> : vector<16xf32>
    %285 = vector.multi_reduction <add>, %284, %cst_81 [1] : vector<16x32xf32> to vector<16xf32>
    %286 = vector.shape_cast %285 : vector<16xf32> to vector<16x1xf32>
    %cst_82 = arith.constant 3.200000e+01 : f32
    %287 = vector.broadcast %cst_82 : f32 to vector<16x1xf32>
    %288 = arith.divf %286, %287 : vector<16x1xf32>
    %289 = vector.broadcast %288 : vector<16x1xf32> to vector<16x32xf32>
    %290 = arith.subf %284, %289 : vector<16x32xf32>
    %291 = arith.mulf %290, %290 : vector<16x32xf32>
    %cst_83 = arith.constant dense<0.000000e+00> : vector<16xf32>
    %292 = vector.multi_reduction <add>, %291, %cst_83 [1] : vector<16x32xf32> to vector<16xf32>
    %293 = vector.shape_cast %292 : vector<16xf32> to vector<16x1xf32>
    %cst_84 = arith.constant 3.200000e+01 : f32
    %294 = vector.broadcast %cst_84 : f32 to vector<16x1xf32>
    %295 = arith.divf %293, %294 : vector<16x1xf32>
    %296 = vector.broadcast %288 : vector<16x1xf32> to vector<16x32xf32>
    %297 = arith.subf %284, %296 : vector<16x32xf32>
    %cst_85 = arith.constant 9.99999996E-13 : f32
    %298 = vector.broadcast %cst_85 : f32 to vector<16x1xf32>
    %299 = arith.addf %295, %298 : vector<16x1xf32>
    %300 = math.sqrt %299 : vector<16x1xf32>
    %301 = vector.broadcast %300 : vector<16x1xf32> to vector<16x32xf32>
    %302 = arith.divf %297, %301 : vector<16x32xf32>
    %303 = arith.mulf %18, %302 : vector<16x32xf32>
    %304 = arith.addf %303, %21 : vector<16x32xf32>
    %305 = arith.truncf %304 : vector<16x32xf32> to vector<16x32xbf16>
    %cst_86 = arith.constant dense<0.000000e+00> : vector<16x64xf32>
    %306 = tpu.matmul %305, %2, %cst_86 {dimension_numbers = #tpu.dot_dimension_numbers<[1], [0], [0], [1], [0, 0, 1, 1], [], []>} : vector<16x32xbf16>, vector<32x64xbf16>, vector<16x64xf32> -> vector<16x64xf32>
    %307 = arith.addf %306, %12 : vector<16x64xf32>
    %cst_87 = arith.constant 5.000000e-01 : f32
    %308 = vector.broadcast %cst_87 : f32 to vector<16x64xf32>
    %309 = arith.mulf %307, %308 : vector<16x64xf32>
    %cst_88 = arith.constant 1.41421354 : f32
    %310 = vector.broadcast %cst_88 : f32 to vector<16x64xf32>
    %311 = arith.divf %307, %310 : vector<16x64xf32>
    %312 = math.absf %311 : vector<16x64xf32>
    %cst_89 = arith.constant 0.327591091 : f32
    %313 = vector.broadcast %cst_89 : f32 to vector<16x64xf32>
    %314 = arith.mulf %313, %312 : vector<16x64xf32>
    %cst_90 = arith.constant 1.000000e+00 : f32
    %315 = vector.broadcast %cst_90 : f32 to vector<16x64xf32>
    %316 = arith.addf %315, %314 : vector<16x64xf32>
    %cst_91 = arith.constant 1.000000e+00 : f32
    %317 = vector.broadcast %cst_91 : f32 to vector<16x64xf32>
    %318 = arith.divf %317, %316 : vector<16x64xf32>
    %cst_92 = arith.constant 1.06140542 : f32
    %319 = vector.broadcast %cst_92 : f32 to vector<16x64xf32>
    %320 = arith.mulf %319, %318 : vector<16x64xf32>
    %cst_93 = arith.constant -1.45315206 : f32
    %321 = vector.broadcast %cst_93 : f32 to vector<16x64xf32>
    %322 = arith.addf %320, %321 : vector<16x64xf32>
    %323 = arith.mulf %322, %318 : vector<16x64xf32>
    %cst_94 = arith.constant 1.42141378 : f32
    %324 = vector.broadcast %cst_94 : f32 to vector<16x64xf32>
    %325 = arith.addf %323, %324 : vector<16x64xf32>
    %326 = arith.mulf %325, %318 : vector<16x64xf32>
    %cst_95 = arith.constant -0.284496725 : f32
    %327 = vector.broadcast %cst_95 : f32 to vector<16x64xf32>
    %328 = arith.addf %326, %327 : vector<16x64xf32>
    %329 = arith.mulf %328, %318 : vector<16x64xf32>
    %cst_96 = arith.constant 0.254829586 : f32
    %330 = vector.broadcast %cst_96 : f32 to vector<16x64xf32>
    %331 = arith.addf %329, %330 : vector<16x64xf32>
    %332 = arith.mulf %331, %318 : vector<16x64xf32>
    %cst_97 = arith.constant 0.000000e+00 : f32
    %333 = vector.broadcast %cst_97 : f32 to vector<16x64xf32>
    %334 = arith.subf %333, %312 : vector<16x64xf32>
    %335 = arith.mulf %334, %312 : vector<16x64xf32>
    %336 = math.exp %335 : vector<16x64xf32>
    %337 = arith.mulf %332, %336 : vector<16x64xf32>
    %cst_98 = arith.constant 1.000000e+00 : f32
    %338 = vector.broadcast %cst_98 : f32 to vector<16x64xf32>
    %339 = arith.subf %338, %337 : vector<16x64xf32>
    %cst_99 = arith.constant 0.000000e+00 : f32
    %340 = vector.broadcast %cst_99 : f32 to vector<16x64xf32>
    %341 = arith.cmpf oge, %311, %340 : vector<16x64xf32>
    %cst_100 = arith.constant 0.000000e+00 : f32
    %342 = vector.broadcast %cst_100 : f32 to vector<16x64xf32>
    %343 = arith.subf %342, %339 : vector<16x64xf32>
    %344 = arith.select %341, %339, %343 : vector<16x64xi1>, vector<16x64xf32>
    %cst_101 = arith.constant 1.000000e+00 : f32
    %345 = vector.broadcast %cst_101 : f32 to vector<16x64xf32>
    %346 = arith.addf %345, %344 : vector<16x64xf32>
    %347 = arith.mulf %309, %346 : vector<16x64xf32>
    %348 = arith.truncf %347 : vector<16x64xf32> to vector<16x64xbf16>
    %cst_102 = arith.constant dense<0.000000e+00> : vector<16x32xf32>
    %349 = tpu.matmul %348, %3, %cst_102 {dimension_numbers = #tpu.dot_dimension_numbers<[1], [0], [0], [1], [0, 0, 1, 1], [], []>} : vector<16x64xbf16>, vector<64x32xbf16>, vector<16x32xf32> -> vector<16x32xf32>
    %350 = arith.addf %349, %15 : vector<16x32xf32>
    %351 = arith.addf %304, %350 : vector<16x32xf32>
    %cst_103 = arith.constant dense<0.000000e+00> : vector<16xf32>
    %352 = vector.multi_reduction <add>, %351, %cst_103 [1] : vector<16x32xf32> to vector<16xf32>
    %353 = vector.shape_cast %352 : vector<16xf32> to vector<16x1xf32>
    %cst_104 = arith.constant 3.200000e+01 : f32
    %354 = vector.broadcast %cst_104 : f32 to vector<16x1xf32>
    %355 = arith.divf %353, %354 : vector<16x1xf32>
    %356 = vector.broadcast %355 : vector<16x1xf32> to vector<16x32xf32>
    %357 = arith.subf %351, %356 : vector<16x32xf32>
    %358 = arith.mulf %357, %357 : vector<16x32xf32>
    %cst_105 = arith.constant dense<0.000000e+00> : vector<16xf32>
    %359 = vector.multi_reduction <add>, %358, %cst_105 [1] : vector<16x32xf32> to vector<16xf32>
    %360 = vector.shape_cast %359 : vector<16xf32> to vector<16x1xf32>
    %cst_106 = arith.constant 3.200000e+01 : f32
    %361 = vector.broadcast %cst_106 : f32 to vector<16x1xf32>
    %362 = arith.divf %360, %361 : vector<16x1xf32>
    %363 = vector.broadcast %355 : vector<16x1xf32> to vector<16x32xf32>
    %364 = arith.subf %351, %363 : vector<16x32xf32>
    %cst_107 = arith.constant 9.99999996E-13 : f32
    %365 = vector.broadcast %cst_107 : f32 to vector<16x1xf32>
    %366 = arith.addf %362, %365 : vector<16x1xf32>
    %367 = math.sqrt %366 : vector<16x1xf32>
    %368 = vector.broadcast %367 : vector<16x1xf32> to vector<16x32xf32>
    %369 = arith.divf %364, %368 : vector<16x32xf32>
    %370 = arith.mulf %24, %369 : vector<16x32xf32>
    %371 = arith.addf %370, %27 : vector<16x32xf32>
    %372 = arith.truncf %371 : vector<16x32xf32> to vector<16x32xbf16>
    %373 = vector.shape_cast %371 : vector<16x32xf32> to vector<2x8x32xf32>
    %374 = vector.extract_strided_slice %373 {offsets = [0, 0, 0], sizes = [2, 1, 32], strides = [1, 1, 1]} : vector<2x8x32xf32> to vector<2x1x32xf32>
    %375 = vector.shape_cast %374 : vector<2x1x32xf32> to vector<2x32xf32>
    %376 = arith.truncf %375 : vector<2x32xf32> to vector<2x32xbf16>
    %c0_108 = arith.constant 0 : index
    %c0_109 = arith.constant 0 : index
    %377 = vector.load %arg19[%c0_108, %c0_109] : memref<32x32xbf16, #tpu.memory_space<vmem>>, vector<32x32xbf16>
    %cst_110 = arith.constant dense<0.000000e+00> : vector<2x32xf32>
    %378 = tpu.matmul %376, %377, %cst_110 {dimension_numbers = #tpu.dot_dimension_numbers<[1], [0], [0], [1], [0, 0, 1, 1], [], []>} : vector<2x32xbf16>, vector<32x32xbf16>, vector<2x32xf32> -> vector<2x32xf32>
    %c0_111 = arith.constant 0 : index
    %c0_112 = arith.constant 0 : index
    %379 = vector.load %arg20[%c0_111, %c0_112] : memref<1x32xf32, #tpu.memory_space<vmem>>, vector<1x32xf32>
    %380 = vector.broadcast %379 : vector<1x32xf32> to vector<2x32xf32>
    %381 = arith.addf %378, %380 : vector<2x32xf32>
    %382 = math.tanh %381 : vector<2x32xf32>
    %383 = arith.truncf %382 : vector<2x32xf32> to vector<2x32xbf16>
    %c0_113 = arith.constant 0 : index
    %c0_114 = arith.constant 0 : index
    %384 = vector.load %arg21[%c0_113, %c0_114] : memref<32x128xbf16, #tpu.memory_space<vmem>>, vector<32x128xbf16>
    %cst_115 = arith.constant dense<0.000000e+00> : vector<2x128xf32>
    %385 = tpu.matmul %383, %384, %cst_115 {dimension_numbers = #tpu.dot_dimension_numbers<[1], [0], [0], [1], [0, 0, 1, 1], [], []>} : vector<2x32xbf16>, vector<32x128xbf16>, vector<2x128xf32> -> vector<2x128xf32>
    %c0_116 = arith.constant 0 : index
    %c0_117 = arith.constant 0 : index
    %386 = vector.load %arg22[%c0_116, %c0_117] : memref<1x128xf32, #tpu.memory_space<vmem>>, vector<1x128xf32>
    %387 = vector.broadcast %386 : vector<1x128xf32> to vector<2x128xf32>
    %388 = arith.addf %385, %387 : vector<2x128xf32>
    %c0_118 = arith.constant 0 : index
    %c0_119 = arith.constant 0 : index
    %389 = vector.load %arg30[%c0_118, %c0_119] : memref<2x128xf32, #tpu.memory_space<vmem>>, vector<2x128xf32>
    tpu.vector_store %arg30[%c0_118, %c0_119], %388 {strides = array<i32>} : memref<2x128xf32, #tpu.memory_space<vmem>>, vector<2x128xf32>,
    %c0_120 = arith.constant 0 : index
    %c0_121 = arith.constant 0 : index
    %390 = vector.load %arg2[%c0_120, %c0_121] : memref<8x16xbf16, #tpu.memory_space<vmem>>, vector<8x16xbf16>
    %cst_122 = arith.constant dense<0.000000e+00> : vector<8x32xf32>
    %391 = tpu.matmul %390, %372, %cst_122 {dimension_numbers = #tpu.dot_dimension_numbers<[1], [0], [0], [1], [0, 0, 1, 1], [], []>} : vector<8x16xbf16>, vector<16x32xbf16>, vector<8x32xf32> -> vector<8x32xf32>
    %392 = arith.truncf %391 : vector<8x32xf32> to vector<8x32xbf16>
    %c0_123 = arith.constant 0 : index
    %c0_124 = arith.constant 0 : index
    %393 = vector.load %arg23[%c0_123, %c0_124] : memref<32x32xbf16, #tpu.memory_space<vmem>>, vector<32x32xbf16>
    %cst_125 = arith.constant dense<0.000000e+00> : vector<8x32xf32>
    %394 = tpu.matmul %392, %393, %cst_125 {dimension_numbers = #tpu.dot_dimension_numbers<[1], [0], [0], [1], [0, 0, 1, 1], [], []>} : vector<8x32xbf16>, vector<32x32xbf16>, vector<8x32xf32> -> vector<8x32xf32>
    %c0_126 = arith.constant 0 : index
    %c0_127 = arith.constant 0 : index
    %395 = vector.load %arg24[%c0_126, %c0_127] : memref<1x32xf32, #tpu.memory_space<vmem>>, vector<1x32xf32>
    %396 = vector.broadcast %395 : vector<1x32xf32> to vector<8x32xf32>
    %397 = arith.addf %394, %396 : vector<8x32xf32>
    %cst_128 = arith.constant 5.000000e-01 : f32
    %398 = vector.broadcast %cst_128 : f32 to vector<8x32xf32>
    %399 = arith.mulf %397, %398 : vector<8x32xf32>
    %cst_129 = arith.constant 1.41421354 : f32
    %400 = vector.broadcast %cst_129 : f32 to vector<8x32xf32>
    %401 = arith.divf %397, %400 : vector<8x32xf32>
    %402 = math.absf %401 : vector<8x32xf32>
    %cst_130 = arith.constant 0.327591091 : f32
    %403 = vector.broadcast %cst_130 : f32 to vector<8x32xf32>
    %404 = arith.mulf %403, %402 : vector<8x32xf32>
    %cst_131 = arith.constant 1.000000e+00 : f32
    %405 = vector.broadcast %cst_131 : f32 to vector<8x32xf32>
    %406 = arith.addf %405, %404 : vector<8x32xf32>
    %cst_132 = arith.constant 1.000000e+00 : f32
    %407 = vector.broadcast %cst_132 : f32 to vector<8x32xf32>
    %408 = arith.divf %407, %406 : vector<8x32xf32>
    %cst_133 = arith.constant 1.06140542 : f32
    %409 = vector.broadcast %cst_133 : f32 to vector<8x32xf32>
    %410 = arith.mulf %409, %408 : vector<8x32xf32>
    %cst_134 = arith.constant -1.45315206 : f32
    %411 = vector.broadcast %cst_134 : f32 to vector<8x32xf32>
    %412 = arith.addf %410, %411 : vector<8x32xf32>
    %413 = arith.mulf %412, %408 : vector<8x32xf32>
    %cst_135 = arith.constant 1.42141378 : f32
    %414 = vector.broadcast %cst_135 : f32 to vector<8x32xf32>
    %415 = arith.addf %413, %414 : vector<8x32xf32>
    %416 = arith.mulf %415, %408 : vector<8x32xf32>
    %cst_136 = arith.constant -0.284496725 : f32
    %417 = vector.broadcast %cst_136 : f32 to vector<8x32xf32>
    %418 = arith.addf %416, %417 : vector<8x32xf32>
    %419 = arith.mulf %418, %408 : vector<8x32xf32>
    %cst_137 = arith.constant 0.254829586 : f32
    %420 = vector.broadcast %cst_137 : f32 to vector<8x32xf32>
    %421 = arith.addf %419, %420 : vector<8x32xf32>
    %422 = arith.mulf %421, %408 : vector<8x32xf32>
    %cst_138 = arith.constant 0.000000e+00 : f32
    %423 = vector.broadcast %cst_138 : f32 to vector<8x32xf32>
    %424 = arith.subf %423, %402 : vector<8x32xf32>
    %425 = arith.mulf %424, %402 : vector<8x32xf32>
    %426 = math.exp %425 : vector<8x32xf32>
    %427 = arith.mulf %422, %426 : vector<8x32xf32>
    %cst_139 = arith.constant 1.000000e+00 : f32
    %428 = vector.broadcast %cst_139 : f32 to vector<8x32xf32>
    %429 = arith.subf %428, %427 : vector<8x32xf32>
    %cst_140 = arith.constant 0.000000e+00 : f32
    %430 = vector.broadcast %cst_140 : f32 to vector<8x32xf32>
    %431 = arith.cmpf oge, %401, %430 : vector<8x32xf32>
    %cst_141 = arith.constant 0.000000e+00 : f32
    %432 = vector.broadcast %cst_141 : f32 to vector<8x32xf32>
    %433 = arith.subf %432, %429 : vector<8x32xf32>
    %434 = arith.select %431, %429, %433 : vector<8x32xi1>, vector<8x32xf32>
    %cst_142 = arith.constant 1.000000e+00 : f32
    %435 = vector.broadcast %cst_142 : f32 to vector<8x32xf32>
    %436 = arith.addf %435, %434 : vector<8x32xf32>
    %437 = arith.mulf %399, %436 : vector<8x32xf32>
    %c0_143 = arith.constant 0 : index
    %c0_144 = arith.constant 0 : index
    %438 = vector.load %arg25[%c0_143, %c0_144] : memref<1x32xf32, #tpu.memory_space<vmem>>, vector<1x32xf32>
    %c0_145 = arith.constant 0 : index
    %c0_146 = arith.constant 0 : index
    %439 = vector.load %arg26[%c0_145, %c0_146] : memref<1x32xf32, #tpu.memory_space<vmem>>, vector<1x32xf32>
    %cst_147 = arith.constant dense<0.000000e+00> : vector<8xf32>
    %440 = vector.multi_reduction <add>, %437, %cst_147 [1] : vector<8x32xf32> to vector<8xf32>
    %441 = vector.shape_cast %440 : vector<8xf32> to vector<8x1xf32>
    %cst_148 = arith.constant 3.200000e+01 : f32
    %442 = vector.broadcast %cst_148 : f32 to vector<8x1xf32>
    %443 = arith.divf %441, %442 : vector<8x1xf32>
    %444 = vector.broadcast %443 : vector<8x1xf32> to vector<8x32xf32>
    %445 = arith.subf %437, %444 : vector<8x32xf32>
    %446 = arith.mulf %445, %445 : vector<8x32xf32>
    %cst_149 = arith.constant dense<0.000000e+00> : vector<8xf32>
    %447 = vector.multi_reduction <add>, %446, %cst_149 [1] : vector<8x32xf32> to vector<8xf32>
    %448 = vector.shape_cast %447 : vector<8xf32> to vector<8x1xf32>
    %cst_150 = arith.constant 3.200000e+01 : f32
    %449 = vector.broadcast %cst_150 : f32 to vector<8x1xf32>
    %450 = arith.divf %448, %449 : vector<8x1xf32>
    %451 = vector.broadcast %443 : vector<8x1xf32> to vector<8x32xf32>
    %452 = arith.subf %437, %451 : vector<8x32xf32>
    %cst_151 = arith.constant 9.99999996E-13 : f32
    %453 = vector.broadcast %cst_151 : f32 to vector<8x1xf32>
    %454 = arith.addf %450, %453 : vector<8x1xf32>
    %455 = math.sqrt %454 : vector<8x1xf32>
    %456 = vector.broadcast %455 : vector<8x1xf32> to vector<8x32xf32>
    %457 = arith.divf %452, %456 : vector<8x32xf32>
    %458 = vector.broadcast %438 : vector<1x32xf32> to vector<8x32xf32>
    %459 = arith.mulf %458, %457 : vector<8x32xf32>
    %460 = vector.broadcast %439 : vector<1x32xf32> to vector<8x32xf32>
    %461 = arith.addf %459, %460 : vector<8x32xf32>
    %462 = arith.truncf %461 : vector<8x32xf32> to vector<8x32xbf16>
    %c0_152 = arith.constant 0 : index
    %c0_153 = arith.constant 0 : index
    %463 = vector.load %arg27[%c0_152, %c0_153] : memref<32x128xbf16, #tpu.memory_space<vmem>>, vector<32x128xbf16>
    %cst_154 = arith.constant dense<0.000000e+00> : vector<8x128xf32>
    %464 = tpu.matmul %462, %463, %cst_154 {dimension_numbers = #tpu.dot_dimension_numbers<[1], [0], [0], [1], [0, 0, 1, 1], [], []>} : vector<8x32xbf16>, vector<32x128xbf16>, vector<8x128xf32> -> vector<8x128xf32>
    %c0_155 = arith.constant 0 : index
    %c0_156 = arith.constant 0 : index
    %465 = vector.load %arg28[%c0_155, %c0_156] : memref<1x128xf32, #tpu.memory_space<vmem>>, vector<1x128xf32>
    %466 = vector.broadcast %465 : vector<1x128xf32> to vector<8x128xf32>
    %467 = arith.addf %464, %466 : vector<8x128xf32>
    %c0_157 = arith.constant 0 : index
    %c0_158 = arith.constant 0 : index
    %468 = vector.load %arg29[%c0_157, %c0_158] : memref<8x128xf32, #tpu.memory_space<vmem>>, vector<8x128xf32>
    tpu.vector_store %arg29[%c0_157, %c0_158], %467 {strides = array<i32>} : memref<8x128xf32, #tpu.memory_space<vmem>>, vector<8x128xf32>,
    return
  }
}

</mosaic_0001>

<llo_original>
// kernel: eq.8
$region0: #{eq.8}
  %s0 = inlined_call_operand.vmem [shape: s32[2,4], index: 0, kind: input, shape index: {}]
  %s1 = inlined_call_operand.vmem [shape: s32[8], index: 1, kind: output, shape index: {}]
  $region1: #{eq.8} parent=0
    #allocation0 [shape = 'u8[4096]{0}', space=vmem, size = 0x1000, scoped, tag = 'scoped mem for output reshape']
    #allocation1 [shape = 'u8[4096]{0}', space=vmem, size = 0x1000, scoped, tag = 'scoped mem for input reshape']
    %s3 = sshll.u32 1, 2
    %s4 = ssub.s32 %s3, 1
    %v5 = vld [vmem:[%s0] sm:%s4]
    %6 = vst [vmem:[#allocation1] sm:%s4] %v5
    %v7 = vld [vmem:[#allocation1] sm:$0x1]
    %vm8 = vcmask 31744
    %9 = vst.msk [vmem:[#allocation0] sm:$0x1] %vm8, %v7
    %s10 = scalar_lea.vmem [#allocation1], 1
    %v11 = vld [vmem:[%s10] sm:$0x1]
    %12 = vrot.lane.b32.xlu0 %v11, 4
    %v13 = vpop.permute.xlu0 %12
    %vm14 = vcmask 64544
    %15 = vst.msk [vmem:[#allocation0] sm:$0x1] %vm14, %v13
    %s17 = sshll.u32 1, 1
    %s18 = ssub.s32 %s17, 1
    %v20 = vld [vmem:[#allocation0] sm:%s18]
    %s21 = sshll.u32 1, 1
    %s22 = ssub.s32 %s21, 1
    %23 = vst [vmem:[%s1] sm:%s22] %v20

// kernel: bert4pretrain_forward.1
$region0: #{bert4pretrain_forward.1}
  #allocation0 [shape = 'u32[]', space=smem, size = 0x4, offset = 0x4, fixed_abs, tag = 'smem constant byte address 0x4 - core index']
  #allocation1 [shape = 'u32[144,128]{1,0:T(1,128)}', space=vmem, size = 0x12000, scoped, tag = 'internal scratch']
  %s0 = inlined_call_operand.smem [shape: u32[31], index: -1, kind: input, shape index: {}]
  %s1 = sld [smem:[%s0]]
  %s2 = scalar_lea.smem %s0, 1
  %s3 = sld [smem:[%s2]]
  %s4 = scalar_lea.smem %s0, 2
  %s5 = sld [smem:[%s4]]
  %s6 = scalar_lea.smem %s0, 3
  %s7 = sld [smem:[%s6]]
  %s8 = scalar_lea.smem %s0, 4
  %s9 = sld [smem:[%s8]]
  %s10 = scalar_lea.smem %s0, 5
  %s11 = sld [smem:[%s10]]
  %s12 = scalar_lea.smem %s0, 6
  %s13 = sld [smem:[%s12]]
  %s14 = scalar_lea.smem %s0, 7
  %s15 = sld [smem:[%s14]]
  %s16 = scalar_lea.smem %s0, 8
  %s17 = sld [smem:[%s16]]
  %s18 = scalar_lea.smem %s0, 9
  %s19 = sld [smem:[%s18]]
  %s20 = scalar_lea.smem %s0, 10
  %s21 = sld [smem:[%s20]]
  %s22 = scalar_lea.smem %s0, 11
  %s23 = sld [smem:[%s22]]
  %s24 = scalar_lea.smem %s0, 12
  %s25 = sld [smem:[%s24]]
  %s26 = scalar_lea.smem %s0, 13
  %s27 = sld [smem:[%s26]]
  %s28 = scalar_lea.smem %s0, 14
  %s29 = sld [smem:[%s28]]
  %s30 = scalar_lea.smem %s0, 15
  %s31 = sld [smem:[%s30]]
  %s32 = scalar_lea.smem %s0, 16
  %s33 = sld [smem:[%s32]]
  %s34 = scalar_lea.smem %s0, 17
  %s35 = sld [smem:[%s34]]
  %s36 = scalar_lea.smem %s0, 18
  %s37 = sld [smem:[%s36]]
  %s38 = scalar_lea.smem %s0, 19
  %s39 = sld [smem:[%s38]]
  %s40 = scalar_lea.smem %s0, 20
  %s41 = sld [smem:[%s40]]
  %s42 = scalar_lea.smem %s0, 21
  %s43 = sld [smem:[%s42]]
  %s44 = scalar_lea.smem %s0, 22
  %s45 = sld [smem:[%s44]]
  %s46 = scalar_lea.smem %s0, 23
  %s47 = sld [smem:[%s46]]
  %s48 = scalar_lea.smem %s0, 24
  %s49 = sld [smem:[%s48]]
  %s50 = scalar_lea.smem %s0, 25
  %s51 = sld [smem:[%s50]]
  %s52 = scalar_lea.smem %s0, 26
  %s53 = sld [smem:[%s52]]
  %s54 = scalar_lea.smem %s0, 27
  %s55 = sld [smem:[%s54]]
  %s56 = scalar_lea.smem %s0, 28
  %s57 = sld [smem:[%s56]]
  %s58 = scalar_lea.smem %s0, 29
  %s59 = sld [smem:[%s58]]
  %s60 = scalar_lea.smem %s0, 30
  %s61 = sld [smem:[%s60]]
  %62 = xla_tuple %s59, %s61
  %s63 = sld [smem:[#allocation0]]
  $region134: #{bert4pretrain_forward.1} parent=0
    _
  %s65 = ssub.s32 1, %s63
  %s66 = scalar_select 0, %s65, %s63
  $region1: #{bert4pretrain_forward.1} parent=0
    #allocation2 [shape = 'u8[4096]{0}', space=vmem, size = 0x1000, scoped, tag = 'output window, operand 0, single buffered']
    #allocation3 [shape = 's32[1]{0}', space=sflag, size = 0x4, scoped, tag = 'scoped memory for bert4pretrain_forward.1']
    #allocation4 [shape = 'u8[1024]{0}', space=vmem, size = 0x400, scoped, tag = 'output window, operand 1, single buffered']
    #allocation5 [shape = 's32[1]{0}', space=sflag, size = 0x4, scoped, tag = 'scoped memory for bert4pretrain_forward.1']
    %67 = vsyncpa [#allocation3], 0
    %68 = vsyncpa [#allocation5], 0
    // Predicated region
    $region2: #{bert4pretrain_forward.1} parent=1 // pred_check
      _
    $region3: #{bert4pretrain_forward.1} parent=1 // pred_check_branch
      %70 = sbr.rel (0) target = $region5
    $region4: #{bert4pretrain_forward.1} parent=1 // pred_region
      _
    $region5: #{bert4pretrain_forward.1} parent=1 // pred_fallthru
      _
    // Predicated region
    $region6: #{bert4pretrain_forward.1} parent=1 // pred_check
      _
    $region7: #{bert4pretrain_forward.1} parent=1 // pred_check_branch
      %72 = sbr.rel (0) target = $region9
    $region8: #{bert4pretrain_forward.1} parent=1 // pred_region
      _
    $region9: #{bert4pretrain_forward.1} parent=1 // pred_fallthru
      _
    // Predicated region
    $region10: #{bert4pretrain_forward.1} parent=1 // pred_check
      _
    $region11: #{bert4pretrain_forward.1} parent=1 // pred_check_branch
      %74 = sbr.rel (0) target = $region13
    $region12: #{bert4pretrain_forward.1} parent=1 // pred_region
      _
    $region13: #{bert4pretrain_forward.1} parent=1 // pred_fallthru
      _
    // Predicated region
    $region14: #{bert4pretrain_forward.1} parent=1 // pred_check
      _
    $region15: #{bert4pretrain_forward.1} parent=1 // pred_check_branch
      %76 = sbr.rel (0) target = $region17
    $region16: #{bert4pretrain_forward.1} parent=1 // pred_region
      _
    $region17: #{bert4pretrain_forward.1} parent=1 // pred_fallthru
      _
    // Predicated region
    $region18: #{bert4pretrain_forward.1} parent=1 // pred_check
      _
    $region19: #{bert4pretrain_forward.1} parent=1 // pred_check_branch
      %78 = sbr.rel (0) target = $region21
    $region20: #{bert4pretrain_forward.1} parent=1 // pred_region
      _
    $region21: #{bert4pretrain_forward.1} parent=1 // pred_fallthru
      _
    // Predicated region
    $region22: #{bert4pretrain_forward.1} parent=1 // pred_check
      _
    $region23: #{bert4pretrain_forward.1} parent=1 // pred_check_branch
      %80 = sbr.rel (0) target = $region25
    $region24: #{bert4pretrain_forward.1} parent=1 // pred_region
      _
    $region25: #{bert4pretrain_forward.1} parent=1 // pred_fallthru
      _
    // Predicated region
    $region26: #{bert4pretrain_forward.1} parent=1 // pred_check
      _
    $region27: #{bert4pretrain_forward.1} parent=1 // pred_check_branch
      %82 = sbr.rel (0) target = $region29
    $region28: #{bert4pretrain_forward.1} parent=1 // pred_region
      _
    $region29: #{bert4pretrain_forward.1} parent=1 // pred_fallthru
      _
    // Predicated region
    $region30: #{bert4pretrain_forward.1} parent=1 // pred_check
      _
    $region31: #{bert4pretrain_forward.1} parent=1 // pred_check_branch
      %84 = sbr.rel (0) target = $region33
    $region32: #{bert4pretrain_forward.1} parent=1 // pred_region
      _
    $region33: #{bert4pretrain_forward.1} parent=1 // pred_fallthru
      _
    // Predicated region
    $region34: #{bert4pretrain_forward.1} parent=1 // pred_check
      _
    $region35: #{bert4pretrain_forward.1} parent=1 // pred_check_branch
      %86 = sbr.rel (0) target = $region37
    $region36: #{bert4pretrain_forward.1} parent=1 // pred_region
      _
    $region37: #{bert4pretrain_forward.1} parent=1 // pred_fallthru
      _
    // Predicated region
    $region38: #{bert4pretrain_forward.1} parent=1 // pred_check
      _
    $region39: #{bert4pretrain_forward.1} parent=1 // pred_check_branch
      %88 = sbr.rel (0) target = $region41
    $region40: #{bert4pretrain_forward.1} parent=1 // pred_region
      _
    $region41: #{bert4pretrain_forward.1} parent=1 // pred_fallthru
      _
    // Predicated region
    $region42: #{bert4pretrain_forward.1} parent=1 // pred_check
      _
    $region43: #{bert4pretrain_forward.1} parent=1 // pred_check_branch
      %90 = sbr.rel (0) target = $region45
    $region44: #{bert4pretrain_forward.1} parent=1 // pred_region
      _
    $region45: #{bert4pretrain_forward.1} parent=1 // pred_fallthru
      _
    // Predicated region
    $region46: #{bert4pretrain_forward.1} parent=1 // pred_check
      _
    $region47: #{bert4pretrain_forward.1} parent=1 // pred_check_branch
      %92 = sbr.rel (0) target = $region49
    $region48: #{bert4pretrain_forward.1} parent=1 // pred_region
      _
    $region49: #{bert4pretrain_forward.1} parent=1 // pred_fallthru
      _
    // Predicated region
    $region50: #{bert4pretrain_forward.1} parent=1 // pred_check
      _
    $region51: #{bert4pretrain_forward.1} parent=1 // pred_check_branch
      %94 = sbr.rel (0) target = $region53
    $region52: #{bert4pretrain_forward.1} parent=1 // pred_region
      _
    $region53: #{bert4pretrain_forward.1} parent=1 // pred_fallthru
      _
    // Predicated region
    $region54: #{bert4pretrain_forward.1} parent=1 // pred_check
      _
    $region55: #{bert4pretrain_forward.1} parent=1 // pred_check_branch
      %96 = sbr.rel (0) target = $region57
    $region56: #{bert4pretrain_forward.1} parent=1 // pred_region
      _
    $region57: #{bert4pretrain_forward.1} parent=1 // pred_fallthru
      _
    // Predicated region
    $region58: #{bert4pretrain_forward.1} parent=1 // pred_check
      _
    $region59: #{bert4pretrain_forward.1} parent=1 // pred_check_branch
      %98 = sbr.rel (0) target = $region61
    $region60: #{bert4pretrain_forward.1} parent=1 // pred_region
      _
    $region61: #{bert4pretrain_forward.1} parent=1 // pred_fallthru
      _
    // Predicated region
    $region62: #{bert4pretrain_forward.1} parent=1 // pred_check
      _
    $region63: #{bert4pretrain_forward.1} parent=1 // pred_check_branch
      %100 = sbr.rel (0) target = $region65
    $region64: #{bert4pretrain_forward.1} parent=1 // pred_region
      _
    $region65: #{bert4pretrain_forward.1} parent=1 // pred_fallthru
      _
    // Predicated region
    $region66: #{bert4pretrain_forward.1} parent=1 // pred_check
      _
    $region67: #{bert4pretrain_forward.1} parent=1 // pred_check_branch
      %102 = sbr.rel (0) target = $region69
    $region68: #{bert4pretrain_forward.1} parent=1 // pred_region
      _
    $region69: #{bert4pretrain_forward.1} parent=1 // pred_fallthru
      _
    // Predicated region
    $region70: #{bert4pretrain_forward.1} parent=1 // pred_check
      _
    $region71: #{bert4pretrain_forward.1} parent=1 // pred_check_branch
      %104 = sbr.rel (0) target = $region73
    $region72: #{bert4pretrain_forward.1} parent=1 // pred_region
      _
    $region73: #{bert4pretrain_forward.1} parent=1 // pred_fallthru
      _
    // Predicated region
    $region74: #{bert4pretrain_forward.1} parent=1 // pred_check
      _
    $region75: #{bert4pretrain_forward.1} parent=1 // pred_check_branch
      %106 = sbr.rel (0) target = $region77
    $region76: #{bert4pretrain_forward.1} parent=1 // pred_region
      _
    $region77: #{bert4pretrain_forward.1} parent=1 // pred_fallthru
      _
    // Predicated region
    $region78: #{bert4pretrain_forward.1} parent=1 // pred_check
      _
    $region79: #{bert4pretrain_forward.1} parent=1 // pred_check_branch
      %108 = sbr.rel (0) target = $region81
    $region80: #{bert4pretrain_forward.1} parent=1 // pred_region
      _
    $region81: #{bert4pretrain_forward.1} parent=1 // pred_fallthru
      _
    // Predicated region
    $region82: #{bert4pretrain_forward.1} parent=1 // pred_check
      _
    $region83: #{bert4pretrain_forward.1} parent=1 // pred_check_branch
      %110 = sbr.rel (0) target = $region85
    $region84: #{bert4pretrain_forward.1} parent=1 // pred_region
      _
    $region85: #{bert4pretrain_forward.1} parent=1 // pred_fallthru
      _
    // Predicated region
    $region86: #{bert4pretrain_forward.1} parent=1 // pred_check
      _
    $region87: #{bert4pretrain_forward.1} parent=1 // pred_check_branch
      %112 = sbr.rel (0) target = $region89
    $region88: #{bert4pretrain_forward.1} parent=1 // pred_region
      _
    $region89: #{bert4pretrain_forward.1} parent=1 // pred_fallthru
      _
    // Predicated region
    $region90: #{bert4pretrain_forward.1} parent=1 // pred_check
      _
    $region91: #{bert4pretrain_forward.1} parent=1 // pred_check_branch
      %114 = sbr.rel (0) target = $region93
    $region92: #{bert4pretrain_forward.1} parent=1 // pred_region
      _
    $region93: #{bert4pretrain_forward.1} parent=1 // pred_fallthru
      _
    // Predicated region
    $region94: #{bert4pretrain_forward.1} parent=1 // pred_check
      _
    $region95: #{bert4pretrain_forward.1} parent=1 // pred_check_branch
      %116 = sbr.rel (0) target = $region97
    $region96: #{bert4pretrain_forward.1} parent=1 // pred_region
      _
    $region97: #{bert4pretrain_forward.1} parent=1 // pred_fallthru
      _
    // Predicated region
    $region98: #{bert4pretrain_forward.1} parent=1 // pred_check
      _
    $region99: #{bert4pretrain_forward.1} parent=1 // pred_check_branch
      %118 = sbr.rel (0) target = $region101
    $region100: #{bert4pretrain_forward.1} parent=1 // pred_region
      _
    $region101: #{bert4pretrain_forward.1} parent=1 // pred_fallthru
      _
    // Predicated region
    $region102: #{bert4pretrain_forward.1} parent=1 // pred_check
      _
    $region103: #{bert4pretrain_forward.1} parent=1 // pred_check_branch
      %120 = sbr.rel (0) target = $region105
    $region104: #{bert4pretrain_forward.1} parent=1 // pred_region
      _
    $region105: #{bert4pretrain_forward.1} parent=1 // pred_fallthru
      _
    // Predicated region
    $region106: #{bert4pretrain_forward.1} parent=1 // pred_check
      _
    $region107: #{bert4pretrain_forward.1} parent=1 // pred_check_branch
      %122 = sbr.rel (0) target = $region109
    $region108: #{bert4pretrain_forward.1} parent=1 // pred_region
      _
    $region109: #{bert4pretrain_forward.1} parent=1 // pred_fallthru
      _
    // Predicated region
    $region110: #{bert4pretrain_forward.1} parent=1 // pred_check
      _
    $region111: #{bert4pretrain_forward.1} parent=1 // pred_check_branch
      %124 = sbr.rel (0) target = $region113
    $region112: #{bert4pretrain_forward.1} parent=1 // pred_region
      _
    $region113: #{bert4pretrain_forward.1} parent=1 // pred_fallthru
      _
    // Predicated region
    $region114: #{bert4pretrain_forward.1} parent=1 // pred_check
      _
    $region115: #{bert4pretrain_forward.1} parent=1 // pred_check_branch
      %126 = sbr.rel (0) target = $region117
    $region116: #{bert4pretrain_forward.1} parent=1 // pred_region
      _
    $region117: #{bert4pretrain_forward.1} parent=1 // pred_fallthru
      _
    %v128 = vld [vmem:[%s15] sm:$0xf]
    %v129 = vld [vmem:[%s15 + $0x4] sm:$0xf]
    %v130 = vld [vmem:[%s15 + $0x8] sm:$0xf]
    %v131 = vld [vmem:[%s15 + $0xc] sm:$0xf]
    %v132 = vld [vmem:[%s19] sm:$0xf]
    %v133 = vld [vmem:[%s19 + $0x4] sm:$0xf]
    %v134 = vld [vmem:[%s19 + $0x8] sm:$0xf]
    %v135 = vld [vmem:[%s19 + $0xc] sm:$0xf]
    %v136 = vld [vmem:[%s27] sm:$0xf]
    %v137 = vld [vmem:[%s27 + $0x4] sm:$0xf]
    %v138 = vld [vmem:[%s27 + $0x8] sm:$0xf]
    %v139 = vld [vmem:[%s27 + $0xc] sm:$0xf]
    %v140 = vld [vmem:[%s31] sm:$0xf]
    %v141 = vld [vmem:[%s31 + $0x4] sm:$0xf]
    %v142 = vld [vmem:[%s31 + $0x8] sm:$0xf]
    %v143 = vld [vmem:[%s31 + $0xc] sm:$0xf]
    %v144 = vld [vmem:[%s31 + $0x10] sm:$0xf]
    %v145 = vld [vmem:[%s31 + $0x14] sm:$0xf]
    %v146 = vld [vmem:[%s31 + $0x18] sm:$0xf]
    %v147 = vld [vmem:[%s31 + $0x1c] sm:$0xf]
    %v148 = vld [vmem:[%s17] sm:$0x1]
    %v150 = vlaneseq
    %v151 = vshrl.u32 %v150, 7
    %v152 = vsub.s32 0, %v151
    %v153 = vrot.slane %v148, %v152
    %v155 = vld [vmem:[%s21] sm:$0x1]
    %v157 = vlaneseq
    %v158 = vshrl.u32 %v157, 7
    %v159 = vsub.s32 0, %v158
    %v160 = vrot.slane %v155, %v159
    %v162 = vld [vmem:[%s29] sm:$0x1]
    %v164 = vlaneseq
    %v165 = vshrl.u32 %v164, 7
    %v166 = vsub.s32 0, %v165
    %v167 = vrot.slane %v162, %v166
    %v169 = vld [vmem:[%s33] sm:$0x1]
    %v171 = vlaneseq
    %v172 = vshrl.u32 %v171, 7
    %v173 = vsub.s32 0, %v172
    %v174 = vrot.slane %v169, %v173
    %v176 = vld [vmem:[%s23] sm:$0x1]
    %v178 = vlaneseq
    %v179 = vshrl.u32 %v178, 7
    %v180 = vsub.s32 0, %v179
    %v181 = vrot.slane %v176, %v180
    %v183 = vld [vmem:[%s25] sm:$0x1]
    %v185 = vlaneseq
    %v186 = vshrl.u32 %v185, 7
    %v187 = vsub.s32 0, %v186
    %v188 = vrot.slane %v183, %v187
    %v190 = vld [vmem:[%s35] sm:$0x1]
    %v192 = vlaneseq
    %v193 = vshrl.u32 %v192, 7
    %v194 = vsub.s32 0, %v193
    %v195 = vrot.slane %v190, %v194
    %v197 = vld [vmem:[%s37] sm:$0x1]
    %v199 = vlaneseq
    %v200 = vshrl.u32 %v199, 7
    %v201 = vsub.s32 0, %v200
    %v202 = vrot.slane %v197, %v201
    %v204 = vld [vmem:[%s1] sm:$0xf]
    %v205 = vld [vmem:[%s1 + $0x4] sm:$0xf]
    %v206 = vld [vmem:[%s7] sm:$0xf]
    %v207 = vld [vmem:[%s7 + $0x4] sm:$0xf]
    %v208 = vld [vmem:[%s9] sm:$0x1]
    %v210 = vlaneseq
    %v211 = vshrl.u32 %v210, 7
    %v212 = vsub.s32 0, %v211
    %v213 = vrot.slane %v208, %v212
    %v217 = vunpack.c.l.b16 %v204
    %v218 = vunpack.c.l.b16 %v205
    %v219 = vpack.c.b16 %v218, %v217
    %v222 = vunpack.c.l.b16 %v206
    %v223 = vunpack.c.l.b16 %v207
    %v224 = vpack.c.b16 %v223, %v222
    %vm226 = vcmask 130048
    %v228 = vsel %vm226, %v219, 0
    %230 = vmatprep.subr.bf16.mxu0 0
    %231 = vmatpush1.bf16.msra.mxu0 0
    %232 = vmatprep.subr.bf16.mxu0 0
    %233 = vmatpush1.bf16.msra.mxu0 0
    %234 = vmatprep.subr.bf16.mxu0 0
    %235 = vmatpush1.bf16.msra.mxu0 0
    %236 = vmatprep.subr.bf16.mxu0 0
    %237 = vmatpush1.bf16.msra.mxu0 0
    %238 = vmatprep.subr.bf16.mxu0 0
    %239 = vmatpush1.bf16.msra.mxu0 0
    %240 = vmatprep.subr.bf16.mxu0 0
    %241 = vmatpush1.bf16.msra.mxu0 0
    %242 = vmatprep.subr.bf16.mxu0 0
    %243 = vmatpush1.bf16.msra.mxu0 0
    %244 = vmatprep.subr.bf16.mxu0 0
    %245 = vmatpush1.bf16.msra.mxu0 %v224
    %246 = vmatprep.subr.bf16.mxu0 0
    %247 = vmatpush2.bf16.msra.mxu0 0
    %248 = vmatprep.subr.bf16.mxu0 0
    %249 = vmatpush2.bf16.msra.mxu0 0
    %250 = vmatprep.subr.bf16.mxu0 0
    %251 = vmatpush2.bf16.msra.mxu0 0
    %252 = vmatprep.subr.bf16.mxu0 0
    %253 = vmatpush2.bf16.msra.mxu0 0
    %254 = vmatprep.subr.bf16.mxu0 0
    %255 = vmatpush2.bf16.msra.mxu0 0
    %256 = vmatprep.subr.bf16.mxu0 0
    %257 = vmatpush2.bf16.msra.mxu0 0
    %258 = vmatprep.subr.bf16.mxu0 0
    %259 = vmatpush2.bf16.msra.mxu0 0
    %260 = vmatprep.subr.bf16.mxu0 0
    %261 = vmatpush2.bf16.msra.mxu0 0
    %262 = vmatprep.mubr.bf16.mxu0 0
    %263 = vmatmul.mubr.bf16.gmra.mxu0 %v228
    %v264 = vpop.f32.mrf.mxu0
    %v265 = vadd.f32 %v213, %v264
    %v266 = vpop.f32.mrf.mxu0
    %v267 = vpop.f32.mrf.mxu0
    %v268 = vadd.f32 %v213, %v267
    %v269 = vpop.f32.mrf.mxu0
    %270 = vdwg.mxu0
    %v271 = vld [vmem:[%s3] sm:$0xff]
    %v272 = vld [vmem:[%s3 + $0x8] sm:$0xff]
    %v273 = vadd.f32 %v265, %v271
    %v274 = vadd.f32 %v268, %v272
    %v275 = vld [vmem:[%s11] sm:$0x1]
    %v276 = vld [vmem:[%s13] sm:$0x1]
    %vm277 = vcmask 261120
    %v278 = vsel %vm277, %v273, 0.0
    %279 = vadd.xlane.f32.xlu0 %v278
    %v280 = vpop.xlane.xlu0 %279
    %v281 = vsel %vm277, %v274, 0.0
    %282 = vadd.xlane.f32.xlu0 %v281
    %v283 = vpop.xlane.xlu0 %282
    %v284 = vrcp.pop 32.0
    %v285 = vmul.f32 %v280, %v284
    %v286 = vmul.f32 %v283, %v284
    %v287 = vsub.f32 %v273, %v285
    %v288 = vsub.f32 %v274, %v286
    %v289 = vmul.f32 %v287, %v287
    %v290 = vmul.f32 %v288, %v288
    %v291 = vsel %vm277, %v289, 0.0
    %292 = vadd.xlane.f32.xlu0 %v291
    %v293 = vpop.xlane.xlu0 %292
    %v294 = vsel %vm277, %v290, 0.0
    %295 = vadd.xlane.f32.xlu0 %v294
    %v296 = vpop.xlane.xlu0 %295
    %v297 = vmul.f32 %v293, %v284
    %v298 = vmul.f32 %v296, %v284
    %v299 = vadd.f32 %v297, 1e-12
    %v300 = vadd.f32 %v298, 1e-12
    %v301 = vrsqrt.pop %v299
    %v302 = vmul.f32 %v299, %v301
    %vm303 = vcmp.eq.f32.partialorder %v299, inf
    %v304 = vsel %vm303, %v299, %v302
    %vm305 = vcmp.eq.f32.partialorder %v299, 0.0
    %v306 = vand.u32 %v299, 2147483648
    %v307 = vsel %vm305, %v306, %v304
    %v308 = vrsqrt.pop %v300
    %v309 = vmul.f32 %v300, %v308
    %vm310 = vcmp.eq.f32.partialorder %v300, inf
    %v311 = vsel %vm310, %v300, %v309
    %vm312 = vcmp.eq.f32.partialorder %v300, 0.0
    %v313 = vand.u32 %v300, 2147483648
    %v314 = vsel %vm312, %v313, %v311
    %v315 = vrcp.pop %v307
    %v316 = vmul.f32 %v287, %v315
    %v317 = vrcp.pop %v314
    %v318 = vmul.f32 %v288, %v317
    %v320 = vlaneseq
    %v321 = vshrl.u32 %v320, 7
    %v322 = vsub.s32 0, %v321
    %v323 = vrot.slane %v275, %v322
    %v325 = vmul.f32 %v323, %v316
    %v326 = vmul.f32 %v323, %v318
    %v328 = vlaneseq
    %v329 = vshrl.u32 %v328, 7
    %v330 = vsub.s32 0, %v329
    %v331 = vrot.slane %v276, %v330
    %v333 = vadd.f32 %v325, %v331
    %v334 = vadd.f32 %v326, %v331
    %v335 = vpack.c.bf16 %v334, %v333
    %v340 = vunpack.c.l.b16 %v128
    %v341 = vunpack.c.l.b16 %v129
    %v342 = vunpack.c.l.b16 %v130
    %v343 = vunpack.c.l.b16 %v131
    %v344 = vpack.c.b16 %v341, %v340
    %v345 = vpack.c.b16 %v343, %v342
    %v349 = vsel %vm277, %v335, 0
    %351 = vmatprep.subr.bf16.mxu0 0
    %352 = vmatpush1.bf16.msra.mxu0 0
    %353 = vmatprep.subr.bf16.mxu0 0
    %354 = vmatpush1.bf16.msra.mxu0 0
    %355 = vmatprep.subr.bf16.mxu0 0
    %356 = vmatpush1.bf16.msra.mxu0 0
    %357 = vmatprep.subr.bf16.mxu0 0
    %358 = vmatpush1.bf16.msra.mxu0 0
    %359 = vmatprep.subr.bf16.mxu0 0
    %360 = vmatpush1.bf16.msra.mxu0 0
    %361 = vmatprep.subr.bf16.mxu0 0
    %362 = vmatpush1.bf16.msra.mxu0 0
    %363 = vmatprep.subr.bf16.mxu0 0
    %364 = vmatpush1.bf16.msra.mxu0 %v345
    %365 = vmatprep.subr.bf16.mxu0 0
    %366 = vmatpush1.bf16.msra.mxu0 %v344
    %367 = vmatprep.subr.bf16.mxu0 0
    %368 = vmatpush2.bf16.msra.mxu0 0
    %369 = vmatprep.subr.bf16.mxu0 0
    %370 = vmatpush2.bf16.msra.mxu0 0
    %371 = vmatprep.subr.bf16.mxu0 0
    %372 = vmatpush2.bf16.msra.mxu0 0
    %373 = vmatprep.subr.bf16.mxu0 0
    %374 = vmatpush2.bf16.msra.mxu0 0
    %375 = vmatprep.subr.bf16.mxu0 0
    %376 = vmatpush2.bf16.msra.mxu0 0
    %377 = vmatprep.subr.bf16.mxu0 0
    %378 = vmatpush2.bf16.msra.mxu0 0
    %379 = vmatprep.subr.bf16.mxu0 0
    %380 = vmatpush2.bf16.msra.mxu0 0
    %381 = vmatprep.subr.bf16.mxu0 0
    %382 = vmatpush2.bf16.msra.mxu0 0
    %383 = vmatprep.mubr.bf16.mxu0 0
    %384 = vmatmul.mubr.bf16.gmra.mxu0 %v349
    %v385 = vpop.f32.mrf.mxu0
    %v386 = vadd.f32 %v153, %v385
    %v387 = vpop.f32.mrf.mxu0
    %v388 = vpop.f32.mrf.mxu0
    %v389 = vadd.f32 %v153, %v388
    %v390 = vpop.f32.mrf.mxu0
    %391 = vdwg.mxu0
    %394 = vrot.lane.b32.xlu0 %v386, 120
    %v395 = vpop.permute.xlu0 %394
    %396 = vrot.lane.b32.xlu0 %v389, 120
    %v397 = vpop.permute.xlu0 %396
    %400 = vrot.lane.b32.xlu0 %v386, 112
    %v401 = vpop.permute.xlu0 %400
    %402 = vrot.lane.b32.xlu0 %v389, 112
    %v403 = vpop.permute.xlu0 %402
    %406 = vrot.lane.b32.xlu0 %v386, 104
    %v407 = vpop.permute.xlu0 %406
    %408 = vrot.lane.b32.xlu0 %v389, 104
    %v409 = vpop.permute.xlu0 %408
    %v412 = vpack.c.bf16 %v386, %v386
    %v413 = vpack.c.bf16 %v389, %v389
    %v414 = vpack.c.bf16 %v395, %v395
    %v415 = vpack.c.bf16 %v397, %v397
    %v416 = vpack.c.bf16 %v401, %v401
    %v417 = vpack.c.bf16 %v403, %v403
    %v418 = vpack.c.bf16 %v407, %v407
    %v419 = vpack.c.bf16 %v409, %v409
    %421 = vrot.lane.b32.xlu0 %v412, 96
    %v422 = vpop.permute.xlu0 %421
    %vm423 = vcmask 64512
    %v425 = vsel %vm423, %v412, 0
    %v428 = vsel %vm423, %v422, 0
    %430 = vmatprep.subr.bf16.mxu0 0
    %431 = vmatpush1.bf16.xpose.msra.mxu0 0
    %432 = vmatprep.subr.bf16.mxu0 0
    %433 = vmatpush1.bf16.xpose.msra.mxu0 0
    %434 = vmatprep.subr.bf16.mxu0 0
    %435 = vmatpush1.bf16.xpose.msra.mxu0 0
    %436 = vmatprep.subr.bf16.mxu0 0
    %437 = vmatpush1.bf16.xpose.msra.mxu0 0
    %438 = vmatprep.subr.bf16.mxu0 0
    %439 = vmatpush1.bf16.xpose.msra.mxu0 0
    %440 = vmatprep.subr.bf16.mxu0 0
    %441 = vmatpush1.bf16.xpose.msra.mxu0 0
    %442 = vmatprep.subr.bf16.mxu0 0
    %443 = vmatpush1.bf16.xpose.msra.mxu0 0
    %444 = vmatprep.subr.bf16.mxu0 0
    %445 = vmatpush1.bf16.xpose.msra.mxu0 %v428
    %446 = vmatprep.subr.bf16.mxu0 0
    %447 = vmatpush2.bf16.xpose.msra.mxu0 0
    %448 = vmatprep.subr.bf16.mxu0 0
    %449 = vmatpush2.bf16.xpose.msra.mxu0 0
    %450 = vmatprep.subr.bf16.mxu0 0
    %451 = vmatpush2.bf16.xpose.msra.mxu0 0
    %452 = vmatprep.subr.bf16.mxu0 0
    %453 = vmatpush2.bf16.xpose.msra.mxu0 0
    %454 = vmatprep.subr.bf16.mxu0 0
    %455 = vmatpush2.bf16.xpose.msra.mxu0 0
    %456 = vmatprep.subr.bf16.mxu0 0
    %457 = vmatpush2.bf16.xpose.msra.mxu0 0
    %458 = vmatprep.subr.bf16.mxu0 0
    %459 = vmatpush2.bf16.xpose.msra.mxu0 0
    %460 = vmatprep.subr.bf16.mxu0 0
    %461 = vmatpush2.bf16.xpose.msra.mxu0 0
    %462 = vmatprep.mubr.bf16.mxu0 0
    %463 = vmatmul.mubr.bf16.gmra.mxu0 %v425
    %v464 = vpop.f32.mrf.mxu0
    %v465 = vadd.f32 0.0, %v464
    %v466 = vpop.f32.mrf.mxu0
    %v467 = vpop.f32.mrf.mxu0
    %v468 = vpop.f32.mrf.mxu0
    %469 = vdwg.mxu0
    %471 = vrot.lane.b32.xlu0 %v413, 96
    %v472 = vpop.permute.xlu0 %471
    %v474 = vsel %vm423, %v413, 0
    %v477 = vsel %vm423, %v472, 0
    %479 = vmatprep.subr.bf16.mxu0 0
    %480 = vmatpush1.bf16.xpose.msra.mxu0 0
    %481 = vmatprep.subr.bf16.mxu0 0
    %482 = vmatpush1.bf16.xpose.msra.mxu0 0
    %483 = vmatprep.subr.bf16.mxu0 0
    %484 = vmatpush1.bf16.xpose.msra.mxu0 0
    %485 = vmatprep.subr.bf16.mxu0 0
    %486 = vmatpush1.bf16.xpose.msra.mxu0 0
    %487 = vmatprep.subr.bf16.mxu0 0
    %488 = vmatpush1.bf16.xpose.msra.mxu0 0
    %489 = vmatprep.subr.bf16.mxu0 0
    %490 = vmatpush1.bf16.xpose.msra.mxu0 0
    %491 = vmatprep.subr.bf16.mxu0 0
    %492 = vmatpush1.bf16.xpose.msra.mxu0 0
    %493 = vmatprep.subr.bf16.mxu0 0
    %494 = vmatpush1.bf16.xpose.msra.mxu0 %v477
    %495 = vmatprep.subr.bf16.mxu0 0
    %496 = vmatpush2.bf16.xpose.msra.mxu0 0
    %497 = vmatprep.subr.bf16.mxu0 0
    %498 = vmatpush2.bf16.xpose.msra.mxu0 0
    %499 = vmatprep.subr.bf16.mxu0 0
    %500 = vmatpush2.bf16.xpose.msra.mxu0 0
    %501 = vmatprep.subr.bf16.mxu0 0
    %502 = vmatpush2.bf16.xpose.msra.mxu0 0
    %503 = vmatprep.subr.bf16.mxu0 0
    %504 = vmatpush2.bf16.xpose.msra.mxu0 0
    %505 = vmatprep.subr.bf16.mxu0 0
    %506 = vmatpush2.bf16.xpose.msra.mxu0 0
    %507 = vmatprep.subr.bf16.mxu0 0
    %508 = vmatpush2.bf16.xpose.msra.mxu0 0
    %509 = vmatprep.subr.bf16.mxu0 0
    %510 = vmatpush2.bf16.xpose.msra.mxu0 0
    %511 = vmatprep.mubr.bf16.mxu0 0
    %512 = vmatmul.mubr.bf16.gmra.mxu0 %v474
    %v513 = vpop.f32.mrf.mxu0
    %v514 = vadd.f32 0.0, %v513
    %v515 = vpop.f32.mrf.mxu0
    %v516 = vpop.f32.mrf.mxu0
    %v517 = vpop.f32.mrf.mxu0
    %518 = vdwg.mxu0
    %520 = vrot.lane.b32.xlu0 %v414, 96
    %v521 = vpop.permute.xlu0 %520
    %v523 = vsel %vm423, %v414, 0
    %v526 = vsel %vm423, %v521, 0
    %528 = vmatprep.subr.bf16.mxu0 0
    %529 = vmatpush1.bf16.xpose.msra.mxu0 0
    %530 = vmatprep.subr.bf16.mxu0 0
    %531 = vmatpush1.bf16.xpose.msra.mxu0 0
    %532 = vmatprep.subr.bf16.mxu0 0
    %533 = vmatpush1.bf16.xpose.msra.mxu0 0
    %534 = vmatprep.subr.bf16.mxu0 0
    %535 = vmatpush1.bf16.xpose.msra.mxu0 0
    %536 = vmatprep.subr.bf16.mxu0 0
    %537 = vmatpush1.bf16.xpose.msra.mxu0 0
    %538 = vmatprep.subr.bf16.mxu0 0
    %539 = vmatpush1.bf16.xpose.msra.mxu0 0
    %540 = vmatprep.subr.bf16.mxu0 0
    %541 = vmatpush1.bf16.xpose.msra.mxu0 0
    %542 = vmatprep.subr.bf16.mxu0 0
    %543 = vmatpush1.bf16.xpose.msra.mxu0 %v526
    %544 = vmatprep.subr.bf16.mxu0 0
    %545 = vmatpush2.bf16.xpose.msra.mxu0 0
    %546 = vmatprep.subr.bf16.mxu0 0
    %547 = vmatpush2.bf16.xpose.msra.mxu0 0
    %548 = vmatprep.subr.bf16.mxu0 0
    %549 = vmatpush2.bf16.xpose.msra.mxu0 0
    %550 = vmatprep.subr.bf16.mxu0 0
    %551 = vmatpush2.bf16.xpose.msra.mxu0 0
    %552 = vmatprep.subr.bf16.mxu0 0
    %553 = vmatpush2.bf16.xpose.msra.mxu0 0
    %554 = vmatprep.subr.bf16.mxu0 0
    %555 = vmatpush2.bf16.xpose.msra.mxu0 0
    %556 = vmatprep.subr.bf16.mxu0 0
    %557 = vmatpush2.bf16.xpose.msra.mxu0 0
    %558 = vmatprep.subr.bf16.mxu0 0
    %559 = vmatpush2.bf16.xpose.msra.mxu0 0
    %560 = vmatprep.mubr.bf16.mxu0 0
    %561 = vmatmul.mubr.bf16.gmra.mxu0 %v523
    %v562 = vpop.f32.mrf.mxu0
    %v563 = vadd.f32 0.0, %v562
    %v564 = vpop.f32.mrf.mxu0
    %v565 = vpop.f32.mrf.mxu0
    %v566 = vpop.f32.mrf.mxu0
    %567 = vdwg.mxu0
    %569 = vrot.lane.b32.xlu0 %v415, 96
    %v570 = vpop.permute.xlu0 %569
    %v572 = vsel %vm423, %v415, 0
    %v575 = vsel %vm423, %v570, 0
    %577 = vmatprep.subr.bf16.mxu0 0
    %578 = vmatpush1.bf16.xpose.msra.mxu0 0
    %579 = vmatprep.subr.bf16.mxu0 0
    %580 = vmatpush1.bf16.xpose.msra.mxu0 0
    %581 = vmatprep.subr.bf16.mxu0 0
    %582 = vmatpush1.bf16.xpose.msra.mxu0 0
    %583 = vmatprep.subr.bf16.mxu0 0
    %584 = vmatpush1.bf16.xpose.msra.mxu0 0
    %585 = vmatprep.subr.bf16.mxu0 0
    %586 = vmatpush1.bf16.xpose.msra.mxu0 0
    %587 = vmatprep.subr.bf16.mxu0 0
    %588 = vmatpush1.bf16.xpose.msra.mxu0 0
    %589 = vmatprep.subr.bf16.mxu0 0
    %590 = vmatpush1.bf16.xpose.msra.mxu0 0
    %591 = vmatprep.subr.bf16.mxu0 0
    %592 = vmatpush1.bf16.xpose.msra.mxu0 %v575
    %593 = vmatprep.subr.bf16.mxu0 0
    %594 = vmatpush2.bf16.xpose.msra.mxu0 0
    %595 = vmatprep.subr.bf16.mxu0 0
    %596 = vmatpush2.bf16.xpose.msra.mxu0 0
    %597 = vmatprep.subr.bf16.mxu0 0
    %598 = vmatpush2.bf16.xpose.msra.mxu0 0
    %599 = vmatprep.subr.bf16.mxu0 0
    %600 = vmatpush2.bf16.xpose.msra.mxu0 0
    %601 = vmatprep.subr.bf16.mxu0 0
    %602 = vmatpush2.bf16.xpose.msra.mxu0 0
    %603 = vmatprep.subr.bf16.mxu0 0
    %604 = vmatpush2.bf16.xpose.msra.mxu0 0
    %605 = vmatprep.subr.bf16.mxu0 0
    %606 = vmatpush2.bf16.xpose.msra.mxu0 0
    %607 = vmatprep.subr.bf16.mxu0 0
    %608 = vmatpush2.bf16.xpose.msra.mxu0 0
    %609 = vmatprep.mubr.bf16.mxu0 0
    %610 = vmatmul.mubr.bf16.gmra.mxu0 %v572
    %v611 = vpop.f32.mrf.mxu0
    %v612 = vadd.f32 0.0, %v611
    %v613 = vpop.f32.mrf.mxu0
    %v614 = vpop.f32.mrf.mxu0
    %v615 = vpop.f32.mrf.mxu0
    %616 = vdwg.mxu0
    %618 = vrot.lane.b32.xlu0 %v416, 96
    %v619 = vpop.permute.xlu0 %618
    %v621 = vsel %vm423, %v416, 0
    %v624 = vsel %vm423, %v619, 0
    %626 = vmatprep.subr.bf16.mxu0 0
    %627 = vmatpush1.bf16.xpose.msra.mxu0 0
    %628 = vmatprep.subr.bf16.mxu0 0
    %629 = vmatpush1.bf16.xpose.msra.mxu0 0
    %630 = vmatprep.subr.bf16.mxu0 0
    %631 = vmatpush1.bf16.xpose.msra.mxu0 0
    %632 = vmatprep.subr.bf16.mxu0 0
    %633 = vmatpush1.bf16.xpose.msra.mxu0 0
    %634 = vmatprep.subr.bf16.mxu0 0
    %635 = vmatpush1.bf16.xpose.msra.mxu0 0
    %636 = vmatprep.subr.bf16.mxu0 0
    %637 = vmatpush1.bf16.xpose.msra.mxu0 0
    %638 = vmatprep.subr.bf16.mxu0 0
    %639 = vmatpush1.bf16.xpose.msra.mxu0 0
    %640 = vmatprep.subr.bf16.mxu0 0
    %641 = vmatpush1.bf16.xpose.msra.mxu0 %v624
    %642 = vmatprep.subr.bf16.mxu0 0
    %643 = vmatpush2.bf16.xpose.msra.mxu0 0
    %644 = vmatprep.subr.bf16.mxu0 0
    %645 = vmatpush2.bf16.xpose.msra.mxu0 0
    %646 = vmatprep.subr.bf16.mxu0 0
    %647 = vmatpush2.bf16.xpose.msra.mxu0 0
    %648 = vmatprep.subr.bf16.mxu0 0
    %649 = vmatpush2.bf16.xpose.msra.mxu0 0
    %650 = vmatprep.subr.bf16.mxu0 0
    %651 = vmatpush2.bf16.xpose.msra.mxu0 0
    %652 = vmatprep.subr.bf16.mxu0 0
    %653 = vmatpush2.bf16.xpose.msra.mxu0 0
    %654 = vmatprep.subr.bf16.mxu0 0
    %655 = vmatpush2.bf16.xpose.msra.mxu0 0
    %656 = vmatprep.subr.bf16.mxu0 0
    %657 = vmatpush2.bf16.xpose.msra.mxu0 0
    %658 = vmatprep.mubr.bf16.mxu0 0
    %659 = vmatmul.mubr.bf16.gmra.mxu0 %v621
    %v660 = vpop.f32.mrf.mxu0
    %v661 = vadd.f32 0.0, %v660
    %v662 = vpop.f32.mrf.mxu0
    %v663 = vpop.f32.mrf.mxu0
    %v664 = vpop.f32.mrf.mxu0
    %665 = vdwg.mxu0
    %667 = vrot.lane.b32.xlu0 %v417, 96
    %v668 = vpop.permute.xlu0 %667
    %v670 = vsel %vm423, %v417, 0
    %v673 = vsel %vm423, %v668, 0
    %675 = vmatprep.subr.bf16.mxu0 0
    %676 = vmatpush1.bf16.xpose.msra.mxu0 0
    %677 = vmatprep.subr.bf16.mxu0 0
    %678 = vmatpush1.bf16.xpose.msra.mxu0 0
    %679 = vmatprep.subr.bf16.mxu0 0
    %680 = vmatpush1.bf16.xpose.msra.mxu0 0
    %681 = vmatprep.subr.bf16.mxu0 0
    %682 = vmatpush1.bf16.xpose.msra.mxu0 0
    %683 = vmatprep.subr.bf16.mxu0 0
    %684 = vmatpush1.bf16.xpose.msra.mxu0 0
    %685 = vmatprep.subr.bf16.mxu0 0
    %686 = vmatpush1.bf16.xpose.msra.mxu0 0
    %687 = vmatprep.subr.bf16.mxu0 0
    %688 = vmatpush1.bf16.xpose.msra.mxu0 0
    %689 = vmatprep.subr.bf16.mxu0 0
    %690 = vmatpush1.bf16.xpose.msra.mxu0 %v673
    %691 = vmatprep.subr.bf16.mxu0 0
    %692 = vmatpush2.bf16.xpose.msra.mxu0 0
    %693 = vmatprep.subr.bf16.mxu0 0
    %694 = vmatpush2.bf16.xpose.msra.mxu0 0
    %695 = vmatprep.subr.bf16.mxu0 0
    %696 = vmatpush2.bf16.xpose.msra.mxu0 0
    %697 = vmatprep.subr.bf16.mxu0 0
    %698 = vmatpush2.bf16.xpose.msra.mxu0 0
    %699 = vmatprep.subr.bf16.mxu0 0
    %700 = vmatpush2.bf16.xpose.msra.mxu0 0
    %701 = vmatprep.subr.bf16.mxu0 0
    %702 = vmatpush2.bf16.xpose.msra.mxu0 0
    %703 = vmatprep.subr.bf16.mxu0 0
    %704 = vmatpush2.bf16.xpose.msra.mxu0 0
    %705 = vmatprep.subr.bf16.mxu0 0
    %706 = vmatpush2.bf16.xpose.msra.mxu0 0
    %707 = vmatprep.mubr.bf16.mxu0 0
    %708 = vmatmul.mubr.bf16.gmra.mxu0 %v670
    %v709 = vpop.f32.mrf.mxu0
    %v710 = vadd.f32 0.0, %v709
    %v711 = vpop.f32.mrf.mxu0
    %v712 = vpop.f32.mrf.mxu0
    %v713 = vpop.f32.mrf.mxu0
    %714 = vdwg.mxu0
    %716 = vrot.lane.b32.xlu0 %v418, 96
    %v717 = vpop.permute.xlu0 %716
    %v719 = vsel %vm423, %v418, 0
    %v722 = vsel %vm423, %v717, 0
    %724 = vmatprep.subr.bf16.mxu0 0
    %725 = vmatpush1.bf16.xpose.msra.mxu0 0
    %726 = vmatprep.subr.bf16.mxu0 0
    %727 = vmatpush1.bf16.xpose.msra.mxu0 0
    %728 = vmatprep.subr.bf16.mxu0 0
    %729 = vmatpush1.bf16.xpose.msra.mxu0 0
    %730 = vmatprep.subr.bf16.mxu0 0
    %731 = vmatpush1.bf16.xpose.msra.mxu0 0
    %732 = vmatprep.subr.bf16.mxu0 0
    %733 = vmatpush1.bf16.xpose.msra.mxu0 0
    %734 = vmatprep.subr.bf16.mxu0 0
    %735 = vmatpush1.bf16.xpose.msra.mxu0 0
    %736 = vmatprep.subr.bf16.mxu0 0
    %737 = vmatpush1.bf16.xpose.msra.mxu0 0
    %738 = vmatprep.subr.bf16.mxu0 0
    %739 = vmatpush1.bf16.xpose.msra.mxu0 %v722
    %740 = vmatprep.subr.bf16.mxu0 0
    %741 = vmatpush2.bf16.xpose.msra.mxu0 0
    %742 = vmatprep.subr.bf16.mxu0 0
    %743 = vmatpush2.bf16.xpose.msra.mxu0 0
    %744 = vmatprep.subr.bf16.mxu0 0
    %745 = vmatpush2.bf16.xpose.msra.mxu0 0
    %746 = vmatprep.subr.bf16.mxu0 0
    %747 = vmatpush2.bf16.xpose.msra.mxu0 0
    %748 = vmatprep.subr.bf16.mxu0 0
    %749 = vmatpush2.bf16.xpose.msra.mxu0 0
    %750 = vmatprep.subr.bf16.mxu0 0
    %751 = vmatpush2.bf16.xpose.msra.mxu0 0
    %752 = vmatprep.subr.bf16.mxu0 0
    %753 = vmatpush2.bf16.xpose.msra.mxu0 0
    %754 = vmatprep.subr.bf16.mxu0 0
    %755 = vmatpush2.bf16.xpose.msra.mxu0 0
    %756 = vmatprep.mubr.bf16.mxu0 0
    %757 = vmatmul.mubr.bf16.gmra.mxu0 %v719
    %v758 = vpop.f32.mrf.mxu0
    %v759 = vadd.f32 0.0, %v758
    %v760 = vpop.f32.mrf.mxu0
    %v761 = vpop.f32.mrf.mxu0
    %v762 = vpop.f32.mrf.mxu0
    %763 = vdwg.mxu0
    %765 = vrot.lane.b32.xlu0 %v419, 96
    %v766 = vpop.permute.xlu0 %765
    %v768 = vsel %vm423, %v419, 0
    %v771 = vsel %vm423, %v766, 0
    %773 = vmatprep.subr.bf16.mxu0 0
    %774 = vmatpush1.bf16.xpose.msra.mxu0 0
    %775 = vmatprep.subr.bf16.mxu0 0
    %776 = vmatpush1.bf16.xpose.msra.mxu0 0
    %777 = vmatprep.subr.bf16.mxu0 0
    %778 = vmatpush1.bf16.xpose.msra.mxu0 0
    %779 = vmatprep.subr.bf16.mxu0 0
    %780 = vmatpush1.bf16.xpose.msra.mxu0 0
    %781 = vmatprep.subr.bf16.mxu0 0
    %782 = vmatpush1.bf16.xpose.msra.mxu0 0
    %783 = vmatprep.subr.bf16.mxu0 0
    %784 = vmatpush1.bf16.xpose.msra.mxu0 0
    %785 = vmatprep.subr.bf16.mxu0 0
    %786 = vmatpush1.bf16.xpose.msra.mxu0 0
    %787 = vmatprep.subr.bf16.mxu0 0
    %788 = vmatpush1.bf16.xpose.msra.mxu0 %v771
    %789 = vmatprep.subr.bf16.mxu0 0
    %790 = vmatpush2.bf16.xpose.msra.mxu0 0
    %791 = vmatprep.subr.bf16.mxu0 0
    %792 = vmatpush2.bf16.xpose.msra.mxu0 0
    %793 = vmatprep.subr.bf16.mxu0 0
    %794 = vmatpush2.bf16.xpose.msra.mxu0 0
    %795 = vmatprep.subr.bf16.mxu0 0
    %796 = vmatpush2.bf16.xpose.msra.mxu0 0
    %797 = vmatprep.subr.bf16.mxu0 0
    %798 = vmatpush2.bf16.xpose.msra.mxu0 0
    %799 = vmatprep.subr.bf16.mxu0 0
    %800 = vmatpush2.bf16.xpose.msra.mxu0 0
    %801 = vmatprep.subr.bf16.mxu0 0
    %802 = vmatpush2.bf16.xpose.msra.mxu0 0
    %803 = vmatprep.subr.bf16.mxu0 0
    %804 = vmatpush2.bf16.xpose.msra.mxu0 0
    %805 = vmatprep.mubr.bf16.mxu0 0
    %806 = vmatmul.mubr.bf16.gmra.mxu0 %v768
    %v807 = vpop.f32.mrf.mxu0
    %v808 = vadd.f32 0.0, %v807
    %v809 = vpop.f32.mrf.mxu0
    %v810 = vpop.f32.mrf.mxu0
    %v811 = vpop.f32.mrf.mxu0
    %812 = vdwg.mxu0
    %v813 = vmul.f32 %v465, 0.35355338
    %v814 = vmul.f32 %v514, 0.35355338
    %v815 = vmul.f32 %v563, 0.35355338
    %v816 = vmul.f32 %v612, 0.35355338
    %v817 = vmul.f32 %v661, 0.35355338
    %v818 = vmul.f32 %v710, 0.35355338
    %v819 = vmul.f32 %v759, 0.35355338
    %v820 = vmul.f32 %v808, 0.35355338
    %v821 = vsel %vm423, %v813, -inf
    %822 = vmax.xlane.f32.xlu0 %v821
    %v823 = vpop.xlane.xlu0 %822
    %v824 = vsel %vm423, %v814, -inf
    %825 = vmax.xlane.f32.xlu0 %v824
    %v826 = vpop.xlane.xlu0 %825
    %v827 = vsel %vm423, %v815, -inf
    %828 = vmax.xlane.f32.xlu0 %v827
    %v829 = vpop.xlane.xlu0 %828
    %v830 = vsel %vm423, %v816, -inf
    %831 = vmax.xlane.f32.xlu0 %v830
    %v832 = vpop.xlane.xlu0 %831
    %v833 = vsel %vm423, %v817, -inf
    %834 = vmax.xlane.f32.xlu0 %v833
    %v835 = vpop.xlane.xlu0 %834
    %v836 = vsel %vm423, %v818, -inf
    %837 = vmax.xlane.f32.xlu0 %v836
    %v838 = vpop.xlane.xlu0 %837
    %v839 = vsel %vm423, %v819, -inf
    %840 = vmax.xlane.f32.xlu0 %v839
    %v841 = vpop.xlane.xlu0 %840
    %v842 = vsel %vm423, %v820, -inf
    %843 = vmax.xlane.f32.xlu0 %v842
    %v844 = vpop.xlane.xlu0 %843
    %v845 = vsub.f32 %v813, %v823
    %v846 = vsub.f32 %v814, %v826
    %v847 = vsub.f32 %v815, %v829
    %v848 = vsub.f32 %v816, %v832
    %v849 = vsub.f32 %v817, %v835
    %v850 = vsub.f32 %v818, %v838
    %v851 = vsub.f32 %v819, %v841
    %v852 = vsub.f32 %v820, %v844
    %v853 = vmul.f32 %v845, 1.442695
    %v854 = vpow.pop %v853
    %v855 = vmul.f32 %v846, 1.442695
    %v856 = vpow.pop %v855
    %v857 = vmul.f32 %v847, 1.442695
    %v858 = vpow.pop %v857
    %v859 = vmul.f32 %v848, 1.442695
    %v860 = vpow.pop %v859
    %v861 = vmul.f32 %v849, 1.442695
    %v862 = vpow.pop %v861
    %v863 = vmul.f32 %v850, 1.442695
    %v864 = vpow.pop %v863
    %v865 = vmul.f32 %v851, 1.442695
    %v866 = vpow.pop %v865
    %v867 = vmul.f32 %v852, 1.442695
    %v868 = vpow.pop %v867
    %v869 = vsel %vm423, %v854, 0.0
    %870 = vadd.xlane.f32.xlu0 %v869
    %v871 = vpop.xlane.xlu0 %870
    %v872 = vsel %vm423, %v856, 0.0
    %873 = vadd.xlane.f32.xlu0 %v872
    %v874 = vpop.xlane.xlu0 %873
    %v875 = vsel %vm423, %v858, 0.0
    %876 = vadd.xlane.f32.xlu0 %v875
    %v877 = vpop.xlane.xlu0 %876
    %v878 = vsel %vm423, %v860, 0.0
    %879 = vadd.xlane.f32.xlu0 %v878
    %v880 = vpop.xlane.xlu0 %879
    %v881 = vsel %vm423, %v862, 0.0
    %882 = vadd.xlane.f32.xlu0 %v881
    %v883 = vpop.xlane.xlu0 %882
    %v884 = vsel %vm423, %v864, 0.0
    %885 = vadd.xlane.f32.xlu0 %v884
    %v886 = vpop.xlane.xlu0 %885
    %v887 = vsel %vm423, %v866, 0.0
    %888 = vadd.xlane.f32.xlu0 %v887
    %v889 = vpop.xlane.xlu0 %888
    %v890 = vsel %vm423, %v868, 0.0
    %891 = vadd.xlane.f32.xlu0 %v890
    %v892 = vpop.xlane.xlu0 %891
    %v893 = vrcp.pop %v871
    %v894 = vmul.f32 %v854, %v893
    %v895 = vrcp.pop %v874
    %v896 = vmul.f32 %v856, %v895
    %v897 = vrcp.pop %v877
    %v898 = vmul.f32 %v858, %v897
    %v899 = vrcp.pop %v880
    %v900 = vmul.f32 %v860, %v899
    %v901 = vrcp.pop %v883
    %v902 = vmul.f32 %v862, %v901
    %v903 = vrcp.pop %v886
    %v904 = vmul.f32 %v864, %v903
    %v905 = vrcp.pop %v889
    %v906 = vmul.f32 %v866, %v905
    %v907 = vrcp.pop %v892
    %v908 = vmul.f32 %v868, %v907
    %v909 = vpack.c.bf16 %v894, %v894
    %v910 = vpack.c.bf16 %v896, %v896
    %v911 = vpack.c.bf16 %v898, %v898
    %v912 = vpack.c.bf16 %v900, %v900
    %v913 = vpack.c.bf16 %v902, %v902
    %v914 = vpack.c.bf16 %v904, %v904
    %v915 = vpack.c.bf16 %v906, %v906
    %v916 = vpack.c.bf16 %v908, %v908
    %917 = vrot.lane.b32.xlu0 %v412, 64
    %v918 = vpop.permute.xlu0 %917
    %v920 = vsel %vm423, %v909, 0
    %vm922 = vcmask 1043456
    %v924 = vsel %vm922, %v918, 0
    %926 = vmatprep.subr.bf16.mxu0 0
    %927 = vmatpush1.bf16.msra.mxu0 0
    %928 = vmatprep.subr.bf16.mxu0 0
    %929 = vmatpush1.bf16.msra.mxu0 0
    %930 = vmatprep.subr.bf16.mxu0 0
    %931 = vmatpush1.bf16.msra.mxu0 0
    %932 = vmatprep.subr.bf16.mxu0 0
    %933 = vmatpush1.bf16.msra.mxu0 0
    %934 = vmatprep.subr.bf16.mxu0 0
    %935 = vmatpush1.bf16.msra.mxu0 0
    %936 = vmatprep.subr.bf16.mxu0 0
    %937 = vmatpush1.bf16.msra.mxu0 0
    %938 = vmatprep.subr.bf16.mxu0 0
    %939 = vmatpush1.bf16.msra.mxu0 0
    %940 = vmatprep.subr.bf16.mxu0 0
    %941 = vmatpush1.bf16.msra.mxu0 %v924
    %942 = vmatprep.subr.bf16.mxu0 0
    %943 = vmatpush2.bf16.msra.mxu0 0
    %944 = vmatprep.subr.bf16.mxu0 0
    %945 = vmatpush2.bf16.msra.mxu0 0
    %946 = vmatprep.subr.bf16.mxu0 0
    %947 = vmatpush2.bf16.msra.mxu0 0
    %948 = vmatprep.subr.bf16.mxu0 0
    %949 = vmatpush2.bf16.msra.mxu0 0
    %950 = vmatprep.subr.bf16.mxu0 0
    %951 = vmatpush2.bf16.msra.mxu0 0
    %952 = vmatprep.subr.bf16.mxu0 0
    %953 = vmatpush2.bf16.msra.mxu0 0
    %954 = vmatprep.subr.bf16.mxu0 0
    %955 = vmatpush2.bf16.msra.mxu0 0
    %956 = vmatprep.subr.bf16.mxu0 0
    %957 = vmatpush2.bf16.msra.mxu0 0
    %958 = vmatprep.mubr.bf16.mxu0 0
    %959 = vmatmul.mubr.bf16.gmra.mxu0 %v920
    %v960 = vpop.f32.mrf.mxu0
    %v961 = vadd.f32 0.0, %v960
    %v962 = vpop.f32.mrf.mxu0
    %v963 = vpop.f32.mrf.mxu0
    %v964 = vpop.f32.mrf.mxu0
    %965 = vdwg.mxu0
    %966 = vrot.lane.b32.xlu0 %v413, 64
    %v967 = vpop.permute.xlu0 %966
    %v969 = vsel %vm423, %v910, 0
    %v972 = vsel %vm922, %v967, 0
    %974 = vmatprep.subr.bf16.mxu0 0
    %975 = vmatpush1.bf16.msra.mxu0 0
    %976 = vmatprep.subr.bf16.mxu0 0
    %977 = vmatpush1.bf16.msra.mxu0 0
    %978 = vmatprep.subr.bf16.mxu0 0
    %979 = vmatpush1.bf16.msra.mxu0 0
    %980 = vmatprep.subr.bf16.mxu0 0
    %981 = vmatpush1.bf16.msra.mxu0 0
    %982 = vmatprep.subr.bf16.mxu0 0
    %983 = vmatpush1.bf16.msra.mxu0 0
    %984 = vmatprep.subr.bf16.mxu0 0
    %985 = vmatpush1.bf16.msra.mxu0 0
    %986 = vmatprep.subr.bf16.mxu0 0
    %987 = vmatpush1.bf16.msra.mxu0 0
    %988 = vmatprep.subr.bf16.mxu0 0
    %989 = vmatpush1.bf16.msra.mxu0 %v972
    %990 = vmatprep.subr.bf16.mxu0 0
    %991 = vmatpush2.bf16.msra.mxu0 0
    %992 = vmatprep.subr.bf16.mxu0 0
    %993 = vmatpush2.bf16.msra.mxu0 0
    %994 = vmatprep.subr.bf16.mxu0 0
    %995 = vmatpush2.bf16.msra.mxu0 0
    %996 = vmatprep.subr.bf16.mxu0 0
    %997 = vmatpush2.bf16.msra.mxu0 0
    %998 = vmatprep.subr.bf16.mxu0 0
    %999 = vmatpush2.bf16.msra.mxu0 0
    %1000 = vmatprep.subr.bf16.mxu0 0
    %1001 = vmatpush2.bf16.msra.mxu0 0
    %1002 = vmatprep.subr.bf16.mxu0 0
    %1003 = vmatpush2.bf16.msra.mxu0 0
    %1004 = vmatprep.subr.bf16.mxu0 0
    %1005 = vmatpush2.bf16.msra.mxu0 0
    %1006 = vmatprep.mubr.bf16.mxu0 0
    %1007 = vmatmul.mubr.bf16.gmra.mxu0 %v969
    %v1008 = vpop.f32.mrf.mxu0
    %v1009 = vadd.f32 0.0, %v1008
    %v1010 = vpop.f32.mrf.mxu0
    %v1011 = vpop.f32.mrf.mxu0
    %v1012 = vpop.f32.mrf.mxu0
    %1013 = vdwg.mxu0
    %1014 = vrot.lane.b32.xlu0 %v414, 64
    %v1015 = vpop.permute.xlu0 %1014
    %v1017 = vsel %vm423, %v911, 0
    %v1020 = vsel %vm922, %v1015, 0
    %1022 = vmatprep.subr.bf16.mxu0 0
    %1023 = vmatpush1.bf16.msra.mxu0 0
    %1024 = vmatprep.subr.bf16.mxu0 0
    %1025 = vmatpush1.bf16.msra.mxu0 0
    %1026 = vmatprep.subr.bf16.mxu0 0
    %1027 = vmatpush1.bf16.msra.mxu0 0
    %1028 = vmatprep.subr.bf16.mxu0 0
    %1029 = vmatpush1.bf16.msra.mxu0 0
    %1030 = vmatprep.subr.bf16.mxu0 0
    %1031 = vmatpush1.bf16.msra.mxu0 0
    %1032 = vmatprep.subr.bf16.mxu0 0
    %1033 = vmatpush1.bf16.msra.mxu0 0
    %1034 = vmatprep.subr.bf16.mxu0 0
    %1035 = vmatpush1.bf16.msra.mxu0 0
    %1036 = vmatprep.subr.bf16.mxu0 0
    %1037 = vmatpush1.bf16.msra.mxu0 %v1020
    %1038 = vmatprep.subr.bf16.mxu0 0
    %1039 = vmatpush2.bf16.msra.mxu0 0
    %1040 = vmatprep.subr.bf16.mxu0 0
    %1041 = vmatpush2.bf16.msra.mxu0 0
    %1042 = vmatprep.subr.bf16.mxu0 0
    %1043 = vmatpush2.bf16.msra.mxu0 0
    %1044 = vmatprep.subr.bf16.mxu0 0
    %1045 = vmatpush2.bf16.msra.mxu0 0
    %1046 = vmatprep.subr.bf16.mxu0 0
    %1047 = vmatpush2.bf16.msra.mxu0 0
    %1048 = vmatprep.subr.bf16.mxu0 0
    %1049 = vmatpush2.bf16.msra.mxu0 0
    %1050 = vmatprep.subr.bf16.mxu0 0
    %1051 = vmatpush2.bf16.msra.mxu0 0
    %1052 = vmatprep.subr.bf16.mxu0 0
    %1053 = vmatpush2.bf16.msra.mxu0 0
    %1054 = vmatprep.mubr.bf16.mxu0 0
    %1055 = vmatmul.mubr.bf16.gmra.mxu0 %v1017
    %v1056 = vpop.f32.mrf.mxu0
    %v1057 = vadd.f32 0.0, %v1056
    %v1058 = vpop.f32.mrf.mxu0
    %v1059 = vpop.f32.mrf.mxu0
    %v1060 = vpop.f32.mrf.mxu0
    %1061 = vdwg.mxu0
    %1062 = vrot.lane.b32.xlu0 %v415, 64
    %v1063 = vpop.permute.xlu0 %1062
    %v1065 = vsel %vm423, %v912, 0
    %v1068 = vsel %vm922, %v1063, 0
    %1070 = vmatprep.subr.bf16.mxu0 0
    %1071 = vmatpush1.bf16.msra.mxu0 0
    %1072 = vmatprep.subr.bf16.mxu0 0
    %1073 = vmatpush1.bf16.msra.mxu0 0
    %1074 = vmatprep.subr.bf16.mxu0 0
    %1075 = vmatpush1.bf16.msra.mxu0 0
    %1076 = vmatprep.subr.bf16.mxu0 0
    %1077 = vmatpush1.bf16.msra.mxu0 0
    %1078 = vmatprep.subr.bf16.mxu0 0
    %1079 = vmatpush1.bf16.msra.mxu0 0
    %1080 = vmatprep.subr.bf16.mxu0 0
    %1081 = vmatpush1.bf16.msra.mxu0 0
    %1082 = vmatprep.subr.bf16.mxu0 0
    %1083 = vmatpush1.bf16.msra.mxu0 0
    %1084 = vmatprep.subr.bf16.mxu0 0
    %1085 = vmatpush1.bf16.msra.mxu0 %v1068
    %1086 = vmatprep.subr.bf16.mxu0 0
    %1087 = vmatpush2.bf16.msra.mxu0 0
    %1088 = vmatprep.subr.bf16.mxu0 0
    %1089 = vmatpush2.bf16.msra.mxu0 0
    %1090 = vmatprep.subr.bf16.mxu0 0
    %1091 = vmatpush2.bf16.msra.mxu0 0
    %1092 = vmatprep.subr.bf16.mxu0 0
    %1093 = vmatpush2.bf16.msra.mxu0 0
    %1094 = vmatprep.subr.bf16.mxu0 0
    %1095 = vmatpush2.bf16.msra.mxu0 0
    %1096 = vmatprep.subr.bf16.mxu0 0
    %1097 = vmatpush2.bf16.msra.mxu0 0
    %1098 = vmatprep.subr.bf16.mxu0 0
    %1099 = vmatpush2.bf16.msra.mxu0 0
    %1100 = vmatprep.subr.bf16.mxu0 0
    %1101 = vmatpush2.bf16.msra.mxu0 0
    %1102 = vmatprep.mubr.bf16.mxu0 0
    %1103 = vmatmul.mubr.bf16.gmra.mxu0 %v1065
    %v1104 = vpop.f32.mrf.mxu0
    %v1105 = vadd.f32 0.0, %v1104
    %v1106 = vpop.f32.mrf.mxu0
    %v1107 = vpop.f32.mrf.mxu0
    %v1108 = vpop.f32.mrf.mxu0
    %1109 = vdwg.mxu0
    %1110 = vrot.lane.b32.xlu0 %v416, 64
    %v1111 = vpop.permute.xlu0 %1110
    %v1113 = vsel %vm423, %v913, 0
    %v1116 = vsel %vm922, %v1111, 0
    %1118 = vmatprep.subr.bf16.mxu0 0
    %1119 = vmatpush1.bf16.msra.mxu0 0
    %1120 = vmatprep.subr.bf16.mxu0 0
    %1121 = vmatpush1.bf16.msra.mxu0 0
    %1122 = vmatprep.subr.bf16.mxu0 0
    %1123 = vmatpush1.bf16.msra.mxu0 0
    %1124 = vmatprep.subr.bf16.mxu0 0
    %1125 = vmatpush1.bf16.msra.mxu0 0
    %1126 = vmatprep.subr.bf16.mxu0 0
    %1127 = vmatpush1.bf16.msra.mxu0 0
    %1128 = vmatprep.subr.bf16.mxu0 0
    %1129 = vmatpush1.bf16.msra.mxu0 0
    %1130 = vmatprep.subr.bf16.mxu0 0
    %1131 = vmatpush1.bf16.msra.mxu0 0
    %1132 = vmatprep.subr.bf16.mxu0 0
    %1133 = vmatpush1.bf16.msra.mxu0 %v1116
    %1134 = vmatprep.subr.bf16.mxu0 0
    %1135 = vmatpush2.bf16.msra.mxu0 0
    %1136 = vmatprep.subr.bf16.mxu0 0
    %1137 = vmatpush2.bf16.msra.mxu0 0
    %1138 = vmatprep.subr.bf16.mxu0 0
    %1139 = vmatpush2.bf16.msra.mxu0 0
    %1140 = vmatprep.subr.bf16.mxu0 0
    %1141 = vmatpush2.bf16.msra.mxu0 0
    %1142 = vmatprep.subr.bf16.mxu0 0
    %1143 = vmatpush2.bf16.msra.mxu0 0
    %1144 = vmatprep.subr.bf16.mxu0 0
    %1145 = vmatpush2.bf16.msra.mxu0 0
    %1146 = vmatprep.subr.bf16.mxu0 0
    %1147 = vmatpush2.bf16.msra.mxu0 0
    %1148 = vmatprep.subr.bf16.mxu0 0
    %1149 = vmatpush2.bf16.msra.mxu0 0
    %1150 = vmatprep.mubr.bf16.mxu0 0
    %1151 = vmatmul.mubr.bf16.gmra.mxu0 %v1113
    %v1152 = vpop.f32.mrf.mxu0
    %v1153 = vadd.f32 0.0, %v1152
    %v1154 = vpop.f32.mrf.mxu0
    %v1155 = vpop.f32.mrf.mxu0
    %v1156 = vpop.f32.mrf.mxu0
    %1157 = vdwg.mxu0
    %1158 = vrot.lane.b32.xlu0 %v417, 64
    %v1159 = vpop.permute.xlu0 %1158
    %v1161 = vsel %vm423, %v914, 0
    %v1164 = vsel %vm922, %v1159, 0
    %1166 = vmatprep.subr.bf16.mxu0 0
    %1167 = vmatpush1.bf16.msra.mxu0 0
    %1168 = vmatprep.subr.bf16.mxu0 0
    %1169 = vmatpush1.bf16.msra.mxu0 0
    %1170 = vmatprep.subr.bf16.mxu0 0
    %1171 = vmatpush1.bf16.msra.mxu0 0
    %1172 = vmatprep.subr.bf16.mxu0 0
    %1173 = vmatpush1.bf16.msra.mxu0 0
    %1174 = vmatprep.subr.bf16.mxu0 0
    %1175 = vmatpush1.bf16.msra.mxu0 0
    %1176 = vmatprep.subr.bf16.mxu0 0
    %1177 = vmatpush1.bf16.msra.mxu0 0
    %1178 = vmatprep.subr.bf16.mxu0 0
    %1179 = vmatpush1.bf16.msra.mxu0 0
    %1180 = vmatprep.subr.bf16.mxu0 0
    %1181 = vmatpush1.bf16.msra.mxu0 %v1164
    %1182 = vmatprep.subr.bf16.mxu0 0
    %1183 = vmatpush2.bf16.msra.mxu0 0
    %1184 = vmatprep.subr.bf16.mxu0 0
    %1185 = vmatpush2.bf16.msra.mxu0 0
    %1186 = vmatprep.subr.bf16.mxu0 0
    %1187 = vmatpush2.bf16.msra.mxu0 0
    %1188 = vmatprep.subr.bf16.mxu0 0
    %1189 = vmatpush2.bf16.msra.mxu0 0
    %1190 = vmatprep.subr.bf16.mxu0 0
    %1191 = vmatpush2.bf16.msra.mxu0 0
    %1192 = vmatprep.subr.bf16.mxu0 0
    %1193 = vmatpush2.bf16.msra.mxu0 0
    %1194 = vmatprep.subr.bf16.mxu0 0
    %1195 = vmatpush2.bf16.msra.mxu0 0
    %1196 = vmatprep.subr.bf16.mxu0 0
    %1197 = vmatpush2.bf16.msra.mxu0 0
    %1198 = vmatprep.mubr.bf16.mxu0 0
    %1199 = vmatmul.mubr.bf16.gmra.mxu0 %v1161
    %v1200 = vpop.f32.mrf.mxu0
    %v1201 = vadd.f32 0.0, %v1200
    %v1202 = vpop.f32.mrf.mxu0
    %v1203 = vpop.f32.mrf.mxu0
    %v1204 = vpop.f32.mrf.mxu0
    %1205 = vdwg.mxu0
    %1206 = vrot.lane.b32.xlu0 %v418, 64
    %v1207 = vpop.permute.xlu0 %1206
    %v1209 = vsel %vm423, %v915, 0
    %v1212 = vsel %vm922, %v1207, 0
    %1214 = vmatprep.subr.bf16.mxu0 0
    %1215 = vmatpush1.bf16.msra.mxu0 0
    %1216 = vmatprep.subr.bf16.mxu0 0
    %1217 = vmatpush1.bf16.msra.mxu0 0
    %1218 = vmatprep.subr.bf16.mxu0 0
    %1219 = vmatpush1.bf16.msra.mxu0 0
    %1220 = vmatprep.subr.bf16.mxu0 0
    %1221 = vmatpush1.bf16.msra.mxu0 0
    %1222 = vmatprep.subr.bf16.mxu0 0
    %1223 = vmatpush1.bf16.msra.mxu0 0
    %1224 = vmatprep.subr.bf16.mxu0 0
    %1225 = vmatpush1.bf16.msra.mxu0 0
    %1226 = vmatprep.subr.bf16.mxu0 0
    %1227 = vmatpush1.bf16.msra.mxu0 0
    %1228 = vmatprep.subr.bf16.mxu0 0
    %1229 = vmatpush1.bf16.msra.mxu0 %v1212
    %1230 = vmatprep.subr.bf16.mxu0 0
    %1231 = vmatpush2.bf16.msra.mxu0 0
    %1232 = vmatprep.subr.bf16.mxu0 0
    %1233 = vmatpush2.bf16.msra.mxu0 0
    %1234 = vmatprep.subr.bf16.mxu0 0
    %1235 = vmatpush2.bf16.msra.mxu0 0
    %1236 = vmatprep.subr.bf16.mxu0 0
    %1237 = vmatpush2.bf16.msra.mxu0 0
    %1238 = vmatprep.subr.bf16.mxu0 0
    %1239 = vmatpush2.bf16.msra.mxu0 0
    %1240 = vmatprep.subr.bf16.mxu0 0
    %1241 = vmatpush2.bf16.msra.mxu0 0
    %1242 = vmatprep.subr.bf16.mxu0 0
    %1243 = vmatpush2.bf16.msra.mxu0 0
    %1244 = vmatprep.subr.bf16.mxu0 0
    %1245 = vmatpush2.bf16.msra.mxu0 0
    %1246 = vmatprep.mubr.bf16.mxu0 0
    %1247 = vmatmul.mubr.bf16.gmra.mxu0 %v1209
    %v1248 = vpop.f32.mrf.mxu0
    %v1249 = vadd.f32 0.0, %v1248
    %v1250 = vpop.f32.mrf.mxu0
    %v1251 = vpop.f32.mrf.mxu0
    %v1252 = vpop.f32.mrf.mxu0
    %1253 = vdwg.mxu0
    %1254 = vrot.lane.b32.xlu0 %v419, 64
    %v1255 = vpop.permute.xlu0 %1254
    %v1257 = vsel %vm423, %v916, 0
    %v1260 = vsel %vm922, %v1255, 0
    %1262 = vmatprep.subr.bf16.mxu0 0
    %1263 = vmatpush1.bf16.msra.mxu0 0
    %1264 = vmatprep.subr.bf16.mxu0 0
    %1265 = vmatpush1.bf16.msra.mxu0 0
    %1266 = vmatprep.subr.bf16.mxu0 0
    %1267 = vmatpush1.bf16.msra.mxu0 0
    %1268 = vmatprep.subr.bf16.mxu0 0
    %1269 = vmatpush1.bf16.msra.mxu0 0
    %1270 = vmatprep.subr.bf16.mxu0 0
    %1271 = vmatpush1.bf16.msra.mxu0 0
    %1272 = vmatprep.subr.bf16.mxu0 0
    %1273 = vmatpush1.bf16.msra.mxu0 0
    %1274 = vmatprep.subr.bf16.mxu0 0
    %1275 = vmatpush1.bf16.msra.mxu0 0
    %1276 = vmatprep.subr.bf16.mxu0 0
    %1277 = vmatpush1.bf16.msra.mxu0 %v1260
    %1278 = vmatprep.subr.bf16.mxu0 0
    %1279 = vmatpush2.bf16.msra.mxu0 0
    %1280 = vmatprep.subr.bf16.mxu0 0
    %1281 = vmatpush2.bf16.msra.mxu0 0
    %1282 = vmatprep.subr.bf16.mxu0 0
    %1283 = vmatpush2.bf16.msra.mxu0 0
    %1284 = vmatprep.subr.bf16.mxu0 0
    %1285 = vmatpush2.bf16.msra.mxu0 0
    %1286 = vmatprep.subr.bf16.mxu0 0
    %1287 = vmatpush2.bf16.msra.mxu0 0
    %1288 = vmatprep.subr.bf16.mxu0 0
    %1289 = vmatpush2.bf16.msra.mxu0 0
    %1290 = vmatprep.subr.bf16.mxu0 0
    %1291 = vmatpush2.bf16.msra.mxu0 0
    %1292 = vmatprep.subr.bf16.mxu0 0
    %1293 = vmatpush2.bf16.msra.mxu0 0
    %1294 = vmatprep.mubr.bf16.mxu0 0
    %1295 = vmatmul.mubr.bf16.gmra.mxu0 %v1257
    %v1296 = vpop.f32.mrf.mxu0
    %v1297 = vadd.f32 0.0, %v1296
    %v1298 = vpop.f32.mrf.mxu0
    %v1299 = vpop.f32.mrf.mxu0
    %v1300 = vpop.f32.mrf.mxu0
    %1301 = vdwg.mxu0
    %1304 = vrot.lane.b32.xlu0 %v1057, 8
    %v1305 = vpop.permute.xlu0 %1304
    %1306 = vrot.lane.b32.xlu0 %v1105, 8
    %v1307 = vpop.permute.xlu0 %1306
    %1312 = vrot.lane.b32.xlu0 %v1153, 16
    %v1313 = vpop.permute.xlu0 %1312
    %1314 = vrot.lane.b32.xlu0 %v1201, 16
    %v1315 = vpop.permute.xlu0 %1314
    %1320 = vrot.lane.b32.xlu0 %v1249, 24
    %v1321 = vpop.permute.xlu0 %1320
    %1322 = vrot.lane.b32.xlu0 %v1297, 24
    %v1323 = vpop.permute.xlu0 %1322
    %v1326 = vsel %vm423, %v961, %v1305
    %v1327 = vsel %vm423, %v1009, %v1307
    %v1328 = vsel %vm226, %v1326, %v1313
    %v1329 = vsel %vm226, %v1327, %v1315
    %vm1330 = vcmask 195584
    %v1331 = vsel %vm1330, %v1328, %v1321
    %v1332 = vsel %vm1330, %v1329, %v1323
    %v1333 = vpack.c.bf16 %v1332, %v1331
    %v1338 = vunpack.c.l.b16 %v132
    %v1339 = vunpack.c.l.b16 %v133
    %v1340 = vunpack.c.l.b16 %v134
    %v1341 = vunpack.c.l.b16 %v135
    %v1342 = vpack.c.b16 %v1339, %v1338
    %v1343 = vpack.c.b16 %v1341, %v1340
    %v1347 = vsel %vm277, %v1333, 0
    %1349 = vmatprep.subr.bf16.mxu0 0
    %1350 = vmatpush1.bf16.msra.mxu0 0
    %1351 = vmatprep.subr.bf16.mxu0 0
    %1352 = vmatpush1.bf16.msra.mxu0 0
    %1353 = vmatprep.subr.bf16.mxu0 0
    %1354 = vmatpush1.bf16.msra.mxu0 0
    %1355 = vmatprep.subr.bf16.mxu0 0
    %1356 = vmatpush1.bf16.msra.mxu0 0
    %1357 = vmatprep.subr.bf16.mxu0 0
    %1358 = vmatpush1.bf16.msra.mxu0 0
    %1359 = vmatprep.subr.bf16.mxu0 0
    %1360 = vmatpush1.bf16.msra.mxu0 0
    %1361 = vmatprep.subr.bf16.mxu0 0
    %1362 = vmatpush1.bf16.msra.mxu0 %v1343
    %1363 = vmatprep.subr.bf16.mxu0 0
    %1364 = vmatpush1.bf16.msra.mxu0 %v1342
    %1365 = vmatprep.subr.bf16.mxu0 0
    %1366 = vmatpush2.bf16.msra.mxu0 0
    %1367 = vmatprep.subr.bf16.mxu0 0
    %1368 = vmatpush2.bf16.msra.mxu0 0
    %1369 = vmatprep.subr.bf16.mxu0 0
    %1370 = vmatpush2.bf16.msra.mxu0 0
    %1371 = vmatprep.subr.bf16.mxu0 0
    %1372 = vmatpush2.bf16.msra.mxu0 0
    %1373 = vmatprep.subr.bf16.mxu0 0
    %1374 = vmatpush2.bf16.msra.mxu0 0
    %1375 = vmatprep.subr.bf16.mxu0 0
    %1376 = vmatpush2.bf16.msra.mxu0 0
    %1377 = vmatprep.subr.bf16.mxu0 0
    %1378 = vmatpush2.bf16.msra.mxu0 0
    %1379 = vmatprep.subr.bf16.mxu0 0
    %1380 = vmatpush2.bf16.msra.mxu0 0
    %1381 = vmatprep.mubr.bf16.mxu0 0
    %1382 = vmatmul.mubr.bf16.gmra.mxu0 %v1347
    %v1383 = vpop.f32.mrf.mxu0
    %v1384 = vadd.f32 %v160, %v1383
    %v1385 = vpop.f32.mrf.mxu0
    %v1386 = vpop.f32.mrf.mxu0
    %v1387 = vadd.f32 %v160, %v1386
    %v1388 = vpop.f32.mrf.mxu0
    %1389 = vdwg.mxu0
    %v1390 = vadd.f32 %v1331, %v1384
    %v1391 = vadd.f32 %v1332, %v1387
    %v1392 = vsel %vm277, %v1390, 0.0
    %1393 = vadd.xlane.f32.xlu0 %v1392
    %v1394 = vpop.xlane.xlu0 %1393
    %v1395 = vsel %vm277, %v1391, 0.0
    %1396 = vadd.xlane.f32.xlu0 %v1395
    %v1397 = vpop.xlane.xlu0 %1396
    %v1398 = vmul.f32 %v1394, %v284
    %v1399 = vmul.f32 %v1397, %v284
    %v1400 = vsub.f32 %v1390, %v1398
    %v1401 = vsub.f32 %v1391, %v1399
    %v1402 = vmul.f32 %v1400, %v1400
    %v1403 = vmul.f32 %v1401, %v1401
    %v1404 = vsel %vm277, %v1402, 0.0
    %1405 = vadd.xlane.f32.xlu0 %v1404
    %v1406 = vpop.xlane.xlu0 %1405
    %v1407 = vsel %vm277, %v1403, 0.0
    %1408 = vadd.xlane.f32.xlu0 %v1407
    %v1409 = vpop.xlane.xlu0 %1408
    %v1410 = vmul.f32 %v1406, %v284
    %v1411 = vmul.f32 %v1409, %v284
    %v1412 = vadd.f32 %v1410, 1e-12
    %v1413 = vadd.f32 %v1411, 1e-12
    %v1414 = vrsqrt.pop %v1412
    %v1415 = vmul.f32 %v1412, %v1414
    %vm1416 = vcmp.eq.f32.partialorder %v1412, inf
    %v1417 = vsel %vm1416, %v1412, %v1415
    %vm1418 = vcmp.eq.f32.partialorder %v1412, 0.0
    %v1419 = vand.u32 %v1412, 2147483648
    %v1420 = vsel %vm1418, %v1419, %v1417
    %v1421 = vrsqrt.pop %v1413
    %v1422 = vmul.f32 %v1413, %v1421
    %vm1423 = vcmp.eq.f32.partialorder %v1413, inf
    %v1424 = vsel %vm1423, %v1413, %v1422
    %vm1425 = vcmp.eq.f32.partialorder %v1413, 0.0
    %v1426 = vand.u32 %v1413, 2147483648
    %v1427 = vsel %vm1425, %v1426, %v1424
    %v1428 = vrcp.pop %v1420
    %v1429 = vmul.f32 %v1400, %v1428
    %v1430 = vrcp.pop %v1427
    %v1431 = vmul.f32 %v1401, %v1430
    %v1432 = vmul.f32 %v181, %v1429
    %v1433 = vmul.f32 %v181, %v1431
    %v1434 = vadd.f32 %v1432, %v188
    %v1435 = vadd.f32 %v1433, %v188
    %v1436 = vpack.c.bf16 %v1435, %v1434
    %v1441 = vunpack.c.l.b16 %v136
    %v1442 = vunpack.c.l.b16 %v137
    %v1443 = vunpack.c.l.b16 %v138
    %v1444 = vunpack.c.l.b16 %v139
    %v1445 = vpack.c.b16 %v1442, %v1441
    %v1446 = vpack.c.b16 %v1444, %v1443
    %v1450 = vsel %vm277, %v1436, 0
    %1452 = vmatprep.subr.bf16.mxu0 0
    %1453 = vmatpush1.bf16.msra.mxu0 0
    %1454 = vmatprep.subr.bf16.mxu0 0
    %1455 = vmatpush1.bf16.msra.mxu0 0
    %1456 = vmatprep.subr.bf16.mxu0 0
    %1457 = vmatpush1.bf16.msra.mxu0 0
    %1458 = vmatprep.subr.bf16.mxu0 0
    %1459 = vmatpush1.bf16.msra.mxu0 0
    %1460 = vmatprep.subr.bf16.mxu0 0
    %1461 = vmatpush1.bf16.msra.mxu0 0
    %1462 = vmatprep.subr.bf16.mxu0 0
    %1463 = vmatpush1.bf16.msra.mxu0 0
    %1464 = vmatprep.subr.bf16.mxu0 0
    %1465 = vmatpush1.bf16.msra.mxu0 %v1446
    %1466 = vmatprep.subr.bf16.mxu0 0
    %1467 = vmatpush1.bf16.msra.mxu0 %v1445
    %1468 = vmatprep.subr.bf16.mxu0 0
    %1469 = vmatpush2.bf16.msra.mxu0 0
    %1470 = vmatprep.subr.bf16.mxu0 0
    %1471 = vmatpush2.bf16.msra.mxu0 0
    %1472 = vmatprep.subr.bf16.mxu0 0
    %1473 = vmatpush2.bf16.msra.mxu0 0
    %1474 = vmatprep.subr.bf16.mxu0 0
    %1475 = vmatpush2.bf16.msra.mxu0 0
    %1476 = vmatprep.subr.bf16.mxu0 0
    %1477 = vmatpush2.bf16.msra.mxu0 0
    %1478 = vmatprep.subr.bf16.mxu0 0
    %1479 = vmatpush2.bf16.msra.mxu0 0
    %1480 = vmatprep.subr.bf16.mxu0 0
    %1481 = vmatpush2.bf16.msra.mxu0 0
    %1482 = vmatprep.subr.bf16.mxu0 0
    %1483 = vmatpush2.bf16.msra.mxu0 0
    %1484 = vmatprep.mubr.bf16.mxu0 0
    %1485 = vmatmul.mubr.bf16.gmra.mxu0 %v1450
    %v1486 = vpop.f32.mrf.mxu0
    %v1487 = vadd.f32 %v167, %v1486
    %v1488 = vpop.f32.mrf.mxu0
    %v1489 = vpop.f32.mrf.mxu0
    %v1490 = vadd.f32 %v167, %v1489
    %v1491 = vpop.f32.mrf.mxu0
    %1492 = vdwg.mxu0
    %v1493 = vmul.f32 %v1487, 0.5
    %v1494 = vmul.f32 %v1490, 0.5
    %v1495 = vrcp.pop 1.4142135
    %v1496 = vmul.f32 %v1487, %v1495
    %v1497 = vmul.f32 %v1490, %v1495
    %v1498 = vand.u32 2147483647, %v1496
    %v1499 = vand.u32 2147483647, %v1497
    %v1500 = vmul.f32 %v1498, 0.3275911
    %v1501 = vmul.f32 %v1499, 0.3275911
    %v1502 = vadd.f32 %v1500, 1.0
    %v1503 = vadd.f32 %v1501, 1.0
    %v1504 = vrcp.pop %v1502
    %v1505 = vmul.f32 1.0, %v1504
    %v1506 = vrcp.pop %v1503
    %v1507 = vmul.f32 1.0, %v1506
    %v1508 = vmul.f32 %v1505, 1.0614054
    %v1509 = vmul.f32 %v1507, 1.0614054
    %v1510 = vadd.f32 %v1508, -1.4531521
    %v1511 = vadd.f32 %v1509, -1.4531521
    %v1512 = vmul.f32 %v1510, %v1505
    %v1513 = vmul.f32 %v1511, %v1507
    %v1514 = vadd.f32 %v1512, 1.4214138
    %v1515 = vadd.f32 %v1513, 1.4214138
    %v1516 = vmul.f32 %v1514, %v1505
    %v1517 = vmul.f32 %v1515, %v1507
    %v1518 = vadd.f32 %v1516, -0.28449672
    %v1519 = vadd.f32 %v1517, -0.28449672
    %v1520 = vmul.f32 %v1518, %v1505
    %v1521 = vmul.f32 %v1519, %v1507
    %v1522 = vadd.f32 %v1520, 0.2548296
    %v1523 = vadd.f32 %v1521, 0.2548296
    %v1524 = vmul.f32 %v1522, %v1505
    %v1525 = vmul.f32 %v1523, %v1507
    %v1526 = vsub.f32 0.0, %v1498
    %v1527 = vsub.f32 0.0, %v1499
    %v1528 = vmul.f32 %v1526, %v1498
    %v1529 = vmul.f32 %v1527, %v1499
    %v1530 = vmul.f32 %v1528, 1.442695
    %v1531 = vpow.pop %v1530
    %v1532 = vmul.f32 %v1529, 1.442695
    %v1533 = vpow.pop %v1532
    %v1534 = vmul.f32 %v1524, %v1531
    %v1535 = vmul.f32 %v1525, %v1533
    %v1536 = vsub.f32 1.0, %v1534
    %v1537 = vsub.f32 1.0, %v1535
    %vm1538 = vcmp.ge.f32.partialorder %v1496, 0.0
    %vm1539 = vcmp.ge.f32.partialorder %v1497, 0.0
    %v1540 = vsub.f32 0.0, %v1536
    %v1541 = vsub.f32 0.0, %v1537
    %v1542 = vsel %vm1538, %v1536, %v1540
    %v1543 = vsel %vm1539, %v1537, %v1541
    %v1544 = vadd.f32 %v1542, 1.0
    %v1545 = vadd.f32 %v1543, 1.0
    %v1546 = vmul.f32 %v1493, %v1544
    %v1547 = vmul.f32 %v1494, %v1545
    %v1548 = vpack.c.bf16 %v1547, %v1546
    %v1557 = vunpack.c.l.b16 %v140
    %v1558 = vunpack.c.l.b16 %v141
    %v1559 = vunpack.c.l.b16 %v142
    %v1560 = vunpack.c.l.b16 %v143
    %v1561 = vunpack.c.l.b16 %v144
    %v1562 = vunpack.c.l.b16 %v145
    %v1563 = vunpack.c.l.b16 %v146
    %v1564 = vunpack.c.l.b16 %v147
    %v1565 = vpack.c.b16 %v1558, %v1557
    %v1566 = vpack.c.b16 %v1560, %v1559
    %v1567 = vpack.c.b16 %v1562, %v1561
    %v1568 = vpack.c.b16 %v1564, %v1563
    %vm1573 = vcmask 523264
    %v1575 = vsel %vm1573, %v1548, 0
    %1577 = vmatprep.subr.bf16.mxu0 0
    %1578 = vmatpush1.bf16.msra.mxu0 0
    %1579 = vmatprep.subr.bf16.mxu0 0
    %1580 = vmatpush1.bf16.msra.mxu0 0
    %1581 = vmatprep.subr.bf16.mxu0 0
    %1582 = vmatpush1.bf16.msra.mxu0 0
    %1583 = vmatprep.subr.bf16.mxu0 0
    %1584 = vmatpush1.bf16.msra.mxu0 0
    %1585 = vmatprep.subr.bf16.mxu0 0
    %1586 = vmatpush1.bf16.msra.mxu0 %v1568
    %1587 = vmatprep.subr.bf16.mxu0 0
    %1588 = vmatpush1.bf16.msra.mxu0 %v1567
    %1589 = vmatprep.subr.bf16.mxu0 0
    %1590 = vmatpush1.bf16.msra.mxu0 %v1566
    %1591 = vmatprep.subr.bf16.mxu0 0
    %1592 = vmatpush1.bf16.msra.mxu0 %v1565
    %1593 = vmatprep.subr.bf16.mxu0 0
    %1594 = vmatpush2.bf16.msra.mxu0 0
    %1595 = vmatprep.subr.bf16.mxu0 0
    %1596 = vmatpush2.bf16.msra.mxu0 0
    %1597 = vmatprep.subr.bf16.mxu0 0
    %1598 = vmatpush2.bf16.msra.mxu0 0
    %1599 = vmatprep.subr.bf16.mxu0 0
    %1600 = vmatpush2.bf16.msra.mxu0 0
    %1601 = vmatprep.subr.bf16.mxu0 0
    %1602 = vmatpush2.bf16.msra.mxu0 0
    %1603 = vmatprep.subr.bf16.mxu0 0
    %1604 = vmatpush2.bf16.msra.mxu0 0
    %1605 = vmatprep.subr.bf16.mxu0 0
    %1606 = vmatpush2.bf16.msra.mxu0 0
    %1607 = vmatprep.subr.bf16.mxu0 0
    %1608 = vmatpush2.bf16.msra.mxu0 0
    %1609 = vmatprep.mubr.bf16.mxu0 0
    %1610 = vmatmul.mubr.bf16.gmra.mxu0 %v1575
    %v1611 = vpop.f32.mrf.mxu0
    %v1612 = vadd.f32 %v174, %v1611
    %v1613 = vpop.f32.mrf.mxu0
    %v1614 = vpop.f32.mrf.mxu0
    %v1615 = vadd.f32 %v174, %v1614
    %v1616 = vpop.f32.mrf.mxu0
    %1617 = vdwg.mxu0
    %v1618 = vadd.f32 %v1434, %v1612
    %v1619 = vadd.f32 %v1435, %v1615
    %v1620 = vsel %vm277, %v1618, 0.0
    %1621 = vadd.xlane.f32.xlu0 %v1620
    %v1622 = vpop.xlane.xlu0 %1621
    %v1623 = vsel %vm277, %v1619, 0.0
    %1624 = vadd.xlane.f32.xlu0 %v1623
    %v1625 = vpop.xlane.xlu0 %1624
    %v1626 = vmul.f32 %v1622, %v284
    %v1627 = vmul.f32 %v1625, %v284
    %v1628 = vsub.f32 %v1618, %v1626
    %v1629 = vsub.f32 %v1619, %v1627
    %v1630 = vmul.f32 %v1628, %v1628
    %v1631 = vmul.f32 %v1629, %v1629
    %v1632 = vsel %vm277, %v1630, 0.0
    %1633 = vadd.xlane.f32.xlu0 %v1632
    %v1634 = vpop.xlane.xlu0 %1633
    %v1635 = vsel %vm277, %v1631, 0.0
    %1636 = vadd.xlane.f32.xlu0 %v1635
    %v1637 = vpop.xlane.xlu0 %1636
    %v1638 = vmul.f32 %v1634, %v284
    %v1639 = vmul.f32 %v1637, %v284
    %v1640 = vadd.f32 %v1638, 1e-12
    %v1641 = vadd.f32 %v1639, 1e-12
    %v1642 = vrsqrt.pop %v1640
    %v1643 = vmul.f32 %v1640, %v1642
    %vm1644 = vcmp.eq.f32.partialorder %v1640, inf
    %v1645 = vsel %vm1644, %v1640, %v1643
    %vm1646 = vcmp.eq.f32.partialorder %v1640, 0.0
    %v1647 = vand.u32 %v1640, 2147483648
    %v1648 = vsel %vm1646, %v1647, %v1645
    %v1649 = vrsqrt.pop %v1641
    %v1650 = vmul.f32 %v1641, %v1649
    %vm1651 = vcmp.eq.f32.partialorder %v1641, inf
    %v1652 = vsel %vm1651, %v1641, %v1650
    %vm1653 = vcmp.eq.f32.partialorder %v1641, 0.0
    %v1654 = vand.u32 %v1641, 2147483648
    %v1655 = vsel %vm1653, %v1654, %v1652
    %v1656 = vrcp.pop %v1648
    %v1657 = vmul.f32 %v1628, %v1656
    %v1658 = vrcp.pop %v1655
    %v1659 = vmul.f32 %v1629, %v1658
    %v1660 = vmul.f32 %v195, %v1657
    %v1661 = vmul.f32 %v195, %v1659
    %v1662 = vadd.f32 %v1660, %v202
    %v1663 = vadd.f32 %v1661, %v202
    %v1664 = vpack.c.bf16 %v1663, %v1662
    %v1666 = vsel %vm277, %v1664, 0
    %1668 = vmatprep.subr.bf16.mxu0 0
    %1669 = vmatpush1.bf16.msra.mxu0 0
    %1670 = vmatprep.subr.bf16.mxu0 0
    %1671 = vmatpush1.bf16.msra.mxu0 0
    %1672 = vmatprep.subr.bf16.mxu0 0
    %1673 = vmatpush1.bf16.msra.mxu0 0
    %1674 = vmatprep.subr.bf16.mxu0 0
    %1675 = vmatpush1.bf16.msra.mxu0 0
    %1676 = vmatprep.subr.bf16.mxu0 0
    %1677 = vmatpush1.bf16.msra.mxu0 0
    %1678 = vmatprep.subr.bf16.mxu0 0
    %1679 = vmatpush1.bf16.msra.mxu0 0
    %1680 = vmatprep.subr.bf16.mxu0 0
    %1681 = vmatpush1.bf16.msra.mxu0 %v345
    %1682 = vmatprep.subr.bf16.mxu0 0
    %1683 = vmatpush1.bf16.msra.mxu0 %v344
    %1684 = vmatprep.subr.bf16.mxu0 0
    %1685 = vmatpush2.bf16.msra.mxu0 0
    %1686 = vmatprep.subr.bf16.mxu0 0
    %1687 = vmatpush2.bf16.msra.mxu0 0
    %1688 = vmatprep.subr.bf16.mxu0 0
    %1689 = vmatpush2.bf16.msra.mxu0 0
    %1690 = vmatprep.subr.bf16.mxu0 0
    %1691 = vmatpush2.bf16.msra.mxu0 0
    %1692 = vmatprep.subr.bf16.mxu0 0
    %1693 = vmatpush2.bf16.msra.mxu0 0
    %1694 = vmatprep.subr.bf16.mxu0 0
    %1695 = vmatpush2.bf16.msra.mxu0 0
    %1696 = vmatprep.subr.bf16.mxu0 0
    %1697 = vmatpush2.bf16.msra.mxu0 0
    %1698 = vmatprep.subr.bf16.mxu0 0
    %1699 = vmatpush2.bf16.msra.mxu0 0
    %1700 = vmatprep.mubr.bf16.mxu0 0
    %1701 = vmatmul.mubr.bf16.gmra.mxu0 %v1666
    %v1702 = vpop.f32.mrf.mxu0
    %v1703 = vadd.f32 %v153, %v1702
    %v1704 = vpop.f32.mrf.mxu0
    %v1705 = vpop.f32.mrf.mxu0
    %v1706 = vadd.f32 %v153, %v1705
    %v1707 = vpop.f32.mrf.mxu0
    %1708 = vdwg.mxu0
    %1711 = vrot.lane.b32.xlu0 %v1703, 120
    %v1712 = vpop.permute.xlu0 %1711
    %1713 = vrot.lane.b32.xlu0 %v1706, 120
    %v1714 = vpop.permute.xlu0 %1713
    %1717 = vrot.lane.b32.xlu0 %v1703, 112
    %v1718 = vpop.permute.xlu0 %1717
    %1719 = vrot.lane.b32.xlu0 %v1706, 112
    %v1720 = vpop.permute.xlu0 %1719
    %1723 = vrot.lane.b32.xlu0 %v1703, 104
    %v1724 = vpop.permute.xlu0 %1723
    %1725 = vrot.lane.b32.xlu0 %v1706, 104
    %v1726 = vpop.permute.xlu0 %1725
    %v1729 = vpack.c.bf16 %v1703, %v1703
    %v1730 = vpack.c.bf16 %v1706, %v1706
    %v1731 = vpack.c.bf16 %v1712, %v1712
    %v1732 = vpack.c.bf16 %v1714, %v1714
    %v1733 = vpack.c.bf16 %v1718, %v1718
    %v1734 = vpack.c.bf16 %v1720, %v1720
    %v1735 = vpack.c.bf16 %v1724, %v1724
    %v1736 = vpack.c.bf16 %v1726, %v1726
    %1738 = vrot.lane.b32.xlu0 %v1729, 96
    %v1739 = vpop.permute.xlu0 %1738
    %v1741 = vsel %vm423, %v1729, 0
    %v1744 = vsel %vm423, %v1739, 0
    %1746 = vmatprep.subr.bf16.mxu0 0
    %1747 = vmatpush1.bf16.xpose.msra.mxu0 0
    %1748 = vmatprep.subr.bf16.mxu0 0
    %1749 = vmatpush1.bf16.xpose.msra.mxu0 0
    %1750 = vmatprep.subr.bf16.mxu0 0
    %1751 = vmatpush1.bf16.xpose.msra.mxu0 0
    %1752 = vmatprep.subr.bf16.mxu0 0
    %1753 = vmatpush1.bf16.xpose.msra.mxu0 0
    %1754 = vmatprep.subr.bf16.mxu0 0
    %1755 = vmatpush1.bf16.xpose.msra.mxu0 0
    %1756 = vmatprep.subr.bf16.mxu0 0
    %1757 = vmatpush1.bf16.xpose.msra.mxu0 0
    %1758 = vmatprep.subr.bf16.mxu0 0
    %1759 = vmatpush1.bf16.xpose.msra.mxu0 0
    %1760 = vmatprep.subr.bf16.mxu0 0
    %1761 = vmatpush1.bf16.xpose.msra.mxu0 %v1744
    %1762 = vmatprep.subr.bf16.mxu0 0
    %1763 = vmatpush2.bf16.xpose.msra.mxu0 0
    %1764 = vmatprep.subr.bf16.mxu0 0
    %1765 = vmatpush2.bf16.xpose.msra.mxu0 0
    %1766 = vmatprep.subr.bf16.mxu0 0
    %1767 = vmatpush2.bf16.xpose.msra.mxu0 0
    %1768 = vmatprep.subr.bf16.mxu0 0
    %1769 = vmatpush2.bf16.xpose.msra.mxu0 0
    %1770 = vmatprep.subr.bf16.mxu0 0
    %1771 = vmatpush2.bf16.xpose.msra.mxu0 0
    %1772 = vmatprep.subr.bf16.mxu0 0
    %1773 = vmatpush2.bf16.xpose.msra.mxu0 0
    %1774 = vmatprep.subr.bf16.mxu0 0
    %1775 = vmatpush2.bf16.xpose.msra.mxu0 0
    %1776 = vmatprep.subr.bf16.mxu0 0
    %1777 = vmatpush2.bf16.xpose.msra.mxu0 0
    %1778 = vmatprep.mubr.bf16.mxu0 0
    %1779 = vmatmul.mubr.bf16.gmra.mxu0 %v1741
    %v1780 = vpop.f32.mrf.mxu0
    %v1781 = vadd.f32 0.0, %v1780
    %v1782 = vpop.f32.mrf.mxu0
    %v1783 = vpop.f32.mrf.mxu0
    %v1784 = vpop.f32.mrf.mxu0
    %1785 = vdwg.mxu0
    %1787 = vrot.lane.b32.xlu0 %v1730, 96
    %v1788 = vpop.permute.xlu0 %1787
    %v1790 = vsel %vm423, %v1730, 0
    %v1793 = vsel %vm423, %v1788, 0
    %1795 = vmatprep.subr.bf16.mxu0 0
    %1796 = vmatpush1.bf16.xpose.msra.mxu0 0
    %1797 = vmatprep.subr.bf16.mxu0 0
    %1798 = vmatpush1.bf16.xpose.msra.mxu0 0
    %1799 = vmatprep.subr.bf16.mxu0 0
    %1800 = vmatpush1.bf16.xpose.msra.mxu0 0
    %1801 = vmatprep.subr.bf16.mxu0 0
    %1802 = vmatpush1.bf16.xpose.msra.mxu0 0
    %1803 = vmatprep.subr.bf16.mxu0 0
    %1804 = vmatpush1.bf16.xpose.msra.mxu0 0
    %1805 = vmatprep.subr.bf16.mxu0 0
    %1806 = vmatpush1.bf16.xpose.msra.mxu0 0
    %1807 = vmatprep.subr.bf16.mxu0 0
    %1808 = vmatpush1.bf16.xpose.msra.mxu0 0
    %1809 = vmatprep.subr.bf16.mxu0 0
    %1810 = vmatpush1.bf16.xpose.msra.mxu0 %v1793
    %1811 = vmatprep.subr.bf16.mxu0 0
    %1812 = vmatpush2.bf16.xpose.msra.mxu0 0
    %1813 = vmatprep.subr.bf16.mxu0 0
    %1814 = vmatpush2.bf16.xpose.msra.mxu0 0
    %1815 = vmatprep.subr.bf16.mxu0 0
    %1816 = vmatpush2.bf16.xpose.msra.mxu0 0
    %1817 = vmatprep.subr.bf16.mxu0 0
    %1818 = vmatpush2.bf16.xpose.msra.mxu0 0
    %1819 = vmatprep.subr.bf16.mxu0 0
    %1820 = vmatpush2.bf16.xpose.msra.mxu0 0
    %1821 = vmatprep.subr.bf16.mxu0 0
    %1822 = vmatpush2.bf16.xpose.msra.mxu0 0
    %1823 = vmatprep.subr.bf16.mxu0 0
    %1824 = vmatpush2.bf16.xpose.msra.mxu0 0
    %1825 = vmatprep.subr.bf16.mxu0 0
    %1826 = vmatpush2.bf16.xpose.msra.mxu0 0
    %1827 = vmatprep.mubr.bf16.mxu0 0
    %1828 = vmatmul.mubr.bf16.gmra.mxu0 %v1790
    %v1829 = vpop.f32.mrf.mxu0
    %v1830 = vadd.f32 0.0, %v1829
    %v1831 = vpop.f32.mrf.mxu0
    %v1832 = vpop.f32.mrf.mxu0
    %v1833 = vpop.f32.mrf.mxu0
    %1834 = vdwg.mxu0
    %1836 = vrot.lane.b32.xlu0 %v1731, 96
    %v1837 = vpop.permute.xlu0 %1836
    %v1839 = vsel %vm423, %v1731, 0
    %v1842 = vsel %vm423, %v1837, 0
    %1844 = vmatprep.subr.bf16.mxu0 0
    %1845 = vmatpush1.bf16.xpose.msra.mxu0 0
    %1846 = vmatprep.subr.bf16.mxu0 0
    %1847 = vmatpush1.bf16.xpose.msra.mxu0 0
    %1848 = vmatprep.subr.bf16.mxu0 0
    %1849 = vmatpush1.bf16.xpose.msra.mxu0 0
    %1850 = vmatprep.subr.bf16.mxu0 0
    %1851 = vmatpush1.bf16.xpose.msra.mxu0 0
    %1852 = vmatprep.subr.bf16.mxu0 0
    %1853 = vmatpush1.bf16.xpose.msra.mxu0 0
    %1854 = vmatprep.subr.bf16.mxu0 0
    %1855 = vmatpush1.bf16.xpose.msra.mxu0 0
    %1856 = vmatprep.subr.bf16.mxu0 0
    %1857 = vmatpush1.bf16.xpose.msra.mxu0 0
    %1858 = vmatprep.subr.bf16.mxu0 0
    %1859 = vmatpush1.bf16.xpose.msra.mxu0 %v1842
    %1860 = vmatprep.subr.bf16.mxu0 0
    %1861 = vmatpush2.bf16.xpose.msra.mxu0 0
    %1862 = vmatprep.subr.bf16.mxu0 0
    %1863 = vmatpush2.bf16.xpose.msra.mxu0 0
    %1864 = vmatprep.subr.bf16.mxu0 0
    %1865 = vmatpush2.bf16.xpose.msra.mxu0 0
    %1866 = vmatprep.subr.bf16.mxu0 0
    %1867 = vmatpush2.bf16.xpose.msra.mxu0 0
    %1868 = vmatprep.subr.bf16.mxu0 0
    %1869 = vmatpush2.bf16.xpose.msra.mxu0 0
    %1870 = vmatprep.subr.bf16.mxu0 0
    %1871 = vmatpush2.bf16.xpose.msra.mxu0 0
    %1872 = vmatprep.subr.bf16.mxu0 0
    %1873 = vmatpush2.bf16.xpose.msra.mxu0 0
    %1874 = vmatprep.subr.bf16.mxu0 0
    %1875 = vmatpush2.bf16.xpose.msra.mxu0 0
    %1876 = vmatprep.mubr.bf16.mxu0 0
    %1877 = vmatmul.mubr.bf16.gmra.mxu0 %v1839
    %v1878 = vpop.f32.mrf.mxu0
    %v1879 = vadd.f32 0.0, %v1878
    %v1880 = vpop.f32.mrf.mxu0
    %v1881 = vpop.f32.mrf.mxu0
    %v1882 = vpop.f32.mrf.mxu0
    %1883 = vdwg.mxu0
    %1885 = vrot.lane.b32.xlu0 %v1732, 96
    %v1886 = vpop.permute.xlu0 %1885
    %v1888 = vsel %vm423, %v1732, 0
    %v1891 = vsel %vm423, %v1886, 0
    %1893 = vmatprep.subr.bf16.mxu0 0
    %1894 = vmatpush1.bf16.xpose.msra.mxu0 0
    %1895 = vmatprep.subr.bf16.mxu0 0
    %1896 = vmatpush1.bf16.xpose.msra.mxu0 0
    %1897 = vmatprep.subr.bf16.mxu0 0
    %1898 = vmatpush1.bf16.xpose.msra.mxu0 0
    %1899 = vmatprep.subr.bf16.mxu0 0
    %1900 = vmatpush1.bf16.xpose.msra.mxu0 0
    %1901 = vmatprep.subr.bf16.mxu0 0
    %1902 = vmatpush1.bf16.xpose.msra.mxu0 0
    %1903 = vmatprep.subr.bf16.mxu0 0
    %1904 = vmatpush1.bf16.xpose.msra.mxu0 0
    %1905 = vmatprep.subr.bf16.mxu0 0
    %1906 = vmatpush1.bf16.xpose.msra.mxu0 0
    %1907 = vmatprep.subr.bf16.mxu0 0
    %1908 = vmatpush1.bf16.xpose.msra.mxu0 %v1891
    %1909 = vmatprep.subr.bf16.mxu0 0
    %1910 = vmatpush2.bf16.xpose.msra.mxu0 0
    %1911 = vmatprep.subr.bf16.mxu0 0
    %1912 = vmatpush2.bf16.xpose.msra.mxu0 0
    %1913 = vmatprep.subr.bf16.mxu0 0
    %1914 = vmatpush2.bf16.xpose.msra.mxu0 0
    %1915 = vmatprep.subr.bf16.mxu0 0
    %1916 = vmatpush2.bf16.xpose.msra.mxu0 0
    %1917 = vmatprep.subr.bf16.mxu0 0
    %1918 = vmatpush2.bf16.xpose.msra.mxu0 0
    %1919 = vmatprep.subr.bf16.mxu0 0
    %1920 = vmatpush2.bf16.xpose.msra.mxu0 0
    %1921 = vmatprep.subr.bf16.mxu0 0
    %1922 = vmatpush2.bf16.xpose.msra.mxu0 0
    %1923 = vmatprep.subr.bf16.mxu0 0
    %1924 = vmatpush2.bf16.xpose.msra.mxu0 0
    %1925 = vmatprep.mubr.bf16.mxu0 0
    %1926 = vmatmul.mubr.bf16.gmra.mxu0 %v1888
    %v1927 = vpop.f32.mrf.mxu0
    %v1928 = vadd.f32 0.0, %v1927
    %v1929 = vpop.f32.mrf.mxu0
    %v1930 = vpop.f32.mrf.mxu0
    %v1931 = vpop.f32.mrf.mxu0
    %1932 = vdwg.mxu0
    %1934 = vrot.lane.b32.xlu0 %v1733, 96
    %v1935 = vpop.permute.xlu0 %1934
    %v1937 = vsel %vm423, %v1733, 0
    %v1940 = vsel %vm423, %v1935, 0
    %1942 = vmatprep.subr.bf16.mxu0 0
    %1943 = vmatpush1.bf16.xpose.msra.mxu0 0
    %1944 = vmatprep.subr.bf16.mxu0 0
    %1945 = vmatpush1.bf16.xpose.msra.mxu0 0
    %1946 = vmatprep.subr.bf16.mxu0 0
    %1947 = vmatpush1.bf16.xpose.msra.mxu0 0
    %1948 = vmatprep.subr.bf16.mxu0 0
    %1949 = vmatpush1.bf16.xpose.msra.mxu0 0
    %1950 = vmatprep.subr.bf16.mxu0 0
    %1951 = vmatpush1.bf16.xpose.msra.mxu0 0
    %1952 = vmatprep.subr.bf16.mxu0 0
    %1953 = vmatpush1.bf16.xpose.msra.mxu0 0
    %1954 = vmatprep.subr.bf16.mxu0 0
    %1955 = vmatpush1.bf16.xpose.msra.mxu0 0
    %1956 = vmatprep.subr.bf16.mxu0 0
    %1957 = vmatpush1.bf16.xpose.msra.mxu0 %v1940
    %1958 = vmatprep.subr.bf16.mxu0 0
    %1959 = vmatpush2.bf16.xpose.msra.mxu0 0
    %1960 = vmatprep.subr.bf16.mxu0 0
    %1961 = vmatpush2.bf16.xpose.msra.mxu0 0
    %1962 = vmatprep.subr.bf16.mxu0 0
    %1963 = vmatpush2.bf16.xpose.msra.mxu0 0
    %1964 = vmatprep.subr.bf16.mxu0 0
    %1965 = vmatpush2.bf16.xpose.msra.mxu0 0
    %1966 = vmatprep.subr.bf16.mxu0 0
    %1967 = vmatpush2.bf16.xpose.msra.mxu0 0
    %1968 = vmatprep.subr.bf16.mxu0 0
    %1969 = vmatpush2.bf16.xpose.msra.mxu0 0
    %1970 = vmatprep.subr.bf16.mxu0 0
    %1971 = vmatpush2.bf16.xpose.msra.mxu0 0
    %1972 = vmatprep.subr.bf16.mxu0 0
    %1973 = vmatpush2.bf16.xpose.msra.mxu0 0
    %1974 = vmatprep.mubr.bf16.mxu0 0
    %1975 = vmatmul.mubr.bf16.gmra.mxu0 %v1937
    %v1976 = vpop.f32.mrf.mxu0
    %v1977 = vadd.f32 0.0, %v1976
    %v1978 = vpop.f32.mrf.mxu0
    %v1979 = vpop.f32.mrf.mxu0
    %v1980 = vpop.f32.mrf.mxu0
    %1981 = vdwg.mxu0
    %1983 = vrot.lane.b32.xlu0 %v1734, 96
    %v1984 = vpop.permute.xlu0 %1983
    %v1986 = vsel %vm423, %v1734, 0
    %v1989 = vsel %vm423, %v1984, 0
    %1991 = vmatprep.subr.bf16.mxu0 0
    %1992 = vmatpush1.bf16.xpose.msra.mxu0 0
    %1993 = vmatprep.subr.bf16.mxu0 0
    %1994 = vmatpush1.bf16.xpose.msra.mxu0 0
    %1995 = vmatprep.subr.bf16.mxu0 0
    %1996 = vmatpush1.bf16.xpose.msra.mxu0 0
    %1997 = vmatprep.subr.bf16.mxu0 0
    %1998 = vmatpush1.bf16.xpose.msra.mxu0 0
    %1999 = vmatprep.subr.bf16.mxu0 0
    %2000 = vmatpush1.bf16.xpose.msra.mxu0 0
    %2001 = vmatprep.subr.bf16.mxu0 0
    %2002 = vmatpush1.bf16.xpose.msra.mxu0 0
    %2003 = vmatprep.subr.bf16.mxu0 0
    %2004 = vmatpush1.bf16.xpose.msra.mxu0 0
    %2005 = vmatprep.subr.bf16.mxu0 0
    %2006 = vmatpush1.bf16.xpose.msra.mxu0 %v1989
    %2007 = vmatprep.subr.bf16.mxu0 0
    %2008 = vmatpush2.bf16.xpose.msra.mxu0 0
    %2009 = vmatprep.subr.bf16.mxu0 0
    %2010 = vmatpush2.bf16.xpose.msra.mxu0 0
    %2011 = vmatprep.subr.bf16.mxu0 0
    %2012 = vmatpush2.bf16.xpose.msra.mxu0 0
    %2013 = vmatprep.subr.bf16.mxu0 0
    %2014 = vmatpush2.bf16.xpose.msra.mxu0 0
    %2015 = vmatprep.subr.bf16.mxu0 0
    %2016 = vmatpush2.bf16.xpose.msra.mxu0 0
    %2017 = vmatprep.subr.bf16.mxu0 0
    %2018 = vmatpush2.bf16.xpose.msra.mxu0 0
    %2019 = vmatprep.subr.bf16.mxu0 0
    %2020 = vmatpush2.bf16.xpose.msra.mxu0 0
    %2021 = vmatprep.subr.bf16.mxu0 0
    %2022 = vmatpush2.bf16.xpose.msra.mxu0 0
    %2023 = vmatprep.mubr.bf16.mxu0 0
    %2024 = vmatmul.mubr.bf16.gmra.mxu0 %v1986
    %v2025 = vpop.f32.mrf.mxu0
    %v2026 = vadd.f32 0.0, %v2025
    %v2027 = vpop.f32.mrf.mxu0
    %v2028 = vpop.f32.mrf.mxu0
    %v2029 = vpop.f32.mrf.mxu0
    %2030 = vdwg.mxu0
    %2032 = vrot.lane.b32.xlu0 %v1735, 96
    %v2033 = vpop.permute.xlu0 %2032
    %v2035 = vsel %vm423, %v1735, 0
    %v2038 = vsel %vm423, %v2033, 0
    %2040 = vmatprep.subr.bf16.mxu0 0
    %2041 = vmatpush1.bf16.xpose.msra.mxu0 0
    %2042 = vmatprep.subr.bf16.mxu0 0
    %2043 = vmatpush1.bf16.xpose.msra.mxu0 0
    %2044 = vmatprep.subr.bf16.mxu0 0
    %2045 = vmatpush1.bf16.xpose.msra.mxu0 0
    %2046 = vmatprep.subr.bf16.mxu0 0
    %2047 = vmatpush1.bf16.xpose.msra.mxu0 0
    %2048 = vmatprep.subr.bf16.mxu0 0
    %2049 = vmatpush1.bf16.xpose.msra.mxu0 0
    %2050 = vmatprep.subr.bf16.mxu0 0
    %2051 = vmatpush1.bf16.xpose.msra.mxu0 0
    %2052 = vmatprep.subr.bf16.mxu0 0
    %2053 = vmatpush1.bf16.xpose.msra.mxu0 0
    %2054 = vmatprep.subr.bf16.mxu0 0
    %2055 = vmatpush1.bf16.xpose.msra.mxu0 %v2038
    %2056 = vmatprep.subr.bf16.mxu0 0
    %2057 = vmatpush2.bf16.xpose.msra.mxu0 0
    %2058 = vmatprep.subr.bf16.mxu0 0
    %2059 = vmatpush2.bf16.xpose.msra.mxu0 0
    %2060 = vmatprep.subr.bf16.mxu0 0
    %2061 = vmatpush2.bf16.xpose.msra.mxu0 0
    %2062 = vmatprep.subr.bf16.mxu0 0
    %2063 = vmatpush2.bf16.xpose.msra.mxu0 0
    %2064 = vmatprep.subr.bf16.mxu0 0
    %2065 = vmatpush2.bf16.xpose.msra.mxu0 0
    %2066 = vmatprep.subr.bf16.mxu0 0
    %2067 = vmatpush2.bf16.xpose.msra.mxu0 0
    %2068 = vmatprep.subr.bf16.mxu0 0
    %2069 = vmatpush2.bf16.xpose.msra.mxu0 0
    %2070 = vmatprep.subr.bf16.mxu0 0
    %2071 = vmatpush2.bf16.xpose.msra.mxu0 0
    %2072 = vmatprep.mubr.bf16.mxu0 0
    %2073 = vmatmul.mubr.bf16.gmra.mxu0 %v2035
    %v2074 = vpop.f32.mrf.mxu0
    %v2075 = vadd.f32 0.0, %v2074
    %v2076 = vpop.f32.mrf.mxu0
    %v2077 = vpop.f32.mrf.mxu0
    %v2078 = vpop.f32.mrf.mxu0
    %2079 = vdwg.mxu0
    %2081 = vrot.lane.b32.xlu0 %v1736, 96
    %v2082 = vpop.permute.xlu0 %2081
    %v2084 = vsel %vm423, %v1736, 0
    %v2087 = vsel %vm423, %v2082, 0
    %2089 = vmatprep.subr.bf16.mxu0 0
    %2090 = vmatpush1.bf16.xpose.msra.mxu0 0
    %2091 = vmatprep.subr.bf16.mxu0 0
    %2092 = vmatpush1.bf16.xpose.msra.mxu0 0
    %2093 = vmatprep.subr.bf16.mxu0 0
    %2094 = vmatpush1.bf16.xpose.msra.mxu0 0
    %2095 = vmatprep.subr.bf16.mxu0 0
    %2096 = vmatpush1.bf16.xpose.msra.mxu0 0
    %2097 = vmatprep.subr.bf16.mxu0 0
    %2098 = vmatpush1.bf16.xpose.msra.mxu0 0
    %2099 = vmatprep.subr.bf16.mxu0 0
    %2100 = vmatpush1.bf16.xpose.msra.mxu0 0
    %2101 = vmatprep.subr.bf16.mxu0 0
    %2102 = vmatpush1.bf16.xpose.msra.mxu0 0
    %2103 = vmatprep.subr.bf16.mxu0 0
    %2104 = vmatpush1.bf16.xpose.msra.mxu0 %v2087
    %2105 = vmatprep.subr.bf16.mxu0 0
    %2106 = vmatpush2.bf16.xpose.msra.mxu0 0
    %2107 = vmatprep.subr.bf16.mxu0 0
    %2108 = vmatpush2.bf16.xpose.msra.mxu0 0
    %2109 = vmatprep.subr.bf16.mxu0 0
    %2110 = vmatpush2.bf16.xpose.msra.mxu0 0
    %2111 = vmatprep.subr.bf16.mxu0 0
    %2112 = vmatpush2.bf16.xpose.msra.mxu0 0
    %2113 = vmatprep.subr.bf16.mxu0 0
    %2114 = vmatpush2.bf16.xpose.msra.mxu0 0
    %2115 = vmatprep.subr.bf16.mxu0 0
    %2116 = vmatpush2.bf16.xpose.msra.mxu0 0
    %2117 = vmatprep.subr.bf16.mxu0 0
    %2118 = vmatpush2.bf16.xpose.msra.mxu0 0
    %2119 = vmatprep.subr.bf16.mxu0 0
    %2120 = vmatpush2.bf16.xpose.msra.mxu0 0
    %2121 = vmatprep.mubr.bf16.mxu0 0
    %2122 = vmatmul.mubr.bf16.gmra.mxu0 %v2084
    %v2123 = vpop.f32.mrf.mxu0
    %v2124 = vadd.f32 0.0, %v2123
    %v2125 = vpop.f32.mrf.mxu0
    %v2126 = vpop.f32.mrf.mxu0
    %v2127 = vpop.f32.mrf.mxu0
    %2128 = vdwg.mxu0
    %v2129 = vmul.f32 %v1781, 0.35355338
    %v2130 = vmul.f32 %v1830, 0.35355338
    %v2131 = vmul.f32 %v1879, 0.35355338
    %v2132 = vmul.f32 %v1928, 0.35355338
    %v2133 = vmul.f32 %v1977, 0.35355338
    %v2134 = vmul.f32 %v2026, 0.35355338
    %v2135 = vmul.f32 %v2075, 0.35355338
    %v2136 = vmul.f32 %v2124, 0.35355338
    %v2137 = vsel %vm423, %v2129, -inf
    %2138 = vmax.xlane.f32.xlu0 %v2137
    %v2139 = vpop.xlane.xlu0 %2138
    %v2140 = vsel %vm423, %v2130, -inf
    %2141 = vmax.xlane.f32.xlu0 %v2140
    %v2142 = vpop.xlane.xlu0 %2141
    %v2143 = vsel %vm423, %v2131, -inf
    %2144 = vmax.xlane.f32.xlu0 %v2143
    %v2145 = vpop.xlane.xlu0 %2144
    %v2146 = vsel %vm423, %v2132, -inf
    %2147 = vmax.xlane.f32.xlu0 %v2146
    %v2148 = vpop.xlane.xlu0 %2147
    %v2149 = vsel %vm423, %v2133, -inf
    %2150 = vmax.xlane.f32.xlu0 %v2149
    %v2151 = vpop.xlane.xlu0 %2150
    %v2152 = vsel %vm423, %v2134, -inf
    %2153 = vmax.xlane.f32.xlu0 %v2152
    %v2154 = vpop.xlane.xlu0 %2153
    %v2155 = vsel %vm423, %v2135, -inf
    %2156 = vmax.xlane.f32.xlu0 %v2155
    %v2157 = vpop.xlane.xlu0 %2156
    %v2158 = vsel %vm423, %v2136, -inf
    %2159 = vmax.xlane.f32.xlu0 %v2158
    %v2160 = vpop.xlane.xlu0 %2159
    %v2161 = vsub.f32 %v2129, %v2139
    %v2162 = vsub.f32 %v2130, %v2142
    %v2163 = vsub.f32 %v2131, %v2145
    %v2164 = vsub.f32 %v2132, %v2148
    %v2165 = vsub.f32 %v2133, %v2151
    %v2166 = vsub.f32 %v2134, %v2154
    %v2167 = vsub.f32 %v2135, %v2157
    %v2168 = vsub.f32 %v2136, %v2160
    %v2169 = vmul.f32 %v2161, 1.442695
    %v2170 = vpow.pop %v2169
    %v2171 = vmul.f32 %v2162, 1.442695
    %v2172 = vpow.pop %v2171
    %v2173 = vmul.f32 %v2163, 1.442695
    %v2174 = vpow.pop %v2173
    %v2175 = vmul.f32 %v2164, 1.442695
    %v2176 = vpow.pop %v2175
    %v2177 = vmul.f32 %v2165, 1.442695
    %v2178 = vpow.pop %v2177
    %v2179 = vmul.f32 %v2166, 1.442695
    %v2180 = vpow.pop %v2179
    %v2181 = vmul.f32 %v2167, 1.442695
    %v2182 = vpow.pop %v2181
    %v2183 = vmul.f32 %v2168, 1.442695
    %v2184 = vpow.pop %v2183
    %v2185 = vsel %vm423, %v2170, 0.0
    %2186 = vadd.xlane.f32.xlu0 %v2185
    %v2187 = vpop.xlane.xlu0 %2186
    %v2188 = vsel %vm423, %v2172, 0.0
    %2189 = vadd.xlane.f32.xlu0 %v2188
    %v2190 = vpop.xlane.xlu0 %2189
    %v2191 = vsel %vm423, %v2174, 0.0
    %2192 = vadd.xlane.f32.xlu0 %v2191
    %v2193 = vpop.xlane.xlu0 %2192
    %v2194 = vsel %vm423, %v2176, 0.0
    %2195 = vadd.xlane.f32.xlu0 %v2194
    %v2196 = vpop.xlane.xlu0 %2195
    %v2197 = vsel %vm423, %v2178, 0.0
    %2198 = vadd.xlane.f32.xlu0 %v2197
    %v2199 = vpop.xlane.xlu0 %2198
    %v2200 = vsel %vm423, %v2180, 0.0
    %2201 = vadd.xlane.f32.xlu0 %v2200
    %v2202 = vpop.xlane.xlu0 %2201
    %v2203 = vsel %vm423, %v2182, 0.0
    %2204 = vadd.xlane.f32.xlu0 %v2203
    %v2205 = vpop.xlane.xlu0 %2204
    %v2206 = vsel %vm423, %v2184, 0.0
    %2207 = vadd.xlane.f32.xlu0 %v2206
    %v2208 = vpop.xlane.xlu0 %2207
    %v2209 = vrcp.pop %v2187
    %v2210 = vmul.f32 %v2170, %v2209
    %v2211 = vrcp.pop %v2190
    %v2212 = vmul.f32 %v2172, %v2211
    %v2213 = vrcp.pop %v2193
    %v2214 = vmul.f32 %v2174, %v2213
    %v2215 = vrcp.pop %v2196
    %v2216 = vmul.f32 %v2176, %v2215
    %v2217 = vrcp.pop %v2199
    %v2218 = vmul.f32 %v2178, %v2217
    %v2219 = vrcp.pop %v2202
    %v2220 = vmul.f32 %v2180, %v2219
    %v2221 = vrcp.pop %v2205
    %v2222 = vmul.f32 %v2182, %v2221
    %v2223 = vrcp.pop %v2208
    %v2224 = vmul.f32 %v2184, %v2223
    %v2225 = vpack.c.bf16 %v2210, %v2210
    %v2226 = vpack.c.bf16 %v2212, %v2212
    %v2227 = vpack.c.bf16 %v2214, %v2214
    %v2228 = vpack.c.bf16 %v2216, %v2216
    %v2229 = vpack.c.bf16 %v2218, %v2218
    %v2230 = vpack.c.bf16 %v2220, %v2220
    %v2231 = vpack.c.bf16 %v2222, %v2222
    %v2232 = vpack.c.bf16 %v2224, %v2224
    %2233 = vrot.lane.b32.xlu0 %v1729, 64
    %v2234 = vpop.permute.xlu0 %2233
    %v2236 = vsel %vm423, %v2225, 0
    %v2239 = vsel %vm922, %v2234, 0
    %2241 = vmatprep.subr.bf16.mxu0 0
    %2242 = vmatpush1.bf16.msra.mxu0 0
    %2243 = vmatprep.subr.bf16.mxu0 0
    %2244 = vmatpush1.bf16.msra.mxu0 0
    %2245 = vmatprep.subr.bf16.mxu0 0
    %2246 = vmatpush1.bf16.msra.mxu0 0
    %2247 = vmatprep.subr.bf16.mxu0 0
    %2248 = vmatpush1.bf16.msra.mxu0 0
    %2249 = vmatprep.subr.bf16.mxu0 0
    %2250 = vmatpush1.bf16.msra.mxu0 0
    %2251 = vmatprep.subr.bf16.mxu0 0
    %2252 = vmatpush1.bf16.msra.mxu0 0
    %2253 = vmatprep.subr.bf16.mxu0 0
    %2254 = vmatpush1.bf16.msra.mxu0 0
    %2255 = vmatprep.subr.bf16.mxu0 0
    %2256 = vmatpush1.bf16.msra.mxu0 %v2239
    %2257 = vmatprep.subr.bf16.mxu0 0
    %2258 = vmatpush2.bf16.msra.mxu0 0
    %2259 = vmatprep.subr.bf16.mxu0 0
    %2260 = vmatpush2.bf16.msra.mxu0 0
    %2261 = vmatprep.subr.bf16.mxu0 0
    %2262 = vmatpush2.bf16.msra.mxu0 0
    %2263 = vmatprep.subr.bf16.mxu0 0
    %2264 = vmatpush2.bf16.msra.mxu0 0
    %2265 = vmatprep.subr.bf16.mxu0 0
    %2266 = vmatpush2.bf16.msra.mxu0 0
    %2267 = vmatprep.subr.bf16.mxu0 0
    %2268 = vmatpush2.bf16.msra.mxu0 0
    %2269 = vmatprep.subr.bf16.mxu0 0
    %2270 = vmatpush2.bf16.msra.mxu0 0
    %2271 = vmatprep.subr.bf16.mxu0 0
    %2272 = vmatpush2.bf16.msra.mxu0 0
    %2273 = vmatprep.mubr.bf16.mxu0 0
    %2274 = vmatmul.mubr.bf16.gmra.mxu0 %v2236
    %v2275 = vpop.f32.mrf.mxu0
    %v2276 = vadd.f32 0.0, %v2275
    %v2277 = vpop.f32.mrf.mxu0
    %v2278 = vpop.f32.mrf.mxu0
    %v2279 = vpop.f32.mrf.mxu0
    %2280 = vdwg.mxu0
    %2281 = vrot.lane.b32.xlu0 %v1730, 64
    %v2282 = vpop.permute.xlu0 %2281
    %v2284 = vsel %vm423, %v2226, 0
    %v2287 = vsel %vm922, %v2282, 0
    %2289 = vmatprep.subr.bf16.mxu0 0
    %2290 = vmatpush1.bf16.msra.mxu0 0
    %2291 = vmatprep.subr.bf16.mxu0 0
    %2292 = vmatpush1.bf16.msra.mxu0 0
    %2293 = vmatprep.subr.bf16.mxu0 0
    %2294 = vmatpush1.bf16.msra.mxu0 0
    %2295 = vmatprep.subr.bf16.mxu0 0
    %2296 = vmatpush1.bf16.msra.mxu0 0
    %2297 = vmatprep.subr.bf16.mxu0 0
    %2298 = vmatpush1.bf16.msra.mxu0 0
    %2299 = vmatprep.subr.bf16.mxu0 0
    %2300 = vmatpush1.bf16.msra.mxu0 0
    %2301 = vmatprep.subr.bf16.mxu0 0
    %2302 = vmatpush1.bf16.msra.mxu0 0
    %2303 = vmatprep.subr.bf16.mxu0 0
    %2304 = vmatpush1.bf16.msra.mxu0 %v2287
    %2305 = vmatprep.subr.bf16.mxu0 0
    %2306 = vmatpush2.bf16.msra.mxu0 0
    %2307 = vmatprep.subr.bf16.mxu0 0
    %2308 = vmatpush2.bf16.msra.mxu0 0
    %2309 = vmatprep.subr.bf16.mxu0 0
    %2310 = vmatpush2.bf16.msra.mxu0 0
    %2311 = vmatprep.subr.bf16.mxu0 0
    %2312 = vmatpush2.bf16.msra.mxu0 0
    %2313 = vmatprep.subr.bf16.mxu0 0
    %2314 = vmatpush2.bf16.msra.mxu0 0
    %2315 = vmatprep.subr.bf16.mxu0 0
    %2316 = vmatpush2.bf16.msra.mxu0 0
    %2317 = vmatprep.subr.bf16.mxu0 0
    %2318 = vmatpush2.bf16.msra.mxu0 0
    %2319 = vmatprep.subr.bf16.mxu0 0
    %2320 = vmatpush2.bf16.msra.mxu0 0
    %2321 = vmatprep.mubr.bf16.mxu0 0
    %2322 = vmatmul.mubr.bf16.gmra.mxu0 %v2284
    %v2323 = vpop.f32.mrf.mxu0
    %v2324 = vadd.f32 0.0, %v2323
    %v2325 = vpop.f32.mrf.mxu0
    %v2326 = vpop.f32.mrf.mxu0
    %v2327 = vpop.f32.mrf.mxu0
    %2328 = vdwg.mxu0
    %2329 = vrot.lane.b32.xlu0 %v1731, 64
    %v2330 = vpop.permute.xlu0 %2329
    %v2332 = vsel %vm423, %v2227, 0
    %v2335 = vsel %vm922, %v2330, 0
    %2337 = vmatprep.subr.bf16.mxu0 0
    %2338 = vmatpush1.bf16.msra.mxu0 0
    %2339 = vmatprep.subr.bf16.mxu0 0
    %2340 = vmatpush1.bf16.msra.mxu0 0
    %2341 = vmatprep.subr.bf16.mxu0 0
    %2342 = vmatpush1.bf16.msra.mxu0 0
    %2343 = vmatprep.subr.bf16.mxu0 0
    %2344 = vmatpush1.bf16.msra.mxu0 0
    %2345 = vmatprep.subr.bf16.mxu0 0
    %2346 = vmatpush1.bf16.msra.mxu0 0
    %2347 = vmatprep.subr.bf16.mxu0 0
    %2348 = vmatpush1.bf16.msra.mxu0 0
    %2349 = vmatprep.subr.bf16.mxu0 0
    %2350 = vmatpush1.bf16.msra.mxu0 0
    %2351 = vmatprep.subr.bf16.mxu0 0
    %2352 = vmatpush1.bf16.msra.mxu0 %v2335
    %2353 = vmatprep.subr.bf16.mxu0 0
    %2354 = vmatpush2.bf16.msra.mxu0 0
    %2355 = vmatprep.subr.bf16.mxu0 0
    %2356 = vmatpush2.bf16.msra.mxu0 0
    %2357 = vmatprep.subr.bf16.mxu0 0
    %2358 = vmatpush2.bf16.msra.mxu0 0
    %2359 = vmatprep.subr.bf16.mxu0 0
    %2360 = vmatpush2.bf16.msra.mxu0 0
    %2361 = vmatprep.subr.bf16.mxu0 0
    %2362 = vmatpush2.bf16.msra.mxu0 0
    %2363 = vmatprep.subr.bf16.mxu0 0
    %2364 = vmatpush2.bf16.msra.mxu0 0
    %2365 = vmatprep.subr.bf16.mxu0 0
    %2366 = vmatpush2.bf16.msra.mxu0 0
    %2367 = vmatprep.subr.bf16.mxu0 0
    %2368 = vmatpush2.bf16.msra.mxu0 0
    %2369 = vmatprep.mubr.bf16.mxu0 0
    %2370 = vmatmul.mubr.bf16.gmra.mxu0 %v2332
    %v2371 = vpop.f32.mrf.mxu0
    %v2372 = vadd.f32 0.0, %v2371
    %v2373 = vpop.f32.mrf.mxu0
    %v2374 = vpop.f32.mrf.mxu0
    %v2375 = vpop.f32.mrf.mxu0
    %2376 = vdwg.mxu0
    %2377 = vrot.lane.b32.xlu0 %v1732, 64
    %v2378 = vpop.permute.xlu0 %2377
    %v2380 = vsel %vm423, %v2228, 0
    %v2383 = vsel %vm922, %v2378, 0
    %2385 = vmatprep.subr.bf16.mxu0 0
    %2386 = vmatpush1.bf16.msra.mxu0 0
    %2387 = vmatprep.subr.bf16.mxu0 0
    %2388 = vmatpush1.bf16.msra.mxu0 0
    %2389 = vmatprep.subr.bf16.mxu0 0
    %2390 = vmatpush1.bf16.msra.mxu0 0
    %2391 = vmatprep.subr.bf16.mxu0 0
    %2392 = vmatpush1.bf16.msra.mxu0 0
    %2393 = vmatprep.subr.bf16.mxu0 0
    %2394 = vmatpush1.bf16.msra.mxu0 0
    %2395 = vmatprep.subr.bf16.mxu0 0
    %2396 = vmatpush1.bf16.msra.mxu0 0
    %2397 = vmatprep.subr.bf16.mxu0 0
    %2398 = vmatpush1.bf16.msra.mxu0 0
    %2399 = vmatprep.subr.bf16.mxu0 0
    %2400 = vmatpush1.bf16.msra.mxu0 %v2383
    %2401 = vmatprep.subr.bf16.mxu0 0
    %2402 = vmatpush2.bf16.msra.mxu0 0
    %2403 = vmatprep.subr.bf16.mxu0 0
    %2404 = vmatpush2.bf16.msra.mxu0 0
    %2405 = vmatprep.subr.bf16.mxu0 0
    %2406 = vmatpush2.bf16.msra.mxu0 0
    %2407 = vmatprep.subr.bf16.mxu0 0
    %2408 = vmatpush2.bf16.msra.mxu0 0
    %2409 = vmatprep.subr.bf16.mxu0 0
    %2410 = vmatpush2.bf16.msra.mxu0 0
    %2411 = vmatprep.subr.bf16.mxu0 0
    %2412 = vmatpush2.bf16.msra.mxu0 0
    %2413 = vmatprep.subr.bf16.mxu0 0
    %2414 = vmatpush2.bf16.msra.mxu0 0
    %2415 = vmatprep.subr.bf16.mxu0 0
    %2416 = vmatpush2.bf16.msra.mxu0 0
    %2417 = vmatprep.mubr.bf16.mxu0 0
    %2418 = vmatmul.mubr.bf16.gmra.mxu0 %v2380
    %v2419 = vpop.f32.mrf.mxu0
    %v2420 = vadd.f32 0.0, %v2419
    %v2421 = vpop.f32.mrf.mxu0
    %v2422 = vpop.f32.mrf.mxu0
    %v2423 = vpop.f32.mrf.mxu0
    %2424 = vdwg.mxu0
    %2425 = vrot.lane.b32.xlu0 %v1733, 64
    %v2426 = vpop.permute.xlu0 %2425
    %v2428 = vsel %vm423, %v2229, 0
    %v2431 = vsel %vm922, %v2426, 0
    %2433 = vmatprep.subr.bf16.mxu0 0
    %2434 = vmatpush1.bf16.msra.mxu0 0
    %2435 = vmatprep.subr.bf16.mxu0 0
    %2436 = vmatpush1.bf16.msra.mxu0 0
    %2437 = vmatprep.subr.bf16.mxu0 0
    %2438 = vmatpush1.bf16.msra.mxu0 0
    %2439 = vmatprep.subr.bf16.mxu0 0
    %2440 = vmatpush1.bf16.msra.mxu0 0
    %2441 = vmatprep.subr.bf16.mxu0 0
    %2442 = vmatpush1.bf16.msra.mxu0 0
    %2443 = vmatprep.subr.bf16.mxu0 0
    %2444 = vmatpush1.bf16.msra.mxu0 0
    %2445 = vmatprep.subr.bf16.mxu0 0
    %2446 = vmatpush1.bf16.msra.mxu0 0
    %2447 = vmatprep.subr.bf16.mxu0 0
    %2448 = vmatpush1.bf16.msra.mxu0 %v2431
    %2449 = vmatprep.subr.bf16.mxu0 0
    %2450 = vmatpush2.bf16.msra.mxu0 0
    %2451 = vmatprep.subr.bf16.mxu0 0
    %2452 = vmatpush2.bf16.msra.mxu0 0
    %2453 = vmatprep.subr.bf16.mxu0 0
    %2454 = vmatpush2.bf16.msra.mxu0 0
    %2455 = vmatprep.subr.bf16.mxu0 0
    %2456 = vmatpush2.bf16.msra.mxu0 0
    %2457 = vmatprep.subr.bf16.mxu0 0
    %2458 = vmatpush2.bf16.msra.mxu0 0
    %2459 = vmatprep.subr.bf16.mxu0 0
    %2460 = vmatpush2.bf16.msra.mxu0 0
    %2461 = vmatprep.subr.bf16.mxu0 0
    %2462 = vmatpush2.bf16.msra.mxu0 0
    %2463 = vmatprep.subr.bf16.mxu0 0
    %2464 = vmatpush2.bf16.msra.mxu0 0
    %2465 = vmatprep.mubr.bf16.mxu0 0
    %2466 = vmatmul.mubr.bf16.gmra.mxu0 %v2428
    %v2467 = vpop.f32.mrf.mxu0
    %v2468 = vadd.f32 0.0, %v2467
    %v2469 = vpop.f32.mrf.mxu0
    %v2470 = vpop.f32.mrf.mxu0
    %v2471 = vpop.f32.mrf.mxu0
    %2472 = vdwg.mxu0
    %2473 = vrot.lane.b32.xlu0 %v1734, 64
    %v2474 = vpop.permute.xlu0 %2473
    %v2476 = vsel %vm423, %v2230, 0
    %v2479 = vsel %vm922, %v2474, 0
    %2481 = vmatprep.subr.bf16.mxu0 0
    %2482 = vmatpush1.bf16.msra.mxu0 0
    %2483 = vmatprep.subr.bf16.mxu0 0
    %2484 = vmatpush1.bf16.msra.mxu0 0
    %2485 = vmatprep.subr.bf16.mxu0 0
    %2486 = vmatpush1.bf16.msra.mxu0 0
    %2487 = vmatprep.subr.bf16.mxu0 0
    %2488 = vmatpush1.bf16.msra.mxu0 0
    %2489 = vmatprep.subr.bf16.mxu0 0
    %2490 = vmatpush1.bf16.msra.mxu0 0
    %2491 = vmatprep.subr.bf16.mxu0 0
    %2492 = vmatpush1.bf16.msra.mxu0 0
    %2493 = vmatprep.subr.bf16.mxu0 0
    %2494 = vmatpush1.bf16.msra.mxu0 0
    %2495 = vmatprep.subr.bf16.mxu0 0
    %2496 = vmatpush1.bf16.msra.mxu0 %v2479
    %2497 = vmatprep.subr.bf16.mxu0 0
    %2498 = vmatpush2.bf16.msra.mxu0 0
    %2499 = vmatprep.subr.bf16.mxu0 0
    %2500 = vmatpush2.bf16.msra.mxu0 0
    %2501 = vmatprep.subr.bf16.mxu0 0
    %2502 = vmatpush2.bf16.msra.mxu0 0
    %2503 = vmatprep.subr.bf16.mxu0 0
    %2504 = vmatpush2.bf16.msra.mxu0 0
    %2505 = vmatprep.subr.bf16.mxu0 0
    %2506 = vmatpush2.bf16.msra.mxu0 0
    %2507 = vmatprep.subr.bf16.mxu0 0
    %2508 = vmatpush2.bf16.msra.mxu0 0
    %2509 = vmatprep.subr.bf16.mxu0 0
    %2510 = vmatpush2.bf16.msra.mxu0 0
    %2511 = vmatprep.subr.bf16.mxu0 0
    %2512 = vmatpush2.bf16.msra.mxu0 0
    %2513 = vmatprep.mubr.bf16.mxu0 0
    %2514 = vmatmul.mubr.bf16.gmra.mxu0 %v2476
    %v2515 = vpop.f32.mrf.mxu0
    %v2516 = vadd.f32 0.0, %v2515
    %v2517 = vpop.f32.mrf.mxu0
    %v2518 = vpop.f32.mrf.mxu0
    %v2519 = vpop.f32.mrf.mxu0
    %2520 = vdwg.mxu0
    %2521 = vrot.lane.b32.xlu0 %v1735, 64
    %v2522 = vpop.permute.xlu0 %2521
    %v2524 = vsel %vm423, %v2231, 0
    %v2527 = vsel %vm922, %v2522, 0
    %2529 = vmatprep.subr.bf16.mxu0 0
    %2530 = vmatpush1.bf16.msra.mxu0 0
    %2531 = vmatprep.subr.bf16.mxu0 0
    %2532 = vmatpush1.bf16.msra.mxu0 0
    %2533 = vmatprep.subr.bf16.mxu0 0
    %2534 = vmatpush1.bf16.msra.mxu0 0
    %2535 = vmatprep.subr.bf16.mxu0 0
    %2536 = vmatpush1.bf16.msra.mxu0 0
    %2537 = vmatprep.subr.bf16.mxu0 0
    %2538 = vmatpush1.bf16.msra.mxu0 0
    %2539 = vmatprep.subr.bf16.mxu0 0
    %2540 = vmatpush1.bf16.msra.mxu0 0
    %2541 = vmatprep.subr.bf16.mxu0 0
    %2542 = vmatpush1.bf16.msra.mxu0 0
    %2543 = vmatprep.subr.bf16.mxu0 0
    %2544 = vmatpush1.bf16.msra.mxu0 %v2527
    %2545 = vmatprep.subr.bf16.mxu0 0
    %2546 = vmatpush2.bf16.msra.mxu0 0
    %2547 = vmatprep.subr.bf16.mxu0 0
    %2548 = vmatpush2.bf16.msra.mxu0 0
    %2549 = vmatprep.subr.bf16.mxu0 0
    %2550 = vmatpush2.bf16.msra.mxu0 0
    %2551 = vmatprep.subr.bf16.mxu0 0
    %2552 = vmatpush2.bf16.msra.mxu0 0
    %2553 = vmatprep.subr.bf16.mxu0 0
    %2554 = vmatpush2.bf16.msra.mxu0 0
    %2555 = vmatprep.subr.bf16.mxu0 0
    %2556 = vmatpush2.bf16.msra.mxu0 0
    %2557 = vmatprep.subr.bf16.mxu0 0
    %2558 = vmatpush2.bf16.msra.mxu0 0
    %2559 = vmatprep.subr.bf16.mxu0 0
    %2560 = vmatpush2.bf16.msra.mxu0 0
    %2561 = vmatprep.mubr.bf16.mxu0 0
    %2562 = vmatmul.mubr.bf16.gmra.mxu0 %v2524
    %v2563 = vpop.f32.mrf.mxu0
    %v2564 = vadd.f32 0.0, %v2563
    %v2565 = vpop.f32.mrf.mxu0
    %v2566 = vpop.f32.mrf.mxu0
    %v2567 = vpop.f32.mrf.mxu0
    %2568 = vdwg.mxu0
    %2569 = vrot.lane.b32.xlu0 %v1736, 64
    %v2570 = vpop.permute.xlu0 %2569
    %v2572 = vsel %vm423, %v2232, 0
    %v2575 = vsel %vm922, %v2570, 0
    %2577 = vmatprep.subr.bf16.mxu0 0
    %2578 = vmatpush1.bf16.msra.mxu0 0
    %2579 = vmatprep.subr.bf16.mxu0 0
    %2580 = vmatpush1.bf16.msra.mxu0 0
    %2581 = vmatprep.subr.bf16.mxu0 0
    %2582 = vmatpush1.bf16.msra.mxu0 0
    %2583 = vmatprep.subr.bf16.mxu0 0
    %2584 = vmatpush1.bf16.msra.mxu0 0
    %2585 = vmatprep.subr.bf16.mxu0 0
    %2586 = vmatpush1.bf16.msra.mxu0 0
    %2587 = vmatprep.subr.bf16.mxu0 0
    %2588 = vmatpush1.bf16.msra.mxu0 0
    %2589 = vmatprep.subr.bf16.mxu0 0
    %2590 = vmatpush1.bf16.msra.mxu0 0
    %2591 = vmatprep.subr.bf16.mxu0 0
    %2592 = vmatpush1.bf16.msra.mxu0 %v2575
    %2593 = vmatprep.subr.bf16.mxu0 0
    %2594 = vmatpush2.bf16.msra.mxu0 0
    %2595 = vmatprep.subr.bf16.mxu0 0
    %2596 = vmatpush2.bf16.msra.mxu0 0
    %2597 = vmatprep.subr.bf16.mxu0 0
    %2598 = vmatpush2.bf16.msra.mxu0 0
    %2599 = vmatprep.subr.bf16.mxu0 0
    %2600 = vmatpush2.bf16.msra.mxu0 0
    %2601 = vmatprep.subr.bf16.mxu0 0
    %2602 = vmatpush2.bf16.msra.mxu0 0
    %2603 = vmatprep.subr.bf16.mxu0 0
    %2604 = vmatpush2.bf16.msra.mxu0 0
    %2605 = vmatprep.subr.bf16.mxu0 0
    %2606 = vmatpush2.bf16.msra.mxu0 0
    %2607 = vmatprep.subr.bf16.mxu0 0
    %2608 = vmatpush2.bf16.msra.mxu0 0
    %2609 = vmatprep.mubr.bf16.mxu0 0
    %2610 = vmatmul.mubr.bf16.gmra.mxu0 %v2572
    %v2611 = vpop.f32.mrf.mxu0
    %v2612 = vadd.f32 0.0, %v2611
    %v2613 = vpop.f32.mrf.mxu0
    %v2614 = vpop.f32.mrf.mxu0
    %v2615 = vpop.f32.mrf.mxu0
    %2616 = vdwg.mxu0
    %2619 = vrot.lane.b32.xlu0 %v2372, 8
    %v2620 = vpop.permute.xlu0 %2619
    %2621 = vrot.lane.b32.xlu0 %v2420, 8
    %v2622 = vpop.permute.xlu0 %2621
    %2627 = vrot.lane.b32.xlu0 %v2468, 16
    %v2628 = vpop.permute.xlu0 %2627
    %2629 = vrot.lane.b32.xlu0 %v2516, 16
    %v2630 = vpop.permute.xlu0 %2629
    %2635 = vrot.lane.b32.xlu0 %v2564, 24
    %v2636 = vpop.permute.xlu0 %2635
    %2637 = vrot.lane.b32.xlu0 %v2612, 24
    %v2638 = vpop.permute.xlu0 %2637
    %v2641 = vsel %vm423, %v2276, %v2620
    %v2642 = vsel %vm423, %v2324, %v2622
    %v2643 = vsel %vm226, %v2641, %v2628
    %v2644 = vsel %vm226, %v2642, %v2630
    %v2645 = vsel %vm1330, %v2643, %v2636
    %v2646 = vsel %vm1330, %v2644, %v2638
    %v2647 = vpack.c.bf16 %v2646, %v2645
    %v2649 = vsel %vm277, %v2647, 0
    %2651 = vmatprep.subr.bf16.mxu0 0
    %2652 = vmatpush1.bf16.msra.mxu0 0
    %2653 = vmatprep.subr.bf16.mxu0 0
    %2654 = vmatpush1.bf16.msra.mxu0 0
    %2655 = vmatprep.subr.bf16.mxu0 0
    %2656 = vmatpush1.bf16.msra.mxu0 0
    %2657 = vmatprep.subr.bf16.mxu0 0
    %2658 = vmatpush1.bf16.msra.mxu0 0
    %2659 = vmatprep.subr.bf16.mxu0 0
    %2660 = vmatpush1.bf16.msra.mxu0 0
    %2661 = vmatprep.subr.bf16.mxu0 0
    %2662 = vmatpush1.bf16.msra.mxu0 0
    %2663 = vmatprep.subr.bf16.mxu0 0
    %2664 = vmatpush1.bf16.msra.mxu0 %v1343
    %2665 = vmatprep.subr.bf16.mxu0 0
    %2666 = vmatpush1.bf16.msra.mxu0 %v1342
    %2667 = vmatprep.subr.bf16.mxu0 0
    %2668 = vmatpush2.bf16.msra.mxu0 0
    %2669 = vmatprep.subr.bf16.mxu0 0
    %2670 = vmatpush2.bf16.msra.mxu0 0
    %2671 = vmatprep.subr.bf16.mxu0 0
    %2672 = vmatpush2.bf16.msra.mxu0 0
    %2673 = vmatprep.subr.bf16.mxu0 0
    %2674 = vmatpush2.bf16.msra.mxu0 0
    %2675 = vmatprep.subr.bf16.mxu0 0
    %2676 = vmatpush2.bf16.msra.mxu0 0
    %2677 = vmatprep.subr.bf16.mxu0 0
    %2678 = vmatpush2.bf16.msra.mxu0 0
    %2679 = vmatprep.subr.bf16.mxu0 0
    %2680 = vmatpush2.bf16.msra.mxu0 0
    %2681 = vmatprep.subr.bf16.mxu0 0
    %2682 = vmatpush2.bf16.msra.mxu0 0
    %2683 = vmatprep.mubr.bf16.mxu0 0
    %2684 = vmatmul.mubr.bf16.gmra.mxu0 %v2649
    %v2685 = vpop.f32.mrf.mxu0
    %v2686 = vadd.f32 %v160, %v2685
    %v2687 = vpop.f32.mrf.mxu0
    %v2688 = vpop.f32.mrf.mxu0
    %v2689 = vadd.f32 %v160, %v2688
    %v2690 = vpop.f32.mrf.mxu0
    %2691 = vdwg.mxu0
    %v2692 = vadd.f32 %v2645, %v2686
    %v2693 = vadd.f32 %v2646, %v2689
    %v2694 = vsel %vm277, %v2692, 0.0
    %2695 = vadd.xlane.f32.xlu0 %v2694
    %v2696 = vpop.xlane.xlu0 %2695
    %v2697 = vsel %vm277, %v2693, 0.0
    %2698 = vadd.xlane.f32.xlu0 %v2697
    %v2699 = vpop.xlane.xlu0 %2698
    %v2700 = vmul.f32 %v2696, %v284
    %v2701 = vmul.f32 %v2699, %v284
    %v2702 = vsub.f32 %v2692, %v2700
    %v2703 = vsub.f32 %v2693, %v2701
    %v2704 = vmul.f32 %v2702, %v2702
    %v2705 = vmul.f32 %v2703, %v2703
    %v2706 = vsel %vm277, %v2704, 0.0
    %2707 = vadd.xlane.f32.xlu0 %v2706
    %v2708 = vpop.xlane.xlu0 %2707
    %v2709 = vsel %vm277, %v2705, 0.0
    %2710 = vadd.xlane.f32.xlu0 %v2709
    %v2711 = vpop.xlane.xlu0 %2710
    %v2712 = vmul.f32 %v2708, %v284
    %v2713 = vmul.f32 %v2711, %v284
    %v2714 = vadd.f32 %v2712, 1e-12
    %v2715 = vadd.f32 %v2713, 1e-12
    %v2716 = vrsqrt.pop %v2714
    %v2717 = vmul.f32 %v2714, %v2716
    %vm2718 = vcmp.eq.f32.partialorder %v2714, inf
    %v2719 = vsel %vm2718, %v2714, %v2717
    %vm2720 = vcmp.eq.f32.partialorder %v2714, 0.0
    %v2721 = vand.u32 %v2714, 2147483648
    %v2722 = vsel %vm2720, %v2721, %v2719
    %v2723 = vrsqrt.pop %v2715
    %v2724 = vmul.f32 %v2715, %v2723
    %vm2725 = vcmp.eq.f32.partialorder %v2715, inf
    %v2726 = vsel %vm2725, %v2715, %v2724
    %vm2727 = vcmp.eq.f32.partialorder %v2715, 0.0
    %v2728 = vand.u32 %v2715, 2147483648
    %v2729 = vsel %vm2727, %v2728, %v2726
    %v2730 = vrcp.pop %v2722
    %v2731 = vmul.f32 %v2702, %v2730
    %v2732 = vrcp.pop %v2729
    %v2733 = vmul.f32 %v2703, %v2732
    %v2734 = vmul.f32 %v181, %v2731
    %v2735 = vmul.f32 %v181, %v2733
    %v2736 = vadd.f32 %v2734, %v188
    %v2737 = vadd.f32 %v2735, %v188
    %v2738 = vpack.c.bf16 %v2737, %v2736
    %v2740 = vsel %vm277, %v2738, 0
    %2742 = vmatprep.subr.bf16.mxu0 0
    %2743 = vmatpush1.bf16.msra.mxu0 0
    %2744 = vmatprep.subr.bf16.mxu0 0
    %2745 = vmatpush1.bf16.msra.mxu0 0
    %2746 = vmatprep.subr.bf16.mxu0 0
    %2747 = vmatpush1.bf16.msra.mxu0 0
    %2748 = vmatprep.subr.bf16.mxu0 0
    %2749 = vmatpush1.bf16.msra.mxu0 0
    %2750 = vmatprep.subr.bf16.mxu0 0
    %2751 = vmatpush1.bf16.msra.mxu0 0
    %2752 = vmatprep.subr.bf16.mxu0 0
    %2753 = vmatpush1.bf16.msra.mxu0 0
    %2754 = vmatprep.subr.bf16.mxu0 0
    %2755 = vmatpush1.bf16.msra.mxu0 %v1446
    %2756 = vmatprep.subr.bf16.mxu0 0
    %2757 = vmatpush1.bf16.msra.mxu0 %v1445
    %2758 = vmatprep.subr.bf16.mxu0 0
    %2759 = vmatpush2.bf16.msra.mxu0 0
    %2760 = vmatprep.subr.bf16.mxu0 0
    %2761 = vmatpush2.bf16.msra.mxu0 0
    %2762 = vmatprep.subr.bf16.mxu0 0
    %2763 = vmatpush2.bf16.msra.mxu0 0
    %2764 = vmatprep.subr.bf16.mxu0 0
    %2765 = vmatpush2.bf16.msra.mxu0 0
    %2766 = vmatprep.subr.bf16.mxu0 0
    %2767 = vmatpush2.bf16.msra.mxu0 0
    %2768 = vmatprep.subr.bf16.mxu0 0
    %2769 = vmatpush2.bf16.msra.mxu0 0
    %2770 = vmatprep.subr.bf16.mxu0 0
    %2771 = vmatpush2.bf16.msra.mxu0 0
    %2772 = vmatprep.subr.bf16.mxu0 0
    %2773 = vmatpush2.bf16.msra.mxu0 0
    %2774 = vmatprep.mubr.bf16.mxu0 0
    %2775 = vmatmul.mubr.bf16.gmra.mxu0 %v2740
    %v2776 = vpop.f32.mrf.mxu0
    %v2777 = vadd.f32 %v167, %v2776
    %v2778 = vpop.f32.mrf.mxu0
    %v2779 = vpop.f32.mrf.mxu0
    %v2780 = vadd.f32 %v167, %v2779
    %v2781 = vpop.f32.mrf.mxu0
    %2782 = vdwg.mxu0
    %v2783 = vmul.f32 %v2777, 0.5
    %v2784 = vmul.f32 %v2780, 0.5
    %v2785 = vmul.f32 %v2777, %v1495
    %v2786 = vmul.f32 %v2780, %v1495
    %v2787 = vand.u32 2147483647, %v2785
    %v2788 = vand.u32 2147483647, %v2786
    %v2789 = vmul.f32 %v2787, 0.3275911
    %v2790 = vmul.f32 %v2788, 0.3275911
    %v2791 = vadd.f32 %v2789, 1.0
    %v2792 = vadd.f32 %v2790, 1.0
    %v2793 = vrcp.pop %v2791
    %v2794 = vmul.f32 1.0, %v2793
    %v2795 = vrcp.pop %v2792
    %v2796 = vmul.f32 1.0, %v2795
    %v2797 = vmul.f32 %v2794, 1.0614054
    %v2798 = vmul.f32 %v2796, 1.0614054
    %v2799 = vadd.f32 %v2797, -1.4531521
    %v2800 = vadd.f32 %v2798, -1.4531521
    %v2801 = vmul.f32 %v2799, %v2794
    %v2802 = vmul.f32 %v2800, %v2796
    %v2803 = vadd.f32 %v2801, 1.4214138
    %v2804 = vadd.f32 %v2802, 1.4214138
    %v2805 = vmul.f32 %v2803, %v2794
    %v2806 = vmul.f32 %v2804, %v2796
    %v2807 = vadd.f32 %v2805, -0.28449672
    %v2808 = vadd.f32 %v2806, -0.28449672
    %v2809 = vmul.f32 %v2807, %v2794
    %v2810 = vmul.f32 %v2808, %v2796
    %v2811 = vadd.f32 %v2809, 0.2548296
    %v2812 = vadd.f32 %v2810, 0.2548296
    %v2813 = vmul.f32 %v2811, %v2794
    %v2814 = vmul.f32 %v2812, %v2796
    %v2815 = vsub.f32 0.0, %v2787
    %v2816 = vsub.f32 0.0, %v2788
    %v2817 = vmul.f32 %v2815, %v2787
    %v2818 = vmul.f32 %v2816, %v2788
    %v2819 = vmul.f32 %v2817, 1.442695
    %v2820 = vpow.pop %v2819
    %v2821 = vmul.f32 %v2818, 1.442695
    %v2822 = vpow.pop %v2821
    %v2823 = vmul.f32 %v2813, %v2820
    %v2824 = vmul.f32 %v2814, %v2822
    %v2825 = vsub.f32 1.0, %v2823
    %v2826 = vsub.f32 1.0, %v2824
    %vm2827 = vcmp.ge.f32.partialorder %v2785, 0.0
    %vm2828 = vcmp.ge.f32.partialorder %v2786, 0.0
    %v2829 = vsub.f32 0.0, %v2825
    %v2830 = vsub.f32 0.0, %v2826
    %v2831 = vsel %vm2827, %v2825, %v2829
    %v2832 = vsel %vm2828, %v2826, %v2830
    %v2833 = vadd.f32 %v2831, 1.0
    %v2834 = vadd.f32 %v2832, 1.0
    %v2835 = vmul.f32 %v2783, %v2833
    %v2836 = vmul.f32 %v2784, %v2834
    %v2837 = vpack.c.bf16 %v2836, %v2835
    %v2839 = vsel %vm1573, %v2837, 0
    %2841 = vmatprep.subr.bf16.mxu0 0
    %2842 = vmatpush1.bf16.msra.mxu0 0
    %2843 = vmatprep.subr.bf16.mxu0 0
    %2844 = vmatpush1.bf16.msra.mxu0 0
    %2845 = vmatprep.subr.bf16.mxu0 0
    %2846 = vmatpush1.bf16.msra.mxu0 0
    %2847 = vmatprep.subr.bf16.mxu0 0
    %2848 = vmatpush1.bf16.msra.mxu0 0
    %2849 = vmatprep.subr.bf16.mxu0 0
    %2850 = vmatpush1.bf16.msra.mxu0 %v1568
    %2851 = vmatprep.subr.bf16.mxu0 0
    %2852 = vmatpush1.bf16.msra.mxu0 %v1567
    %2853 = vmatprep.subr.bf16.mxu0 0
    %2854 = vmatpush1.bf16.msra.mxu0 %v1566
    %2855 = vmatprep.subr.bf16.mxu0 0
    %2856 = vmatpush1.bf16.msra.mxu0 %v1565
    %2857 = vmatprep.subr.bf16.mxu0 0
    %2858 = vmatpush2.bf16.msra.mxu0 0
    %2859 = vmatprep.subr.bf16.mxu0 0
    %2860 = vmatpush2.bf16.msra.mxu0 0
    %2861 = vmatprep.subr.bf16.mxu0 0
    %2862 = vmatpush2.bf16.msra.mxu0 0
    %2863 = vmatprep.subr.bf16.mxu0 0
    %2864 = vmatpush2.bf16.msra.mxu0 0
    %2865 = vmatprep.subr.bf16.mxu0 0
    %2866 = vmatpush2.bf16.msra.mxu0 0
    %2867 = vmatprep.subr.bf16.mxu0 0
    %2868 = vmatpush2.bf16.msra.mxu0 0
    %2869 = vmatprep.subr.bf16.mxu0 0
    %2870 = vmatpush2.bf16.msra.mxu0 0
    %2871 = vmatprep.subr.bf16.mxu0 0
    %2872 = vmatpush2.bf16.msra.mxu0 0
    %2873 = vmatprep.mubr.bf16.mxu0 0
    %2874 = vmatmul.mubr.bf16.gmra.mxu0 %v2839
    %v2875 = vpop.f32.mrf.mxu0
    %v2876 = vadd.f32 %v174, %v2875
    %v2877 = vpop.f32.mrf.mxu0
    %v2878 = vpop.f32.mrf.mxu0
    %v2879 = vadd.f32 %v174, %v2878
    %v2880 = vpop.f32.mrf.mxu0
    %2881 = vdwg.mxu0
    %v2882 = vadd.f32 %v2736, %v2876
    %v2883 = vadd.f32 %v2737, %v2879
    %v2884 = vsel %vm277, %v2882, 0.0
    %2885 = vadd.xlane.f32.xlu0 %v2884
    %v2886 = vpop.xlane.xlu0 %2885
    %v2887 = vsel %vm277, %v2883, 0.0
    %2888 = vadd.xlane.f32.xlu0 %v2887
    %v2889 = vpop.xlane.xlu0 %2888
    %v2890 = vmul.f32 %v2886, %v284
    %v2891 = vmul.f32 %v2889, %v284
    %v2892 = vsub.f32 %v2882, %v2890
    %v2893 = vsub.f32 %v2883, %v2891
    %v2894 = vmul.f32 %v2892, %v2892
    %v2895 = vmul.f32 %v2893, %v2893
    %v2896 = vsel %vm277, %v2894, 0.0
    %2897 = vadd.xlane.f32.xlu0 %v2896
    %v2898 = vpop.xlane.xlu0 %2897
    %v2899 = vsel %vm277, %v2895, 0.0
    %2900 = vadd.xlane.f32.xlu0 %v2899
    %v2901 = vpop.xlane.xlu0 %2900
    %v2902 = vmul.f32 %v2898, %v284
    %v2903 = vmul.f32 %v2901, %v284
    %v2904 = vadd.f32 %v2902, 1e-12
    %v2905 = vadd.f32 %v2903, 1e-12
    %v2906 = vrsqrt.pop %v2904
    %v2907 = vmul.f32 %v2904, %v2906
    %vm2908 = vcmp.eq.f32.partialorder %v2904, inf
    %v2909 = vsel %vm2908, %v2904, %v2907
    %vm2910 = vcmp.eq.f32.partialorder %v2904, 0.0
    %v2911 = vand.u32 %v2904, 2147483648
    %v2912 = vsel %vm2910, %v2911, %v2909
    %v2913 = vrsqrt.pop %v2905
    %v2914 = vmul.f32 %v2905, %v2913
    %vm2915 = vcmp.eq.f32.partialorder %v2905, inf
    %v2916 = vsel %vm2915, %v2905, %v2914
    %vm2917 = vcmp.eq.f32.partialorder %v2905, 0.0
    %v2918 = vand.u32 %v2905, 2147483648
    %v2919 = vsel %vm2917, %v2918, %v2916
    %v2920 = vrcp.pop %v2912
    %v2921 = vmul.f32 %v2892, %v2920
    %v2922 = vrcp.pop %v2919
    %v2923 = vmul.f32 %v2893, %v2922
    %v2924 = vmul.f32 %v195, %v2921
    %v2925 = vmul.f32 %v195, %v2923
    %v2926 = vadd.f32 %v2924, %v202
    %v2927 = vadd.f32 %v2925, %v202
    %v2928 = vpack.c.bf16 %v2927, %v2926
    %v2929 = vpack.c.bf16 %v2926, %v2926
    %v2930 = vpack.c.bf16 %v2927, %v2927
    %v2931 = vld [vmem:[%s39] sm:$0xf]
    %v2932 = vld [vmem:[%s39 + $0x4] sm:$0xf]
    %v2933 = vld [vmem:[%s39 + $0x8] sm:$0xf]
    %v2934 = vld [vmem:[%s39 + $0xc] sm:$0xf]
    %v2935 = vld [vmem:[%s41] sm:$0x1]
    %v2937 = vlaneseq
    %v2938 = vshrl.u32 %v2937, 7
    %v2939 = vsub.s32 0, %v2938
    %v2940 = vrot.slane %v2935, %v2939
    %v2944 = vunpack.c.l.b16 %v2929
    %v2945 = vunpack.c.l.b16 %v2930
    %v2946 = vrot.slane %v2945, 7
    %vm2947 = vcmask 1041409
    %v2948 = vsel %vm2947, %v2946, %v2944
    %v2949 = vpack.c.b16 %v2948, %v2948
    %v2954 = vunpack.c.l.b16 %v2931
    %v2955 = vunpack.c.l.b16 %v2932
    %v2956 = vunpack.c.l.b16 %v2933
    %v2957 = vunpack.c.l.b16 %v2934
    %v2958 = vpack.c.b16 %v2955, %v2954
    %v2959 = vpack.c.b16 %v2957, %v2956
    %v2963 = vsel %vm277, %v2949, 0
    %2965 = vmatprep.subr.bf16.mxu0 0
    %2966 = vmatpush1.bf16.msra.mxu0 0
    %2967 = vmatprep.subr.bf16.mxu0 0
    %2968 = vmatpush1.bf16.msra.mxu0 0
    %2969 = vmatprep.subr.bf16.mxu0 0
    %2970 = vmatpush1.bf16.msra.mxu0 0
    %2971 = vmatprep.subr.bf16.mxu0 0
    %2972 = vmatpush1.bf16.msra.mxu0 0
    %2973 = vmatprep.subr.bf16.mxu0 0
    %2974 = vmatpush1.bf16.msra.mxu0 0
    %2975 = vmatprep.subr.bf16.mxu0 0
    %2976 = vmatpush1.bf16.msra.mxu0 0
    %2977 = vmatprep.subr.bf16.mxu0 0
    %2978 = vmatpush1.bf16.msra.mxu0 %v2959
    %2979 = vmatprep.subr.bf16.mxu0 0
    %2980 = vmatpush1.bf16.msra.mxu0 %v2958
    %2981 = vmatprep.subr.bf16.mxu0 0
    %2982 = vmatpush2.bf16.msra.mxu0 0
    %2983 = vmatprep.subr.bf16.mxu0 0
    %2984 = vmatpush2.bf16.msra.mxu0 0
    %2985 = vmatprep.subr.bf16.mxu0 0
    %2986 = vmatpush2.bf16.msra.mxu0 0
    %2987 = vmatprep.subr.bf16.mxu0 0
    %2988 = vmatpush2.bf16.msra.mxu0 0
    %2989 = vmatprep.subr.bf16.mxu0 0
    %2990 = vmatpush2.bf16.msra.mxu0 0
    %2991 = vmatprep.subr.bf16.mxu0 0
    %2992 = vmatpush2.bf16.msra.mxu0 0
    %2993 = vmatprep.subr.bf16.mxu0 0
    %2994 = vmatpush2.bf16.msra.mxu0 0
    %2995 = vmatprep.subr.bf16.mxu0 0
    %2996 = vmatpush2.bf16.msra.mxu0 0
    %2997 = vmatprep.mubr.bf16.mxu0 0
    %2998 = vmatmul.mubr.bf16.gmra.mxu0 %v2963
    %v2999 = vpop.f32.mrf.mxu0
    %v3000 = vadd.f32 %v2940, %v2999
    %v3001 = vpop.f32.mrf.mxu0
    %v3002 = vpop.f32.mrf.mxu0
    %v3003 = vpop.f32.mrf.mxu0
    %3004 = vdwg.mxu0
    %v3005 = vtanh.pop %v3000
    %v3006 = vpack.c.bf16 %v3005, %v3005
    %v3007 = vld [vmem:[%s43] sm:$0xf]
    %v3008 = vld [vmem:[%s43 + $0x4] sm:$0xf]
    %v3009 = vld [vmem:[%s43 + $0x8] sm:$0xf]
    %v3010 = vld [vmem:[%s43 + $0xc] sm:$0xf]
    %v3011 = vld [vmem:[%s45] sm:$0x1]
    %v3013 = vlaneseq
    %v3014 = vshrl.u32 %v3013, 7
    %v3015 = vsub.s32 0, %v3014
    %v3016 = vrot.slane %v3011, %v3015
    %v3022 = vunpack.c.l.b16 %v3007
    %v3023 = vunpack.c.l.b16 %v3008
    %v3024 = vunpack.c.l.b16 %v3009
    %v3025 = vunpack.c.l.b16 %v3010
    %v3026 = vpack.c.b16 %v3023, %v3022
    %v3027 = vpack.c.b16 %v3025, %v3024
    %v3031 = vsel %vm277, %v3006, 0
    %3033 = vmatprep.subr.bf16.mxu0 0
    %3034 = vmatpush1.bf16.msra.mxu0 0
    %3035 = vmatprep.subr.bf16.mxu0 0
    %3036 = vmatpush1.bf16.msra.mxu0 0
    %3037 = vmatprep.subr.bf16.mxu0 0
    %3038 = vmatpush1.bf16.msra.mxu0 0
    %3039 = vmatprep.subr.bf16.mxu0 0
    %3040 = vmatpush1.bf16.msra.mxu0 0
    %3041 = vmatprep.subr.bf16.mxu0 0
    %3042 = vmatpush1.bf16.msra.mxu0 0
    %3043 = vmatprep.subr.bf16.mxu0 0
    %3044 = vmatpush1.bf16.msra.mxu0 0
    %3045 = vmatprep.subr.bf16.mxu0 0
    %3046 = vmatpush1.bf16.msra.mxu0 %v3027
    %3047 = vmatprep.subr.bf16.mxu0 0
    %3048 = vmatpush1.bf16.msra.mxu0 %v3026
    %3049 = vmatprep.subr.bf16.mxu0 0
    %3050 = vmatpush2.bf16.msra.mxu0 0
    %3051 = vmatprep.subr.bf16.mxu0 0
    %3052 = vmatpush2.bf16.msra.mxu0 0
    %3053 = vmatprep.subr.bf16.mxu0 0
    %3054 = vmatpush2.bf16.msra.mxu0 0
    %3055 = vmatprep.subr.bf16.mxu0 0
    %3056 = vmatpush2.bf16.msra.mxu0 0
    %3057 = vmatprep.subr.bf16.mxu0 0
    %3058 = vmatpush2.bf16.msra.mxu0 0
    %3059 = vmatprep.subr.bf16.mxu0 0
    %3060 = vmatpush2.bf16.msra.mxu0 0
    %3061 = vmatprep.subr.bf16.mxu0 0
    %3062 = vmatpush2.bf16.msra.mxu0 0
    %3063 = vmatprep.subr.bf16.mxu0 0
    %3064 = vmatpush2.bf16.msra.mxu0 0
    %3065 = vmatprep.mubr.bf16.mxu0 0
    %3066 = vmatmul.mubr.bf16.gmra.mxu0 %v3031
    %v3067 = vpop.f32.mrf.mxu0
    %v3068 = vadd.f32 %v3016, %v3067
    %v3069 = vpop.f32.mrf.mxu0
    %v3070 = vpop.f32.mrf.mxu0
    %v3071 = vpop.f32.mrf.mxu0
    %3072 = vdwg.mxu0
    %3073 = vst [vmem:[#allocation4] sm:$0x3] %v3068
    %v3074 = vld [vmem:[%s5] sm:$0xf]
    %v3076 = vsel %vm226, %v3074, 0
    %3078 = vmatprep.subr.bf16.mxu0 0
    %3079 = vmatpush1.bf16.msra.mxu0 0
    %3080 = vmatprep.subr.bf16.mxu0 0
    %3081 = vmatpush1.bf16.msra.mxu0 0
    %3082 = vmatprep.subr.bf16.mxu0 0
    %3083 = vmatpush1.bf16.msra.mxu0 0
    %3084 = vmatprep.subr.bf16.mxu0 0
    %3085 = vmatpush1.bf16.msra.mxu0 0
    %3086 = vmatprep.subr.bf16.mxu0 0
    %3087 = vmatpush1.bf16.msra.mxu0 0
    %3088 = vmatprep.subr.bf16.mxu0 0
    %3089 = vmatpush1.bf16.msra.mxu0 0
    %3090 = vmatprep.subr.bf16.mxu0 0
    %3091 = vmatpush1.bf16.msra.mxu0 0
    %3092 = vmatprep.subr.bf16.mxu0 0
    %3093 = vmatpush1.bf16.msra.mxu0 %v2928
    %3094 = vmatprep.subr.bf16.mxu0 0
    %3095 = vmatpush2.bf16.msra.mxu0 0
    %3096 = vmatprep.subr.bf16.mxu0 0
    %3097 = vmatpush2.bf16.msra.mxu0 0
    %3098 = vmatprep.subr.bf16.mxu0 0
    %3099 = vmatpush2.bf16.msra.mxu0 0
    %3100 = vmatprep.subr.bf16.mxu0 0
    %3101 = vmatpush2.bf16.msra.mxu0 0
    %3102 = vmatprep.subr.bf16.mxu0 0
    %3103 = vmatpush2.bf16.msra.mxu0 0
    %3104 = vmatprep.subr.bf16.mxu0 0
    %3105 = vmatpush2.bf16.msra.mxu0 0
    %3106 = vmatprep.subr.bf16.mxu0 0
    %3107 = vmatpush2.bf16.msra.mxu0 0
    %3108 = vmatprep.subr.bf16.mxu0 0
    %3109 = vmatpush2.bf16.msra.mxu0 0
    %3110 = vmatprep.mubr.bf16.mxu0 0
    %3111 = vmatmul.mubr.bf16.gmra.mxu0 %v3076
    %v3112 = vpop.f32.mrf.mxu0
    %v3113 = vadd.f32 0.0, %v3112
    %v3114 = vpop.f32.mrf.mxu0
    %v3115 = vpop.f32.mrf.mxu0
    %v3116 = vpop.f32.mrf.mxu0
    %3117 = vdwg.mxu0
    %v3118 = vpack.c.bf16 %v3113, %v3113
    %v3119 = vld [vmem:[%s47] sm:$0xf]
    %v3120 = vld [vmem:[%s47 + $0x4] sm:$0xf]
    %v3121 = vld [vmem:[%s47 + $0x8] sm:$0xf]
    %v3122 = vld [vmem:[%s47 + $0xc] sm:$0xf]
    %v3123 = vld [vmem:[%s49] sm:$0x1]
    %v3125 = vlaneseq
    %v3126 = vshrl.u32 %v3125, 7
    %v3127 = vsub.s32 0, %v3126
    %v3128 = vrot.slane %v3123, %v3127
    %v3134 = vunpack.c.l.b16 %v3119
    %v3135 = vunpack.c.l.b16 %v3120
    %v3136 = vunpack.c.l.b16 %v3121
    %v3137 = vunpack.c.l.b16 %v3122
    %v3138 = vpack.c.b16 %v3135, %v3134
    %v3139 = vpack.c.b16 %v3137, %v3136
    %v3143 = vsel %vm277, %v3118, 0
    %3145 = vmatprep.subr.bf16.mxu0 0
    %3146 = vmatpush1.bf16.msra.mxu0 0
    %3147 = vmatprep.subr.bf16.mxu0 0
    %3148 = vmatpush1.bf16.msra.mxu0 0
    %3149 = vmatprep.subr.bf16.mxu0 0
    %3150 = vmatpush1.bf16.msra.mxu0 0
    %3151 = vmatprep.subr.bf16.mxu0 0
    %3152 = vmatpush1.bf16.msra.mxu0 0
    %3153 = vmatprep.subr.bf16.mxu0 0
    %3154 = vmatpush1.bf16.msra.mxu0 0
    %3155 = vmatprep.subr.bf16.mxu0 0
    %3156 = vmatpush1.bf16.msra.mxu0 0
    %3157 = vmatprep.subr.bf16.mxu0 0
    %3158 = vmatpush1.bf16.msra.mxu0 %v3139
    %3159 = vmatprep.subr.bf16.mxu0 0
    %3160 = vmatpush1.bf16.msra.mxu0 %v3138
    %3161 = vmatprep.subr.bf16.mxu0 0
    %3162 = vmatpush2.bf16.msra.mxu0 0
    %3163 = vmatprep.subr.bf16.mxu0 0
    %3164 = vmatpush2.bf16.msra.mxu0 0
    %3165 = vmatprep.subr.bf16.mxu0 0
    %3166 = vmatpush2.bf16.msra.mxu0 0
    %3167 = vmatprep.subr.bf16.mxu0 0
    %3168 = vmatpush2.bf16.msra.mxu0 0
    %3169 = vmatprep.subr.bf16.mxu0 0
    %3170 = vmatpush2.bf16.msra.mxu0 0
    %3171 = vmatprep.subr.bf16.mxu0 0
    %3172 = vmatpush2.bf16.msra.mxu0 0
    %3173 = vmatprep.subr.bf16.mxu0 0
    %3174 = vmatpush2.bf16.msra.mxu0 0
    %3175 = vmatprep.subr.bf16.mxu0 0
    %3176 = vmatpush2.bf16.msra.mxu0 0
    %3177 = vmatprep.mubr.bf16.mxu0 0
    %3178 = vmatmul.mubr.bf16.gmra.mxu0 %v3143
    %v3179 = vpop.f32.mrf.mxu0
    %v3180 = vadd.f32 %v3128, %v3179
    %v3181 = vpop.f32.mrf.mxu0
    %v3182 = vpop.f32.mrf.mxu0
    %v3183 = vpop.f32.mrf.mxu0
    %3184 = vdwg.mxu0
    %v3185 = vmul.f32 %v3180, 0.5
    %v3186 = vmul.f32 %v3180, %v1495
    %v3187 = vand.u32 2147483647, %v3186
    %v3188 = vmul.f32 %v3187, 0.3275911
    %v3189 = vadd.f32 %v3188, 1.0
    %v3190 = vrcp.pop %v3189
    %v3191 = vmul.f32 1.0, %v3190
    %v3192 = vmul.f32 %v3191, 1.0614054
    %v3193 = vadd.f32 %v3192, -1.4531521
    %v3194 = vmul.f32 %v3193, %v3191
    %v3195 = vadd.f32 %v3194, 1.4214138
    %v3196 = vmul.f32 %v3195, %v3191
    %v3197 = vadd.f32 %v3196, -0.28449672
    %v3198 = vmul.f32 %v3197, %v3191
    %v3199 = vadd.f32 %v3198, 0.2548296
    %v3200 = vmul.f32 %v3199, %v3191
    %v3201 = vsub.f32 0.0, %v3187
    %v3202 = vmul.f32 %v3201, %v3187
    %v3203 = vmul.f32 %v3202, 1.442695
    %v3204 = vpow.pop %v3203
    %v3205 = vmul.f32 %v3200, %v3204
    %v3206 = vsub.f32 1.0, %v3205
    %vm3207 = vcmp.ge.f32.partialorder %v3186, 0.0
    %v3208 = vsub.f32 0.0, %v3206
    %v3209 = vsel %vm3207, %v3206, %v3208
    %v3210 = vadd.f32 %v3209, 1.0
    %v3211 = vmul.f32 %v3185, %v3210
    %v3212 = vld [vmem:[%s51] sm:$0x1]
    %v3213 = vld [vmem:[%s53] sm:$0x1]
    %v3214 = vsel %vm277, %v3211, 0.0
    %3215 = vadd.xlane.f32.xlu0 %v3214
    %v3216 = vpop.xlane.xlu0 %3215
    %v3217 = vmul.f32 %v3216, %v284
    %v3218 = vsub.f32 %v3211, %v3217
    %v3219 = vmul.f32 %v3218, %v3218
    %v3220 = vsel %vm277, %v3219, 0.0
    %3221 = vadd.xlane.f32.xlu0 %v3220
    %v3222 = vpop.xlane.xlu0 %3221
    %v3223 = vmul.f32 %v3222, %v284
    %v3224 = vadd.f32 %v3223, 1e-12
    %v3225 = vrsqrt.pop %v3224
    %v3226 = vmul.f32 %v3224, %v3225
    %vm3227 = vcmp.eq.f32.partialorder %v3224, inf
    %v3228 = vsel %vm3227, %v3224, %v3226
    %vm3229 = vcmp.eq.f32.partialorder %v3224, 0.0
    %v3230 = vand.u32 %v3224, 2147483648
    %v3231 = vsel %vm3229, %v3230, %v3228
    %v3232 = vrcp.pop %v3231
    %v3233 = vmul.f32 %v3218, %v3232
    %v3235 = vlaneseq
    %v3236 = vshrl.u32 %v3235, 7
    %v3237 = vsub.s32 0, %v3236
    %v3238 = vrot.slane %v3212, %v3237
    %v3240 = vmul.f32 %v3238, %v3233
    %v3242 = vlaneseq
    %v3243 = vshrl.u32 %v3242, 7
    %v3244 = vsub.s32 0, %v3243
    %v3245 = vrot.slane %v3213, %v3244
    %v3247 = vadd.f32 %v3240, %v3245
    %v3248 = vpack.c.bf16 %v3247, %v3247
    %v3249 = vld [vmem:[%s55] sm:$0xf]
    %v3250 = vld [vmem:[%s55 + $0x4] sm:$0xf]
    %v3251 = vld [vmem:[%s55 + $0x8] sm:$0xf]
    %v3252 = vld [vmem:[%s55 + $0xc] sm:$0xf]
    %v3253 = vld [vmem:[%s57] sm:$0x1]
    %v3255 = vlaneseq
    %v3256 = vshrl.u32 %v3255, 7
    %v3257 = vsub.s32 0, %v3256
    %v3258 = vrot.slane %v3253, %v3257
    %v3264 = vunpack.c.l.b16 %v3249
    %v3265 = vunpack.c.l.b16 %v3250
    %v3266 = vunpack.c.l.b16 %v3251
    %v3267 = vunpack.c.l.b16 %v3252
    %v3268 = vpack.c.b16 %v3265, %v3264
    %v3269 = vpack.c.b16 %v3267, %v3266
    %v3273 = vsel %vm277, %v3248, 0
    %3275 = vmatprep.subr.bf16.mxu0 0
    %3276 = vmatpush1.bf16.msra.mxu0 0
    %3277 = vmatprep.subr.bf16.mxu0 0
    %3278 = vmatpush1.bf16.msra.mxu0 0
    %3279 = vmatprep.subr.bf16.mxu0 0
    %3280 = vmatpush1.bf16.msra.mxu0 0
    %3281 = vmatprep.subr.bf16.mxu0 0
    %3282 = vmatpush1.bf16.msra.mxu0 0
    %3283 = vmatprep.subr.bf16.mxu0 0
    %3284 = vmatpush1.bf16.msra.mxu0 0
    %3285 = vmatprep.subr.bf16.mxu0 0
    %3286 = vmatpush1.bf16.msra.mxu0 0
    %3287 = vmatprep.subr.bf16.mxu0 0
    %3288 = vmatpush1.bf16.msra.mxu0 %v3269
    %3289 = vmatprep.subr.bf16.mxu0 0
    %3290 = vmatpush1.bf16.msra.mxu0 %v3268
    %3291 = vmatprep.subr.bf16.mxu0 0
    %3292 = vmatpush2.bf16.msra.mxu0 0
    %3293 = vmatprep.subr.bf16.mxu0 0
    %3294 = vmatpush2.bf16.msra.mxu0 0
    %3295 = vmatprep.subr.bf16.mxu0 0
    %3296 = vmatpush2.bf16.msra.mxu0 0
    %3297 = vmatprep.subr.bf16.mxu0 0
    %3298 = vmatpush2.bf16.msra.mxu0 0
    %3299 = vmatprep.subr.bf16.mxu0 0
    %3300 = vmatpush2.bf16.msra.mxu0 0
    %3301 = vmatprep.subr.bf16.mxu0 0
    %3302 = vmatpush2.bf16.msra.mxu0 0
    %3303 = vmatprep.subr.bf16.mxu0 0
    %3304 = vmatpush2.bf16.msra.mxu0 0
    %3305 = vmatprep.subr.bf16.mxu0 0
    %3306 = vmatpush2.bf16.msra.mxu0 0
    %3307 = vmatprep.mubr.bf16.mxu0 0
    %3308 = vmatmul.mubr.bf16.gmra.mxu0 %v3273
    %v3309 = vpop.f32.mrf.mxu0
    %v3310 = vadd.f32 %v3258, %v3309
    %v3311 = vpop.f32.mrf.mxu0
    %v3312 = vpop.f32.mrf.mxu0
    %v3313 = vpop.f32.mrf.mxu0
    %3314 = vdwg.mxu0
    %3315 = vst [vmem:[#allocation2] sm:$0xff] %v3310
    // Predicated region
    $region118: #{bert4pretrain_forward.1} parent=1 // pred_check
      _
    $region119: #{bert4pretrain_forward.1} parent=1 // pred_check_branch
      %3317 = sbr.rel (0) target = $region121
    $region120: #{bert4pretrain_forward.1} parent=1 // pred_region
      %s3319 = ssub.s32 128, 128
      %3320 = vsyncadd [#allocation3], %s3319
      %s3322 = sshll.u32 [#allocation2], 4
      %s3323 = int_to_ptr.vmem [resolvable:$true] %s3322
      %3325 = dma.vmem_to_hbm [thread:$0]  %s3323, 128, %s59, [#allocation3]
    $region121: #{bert4pretrain_forward.1} parent=1 // pred_fallthru
      _
    // Predicated region
    $region122: #{bert4pretrain_forward.1} parent=1 // pred_check
      _
    $region123: #{bert4pretrain_forward.1} parent=1 // pred_check_branch
      %3327 = sbr.rel (0) target = $region125
    $region124: #{bert4pretrain_forward.1} parent=1 // pred_region
      %s3329 = ssub.s32 32, 32
      %3330 = vsyncadd [#allocation5], %s3329
      %s3332 = sshll.u32 [#allocation4], 4
      %s3333 = int_to_ptr.vmem [resolvable:$true] %s3332
      %3335 = dma.vmem_to_hbm [thread:$0]  %s3333, 32, %s61, [#allocation5]
    $region125: #{bert4pretrain_forward.1} parent=1 // pred_fallthru
      _
    // Predicated region
    $region126: #{bert4pretrain_forward.1} parent=1 // pred_check
      _
    $region127: #{bert4pretrain_forward.1} parent=1 // pred_check_branch
      %3337 = sbr.rel (0) target = $region129
    $region128: #{bert4pretrain_forward.1} parent=1 // pred_region
      %3338 = dma.done [#allocation3], 128
    $region129: #{bert4pretrain_forward.1} parent=1 // pred_fallthru
      _
    // Predicated region
    $region130: #{bert4pretrain_forward.1} parent=1 // pred_check
      _
    $region131: #{bert4pretrain_forward.1} parent=1 // pred_check_branch
      %3340 = sbr.rel (0) target = $region133
    $region132: #{bert4pretrain_forward.1} parent=1 // pred_region
      %3341 = dma.done [#allocation5], 32
    $region133: #{bert4pretrain_forward.1} parent=1 // pred_fallthru
      _
    %3342 = vsyncpa [#allocation3], 1
    %3343 = vsyncpa [#allocation5], 1

</llo_original>
